<compile_context>
chip_gen: v7x
topology: tpu7x:2x2x1
jax: 0.10.0
libtpu: 0.0.40
codegen_flags: <defaults>
</compile_context>

<pallas_src>
import functools

import jax
import jax.numpy as jnp
from jax.experimental import pallas as pl
from jax.experimental.pallas import tpu as pltpu


# --------------------------------------------------------------------------
# GCNConv aggregation: relu(A_hat @ P + b), P = X @ W precomputed in wrapper.
# Grid = (row tiles, K tiles); K (reduction) axis is last and "arbitrary".
# --------------------------------------------------------------------------
def gcn_agg_kernel(a_ref, p_ref, b_ref, o_ref, acc_ref):
    k = pl.program_id(1)

    @pl.when(k == 0)
    def _():
        acc_ref[...] = jnp.zeros_like(acc_ref)

    # (tm, tk) @ (tk, C): bf16 inputs on the MXU, f32 accumulation.
    acc_ref[...] += jnp.dot(a_ref[...], p_ref[...],
                            preferred_element_type=jnp.float32)

    @pl.when(k == pl.num_programs(1) - 1)
    def _():
        # Bias + ReLU applied once on the finalized accumulator.
        o_ref[...] = jnp.maximum(acc_ref[...] + b_ref[...], 0.0).astype(o_ref.dtype)


def gcn_aggregate(a_bf16, p_bf16, b_f32, *, tm, tk):
    n = a_bf16.shape[0]
    c = p_bf16.shape[1]
    grid = (n // tm, n // tk)
    return pl.pallas_call(
        gcn_agg_kernel,
        out_shape=jax.ShapeDtypeStruct((n, c), jnp.bfloat16),
        grid_spec=pltpu.PrefetchScalarGridSpec(
            num_scalar_prefetch=0,
            grid=grid,
            in_specs=[
                pl.BlockSpec((tm, tk), lambda i, k: (i, k)),   # A_hat tile (streamed)
                pl.BlockSpec((tk, c), lambda i, k: (k, 0)),    # P K-rows (tiny)
                pl.BlockSpec((1, c), lambda i, k: (0, 0)),     # bias (resident)
            ],
            out_specs=pl.BlockSpec((tm, c), lambda i, k: (i, 0)),
            scratch_shapes=[pltpu.VMEM((tm, c), jnp.float32)],
        ),
        compiler_params=pltpu.CompilerParams(
            dimension_semantics=("parallel", "arbitrary"),
            vmem_limit_bytes=32 * 1024 * 1024),
    )(a_bf16, p_bf16, b_f32)


# --------------------------------------------------------------------------
# scatter_max over batch -> Linear -> log_softmax, streamed over N tiles.
# h is fed transposed (C, N) so N sits on the lane axis (lane-dense VPU work).
# --------------------------------------------------------------------------
def pool_head_kernel(ht_ref, mask_ref, w3_ref, b3_ref, out_ref, pooled_ref):
    i = pl.program_id(0)
    neg = jnp.float32(-1e30)

    @pl.when(i == 0)
    def _():
        pooled_ref[...] = jnp.full_like(pooled_ref, neg)

    h_t = ht_ref[...].astype(jnp.float32)        # (C, tn), N on lanes
    m = mask_ref[...]                            # (G, tn) one-hot membership
    masked = jnp.where(m[:, None, :] > 0.0, h_t[None, :, :], neg)  # (G, C, tn)
    pooled_ref[...] = jnp.maximum(pooled_ref[...], jnp.max(masked, axis=-1))

    @pl.when(i == pl.num_programs(0) - 1)
    def _():
        logits = jnp.dot(pooled_ref[...], w3_ref[...],
                         preferred_element_type=jnp.float32) + b3_ref[...]
        z = logits - jnp.max(logits, axis=1, keepdims=True)
        lse = jnp.log(jnp.sum(jnp.exp(z), axis=1, keepdims=True))
        out_ref[...] = z - lse                   # (G, num_classes) log-probs


def pool_head(ht, mask, w3, b3, *, tn):
    c, n = ht.shape
    g = mask.shape[0]
    nc = w3.shape[1]
    grid = (n // tn,)
    return pl.pallas_call(
        pool_head_kernel,
        out_shape=jax.ShapeDtypeStruct((g, nc), jnp.float32),
        grid_spec=pltpu.PrefetchScalarGridSpec(
            num_scalar_prefetch=0,
            grid=grid,
            in_specs=[
                pl.BlockSpec((c, tn), lambda i: (0, i)),    # h^T N-tile
                pl.BlockSpec((g, tn), lambda i: (0, i)),    # mask N-tile
                pl.BlockSpec((c, nc), lambda i: (0, 0)),    # W3 (resident)
                pl.BlockSpec((1, nc), lambda i: (0, 0)),    # b3 (resident)
            ],
            out_specs=pl.BlockSpec((g, nc), lambda i: (0, 0)),
            scratch_shapes=[pltpu.VMEM((g, c), jnp.float32)],
        ),
        compiler_params=pltpu.CompilerParams(
            dimension_semantics=("arbitrary",),
            vmem_limit_bytes=32 * 1024 * 1024),
    )(ht, mask, w3, b3)


# --------------------------------------------------------------------------
# Full forward pass (eval mode).
# --------------------------------------------------------------------------
def _clamp_pow2(t, n, lo=128):
    """Shrink a power-of-two tile so it does not exceed the problem size."""
    t = max(lo, t)
    while t > lo and t > n:
        t //= 2
    return t


@functools.partial(jax.jit, static_argnames=("tm", "tk"))
def gcn_forward(a_hat, x, mask, w1, b1, w2, b2, w3, b3, *, tm=512, tk=1024):
    n = x.shape[0]
    tm_eff = _clamp_pow2(tm, n)
    tk_eff = _clamp_pow2(tk, n)
    # Keep >= 2 row tiles so the "parallel" row axis can shard across v7x's
    # two TensorCores (moot on v5e/v6e, harmless there).
    while tm_eff > 128 and pl.cdiv(n, tm_eff) < 2:
        tm_eff //= 2
    lcm = max(tm_eff, tk_eff)          # both powers of two
    n_pad = pl.cdiv(n, lcm) * lcm
    pad = n_pad - n
    if pad:
        # Zero-padded rows/cols of A_hat contribute nothing to real rows and
        # padded nodes are excluded from every graph's pooling mask.
        a_hat = jnp.pad(a_hat, ((0, pad), (0, pad)))
        x = jnp.pad(x, ((0, pad), (0, 0)))
        mask = jnp.pad(mask, ((0, 0), (0, pad)))

    a_bf16 = a_hat.astype(jnp.bfloat16)          # halves A_hat HBM traffic

    # conv1: P1 = X @ W1 computed ONCE (tiny N x 16), then stream A_hat.
    p1 = jnp.dot(x.astype(jnp.bfloat16), w1.astype(jnp.bfloat16),
                 preferred_element_type=jnp.float32).astype(jnp.bfloat16)
    h1 = gcn_aggregate(a_bf16, p1, b1, tm=tm_eff, tk=tk_eff)   # relu(A@P1+b1)

    # conv2: same pattern (dropout == identity in eval mode).
    p2 = jnp.dot(h1, w2.astype(jnp.bfloat16),
                 preferred_element_type=jnp.float32).astype(jnp.bfloat16)
    h2 = gcn_aggregate(a_bf16, p2, b2, tm=tm_eff, tk=tk_eff)   # relu(A@P2+b2)

    # scatter_max pool + Linear + log_softmax, streamed lane-dense over N.
    tn = min(tk_eff, 512)              # power of two, divides n_pad
    return pool_head(h2.T, mask, w3, b3, tn=tn)


# --------------------------------------------------------------------------
# Glue + reference (pure JAX, mirrors the kernel's bf16/f32 precision choices).
# --------------------------------------------------------------------------
def normalized_adjacency(edge_index, num_nodes):
    """Dense A_hat = D^-1/2 (A + I) D^-1/2 (GCNConv normalization)."""
    src, dst = edge_index[0], edge_index[1]
    adj = jnp.zeros((num_nodes, num_nodes), jnp.float32)
    adj = adj.at[dst, src].add(1.0)
    adj = adj + jnp.eye(num_nodes, dtype=jnp.float32)
    deg = jnp.sum(adj, axis=1)
    d_inv_sqrt = 1.0 / jnp.sqrt(jnp.maximum(deg, 1e-12))
    return d_inv_sqrt[:, None] * adj * d_inv_sqrt[None, :]


def gcn_reference(a_hat, x, mask, w1, b1, w2, b2, w3, b3):
    a = a_hat.astype(jnp.bfloat16)

    def layer(h_bf16, w, b):
        p = jnp.dot(h_bf16, w.astype(jnp.bfloat16),
                    preferred_element_type=jnp.float32).astype(jnp.bfloat16)
        out = jnp.dot(a, p, preferred_element_type=jnp.float32) + b
        return jnp.maximum(out, 0.0).astype(jnp.bfloat16)

    h = layer(x.astype(jnp.bfloat16), w1, b1)
    h = layer(h, w2, b2)
    hf = h.astype(jnp.float32)
    neg = jnp.float32(-1e30)
    pooled = jnp.max(jnp.where(mask[:, :, None] > 0.0, hf[None, :, :], neg), axis=1)
    logits = jnp.dot(pooled, w3, preferred_element_type=jnp.float32) + b3
    return jax.nn.log_softmax(logits, axis=1)


if __name__ == "__main__":
    num_node_features = 2   # module default
    hidden = 16
    num_classes = 10
    nodes_per_graph = 32
    num_graphs = 16
    num_nodes = num_graphs * nodes_per_graph   # 512 -> tm=256, tk=512 after clamping

    key = jax.random.PRNGKey(0)
    kx, k1, kb1, k2, kb2, k3, kb3 = jax.random.split(key, 7)

    x = jax.random.normal(kx, (num_nodes, num_node_features), jnp.float32)

    # Undirected ring graphs, both edge directions.
    edges = []
    for g in range(num_graphs):
        base = g * nodes_per_graph
        for i in range(nodes_per_graph):
            j = (i + 1) % nodes_per_graph
            edges.append((base + i, base + j))
            edges.append((base + j, base + i))
    edge_index = jnp.array(edges, dtype=jnp.int32).T                 # (2, E)
    batch = jnp.repeat(jnp.arange(num_graphs, dtype=jnp.int32),
                       nodes_per_graph)                              # (N,)

    # Deterministic parameter init (glorot-ish scaling).
    w1 = jax.random.normal(k1, (num_node_features, hidden), jnp.float32) \
        * (1.0 / jnp.sqrt(num_node_features))
    b1 = 0.01 * jax.random.normal(kb1, (1, hidden), jnp.float32)
    w2 = jax.random.normal(k2, (hidden, hidden), jnp.float32) \
        * (1.0 / jnp.sqrt(hidden))
    b2 = 0.01 * jax.random.normal(kb2, (1, hidden), jnp.float32)
    w3 = jax.random.normal(k3, (hidden, num_classes), jnp.float32) \
        * (1.0 / jnp.sqrt(hidden))
    b3 = 0.01 * jax.random.normal(kb3, (1, num_classes), jnp.float32)

    # Glue: dense normalized adjacency + one-hot pooling mask.
    a_hat = normalized_adjacency(edge_index, num_nodes)
    mask = (batch[None, :] == jnp.arange(num_graphs)[:, None]).astype(jnp.float32)

    out = gcn_forward(a_hat, x, mask, w1, b1, w2, b2, w3, b3)
    out = jax.block_until_ready(out)
    assert out.shape == (num_graphs, num_classes)
    assert bool(jnp.all(jnp.isfinite(out)))

    ref = gcn_reference(a_hat, x, mask, w1, b1, w2, b2, w3, b3)
    assert bool(jnp.allclose(out, ref, atol=5e-2, rtol=5e-2)), "mismatch vs reference"

    print("KERNEL_OK")
</pallas_src>

<mosaic_0001>
module attributes {stable_mosaic.version = 11 : i64} {
  func.func @gcn_agg_kernel(%arg0: i32, %arg1: i32, %arg2: memref<256x512xbf16, #tpu.memory_space<vmem>>, %arg3: memref<512x16xbf16, #tpu.memory_space<vmem>>, %arg4: memref<1x16xf32, #tpu.memory_space<vmem>>, %arg5: memref<256x16xbf16, #tpu.memory_space<vmem>>, %arg6: memref<256x16xf32, #tpu.memory_space<vmem>>) attributes {dimension_semantics = [#tpu.dimension_semantics<parallel>, #tpu.dimension_semantics<arbitrary>], iteration_bounds = array<i64: 2, 1>, scalar_prefetch = 0 : i64, scratch_operands = 1 : i64, tpu.core_type = #tpu.core_type<tc>, window_params = [{transform_indices = @transform_0, window_bounds = array<i64: 256, 512>}, {transform_indices = @transform_1, window_bounds = array<i64: 512, 16>}, {pipeline_mode = #tpu.pipeline_mode<synchronous>, transform_indices = @transform_2, window_bounds = array<i64: 1, 16>}, {transform_indices = @transform_3, window_bounds = array<i64: 256, 16>}]} {
    %c0_i32 = arith.constant 0 : i32
    %0 = arith.cmpi eq, %arg1, %c0_i32 : i32
    %1 = arith.extui %0 : i1 to i32
    %c0_i32_0 = arith.constant 0 : i32
    %2 = arith.cmpi ne, %1, %c0_i32_0 : i32
    scf.if %2 {
      %cst_10 = arith.constant 0.000000e+00 : f32
      %12 = vector.broadcast %cst_10 : f32 to vector<256x16xf32>
      %c0_11 = arith.constant 0 : index
      %c0_12 = arith.constant 0 : index
      %13 = vector.load %arg6[%c0_11, %c0_12] : memref<256x16xf32, #tpu.memory_space<vmem>>, vector<256x16xf32>
      tpu.vector_store %arg6[%c0_11, %c0_12], %12 {strides = array<i32>} : memref<256x16xf32, #tpu.memory_space<vmem>>, vector<256x16xf32>,
    } else {
    }
    %c0 = arith.constant 0 : index
    %c0_1 = arith.constant 0 : index
    %3 = vector.load %arg6[%c0, %c0_1] : memref<256x16xf32, #tpu.memory_space<vmem>>, vector<256x16xf32>
    %c0_2 = arith.constant 0 : index
    %c0_3 = arith.constant 0 : index
    %4 = vector.load %arg2[%c0_2, %c0_3] : memref<256x512xbf16, #tpu.memory_space<vmem>>, vector<256x512xbf16>
    %c0_4 = arith.constant 0 : index
    %c0_5 = arith.constant 0 : index
    %5 = vector.load %arg3[%c0_4, %c0_5] : memref<512x16xbf16, #tpu.memory_space<vmem>>, vector<512x16xbf16>
    %cst = arith.constant dense<0.000000e+00> : vector<256x16xf32>
    %6 = tpu.matmul %4, %5, %cst {dimension_numbers = #tpu.dot_dimension_numbers<[1], [0], [0], [1], [0, 0, 1, 1], [], []>} : vector<256x512xbf16>, vector<512x16xbf16>, vector<256x16xf32> -> vector<256x16xf32>
    %7 = arith.addf %3, %6 : vector<256x16xf32>
    %c0_6 = arith.constant 0 : index
    %c0_7 = arith.constant 0 : index
    %8 = vector.load %arg6[%c0_6, %c0_7] : memref<256x16xf32, #tpu.memory_space<vmem>>, vector<256x16xf32>
    tpu.vector_store %arg6[%c0_6, %c0_7], %7 {strides = array<i32>} : memref<256x16xf32, #tpu.memory_space<vmem>>, vector<256x16xf32>,
    %c0_i32_8 = arith.constant 0 : i32
    %9 = arith.cmpi eq, %arg1, %c0_i32_8 : i32
    %10 = arith.extui %9 : i1 to i32
    %c0_i32_9 = arith.constant 0 : i32
    %11 = arith.cmpi ne, %10, %c0_i32_9 : i32
    scf.if %11 {
      %c0_10 = arith.constant 0 : index
      %c0_11 = arith.constant 0 : index
      %12 = vector.load %arg6[%c0_10, %c0_11] : memref<256x16xf32, #tpu.memory_space<vmem>>, vector<256x16xf32>
      %c0_12 = arith.constant 0 : index
      %c0_13 = arith.constant 0 : index
      %13 = vector.load %arg4[%c0_12, %c0_13] : memref<1x16xf32, #tpu.memory_space<vmem>>, vector<1x16xf32>
      %14 = vector.broadcast %13 : vector<1x16xf32> to vector<256x16xf32>
      %15 = arith.addf %12, %14 : vector<256x16xf32>
      %cst_14 = arith.constant 0.000000e+00 : f32
      %16 = vector.broadcast %cst_14 : f32 to vector<256x16xf32>
      %17 = arith.maximumf %15, %16 : vector<256x16xf32>
      %18 = arith.truncf %17 : vector<256x16xf32> to vector<256x16xbf16>
      %c0_15 = arith.constant 0 : index
      %c0_16 = arith.constant 0 : index
      %19 = vector.load %arg5[%c0_15, %c0_16] : memref<256x16xbf16, #tpu.memory_space<vmem>>, vector<256x16xbf16>
      tpu.vector_store %arg5[%c0_15, %c0_16], %18 {strides = array<i32>} : memref<256x16xbf16, #tpu.memory_space<vmem>>, vector<256x16xbf16>,
    } else {
    }
    return
  }
  func.func @transform_0(%arg0: i32, %arg1: i32) -> (i32, i32) {
    %c0_i32 = arith.constant 0 : i32
    return %arg0, %arg1 : i32, i32
  }
  func.func @transform_1(%arg0: i32, %arg1: i32) -> (i32, i32) {
    %c0_i32 = arith.constant 0 : i32
    %c0_i32_0 = arith.constant 0 : i32
    return %arg1, %c0_i32 : i32, i32
  }
  func.func @transform_2(%arg0: i32, %arg1: i32) -> (i32, i32) {
    %c0_i32 = arith.constant 0 : i32
    %c0_i32_0 = arith.constant 0 : i32
    %c0_i32_1 = arith.constant 0 : i32
    return %c0_i32, %c0_i32_0 : i32, i32
  }
  func.func @transform_3(%arg0: i32, %arg1: i32) -> (i32, i32) {
    %c0_i32 = arith.constant 0 : i32
    %c0_i32_0 = arith.constant 0 : i32
    return %arg0, %c0_i32 : i32, i32
  }
}

module attributes {stable_mosaic.version = 11 : i64} {
  func.func @gcn_agg_kernel(%arg0: i32, %arg1: i32, %arg2: memref<256x512xbf16, #tpu.memory_space<vmem>>, %arg3: memref<512x16xbf16, #tpu.memory_space<vmem>>, %arg4: memref<1x16xf32, #tpu.memory_space<vmem>>, %arg5: memref<256x16xbf16, #tpu.memory_space<vmem>>, %arg6: memref<256x16xf32, #tpu.memory_space<vmem>>) attributes {dimension_semantics = [#tpu.dimension_semantics<parallel>, #tpu.dimension_semantics<arbitrary>], iteration_bounds = array<i64: 2, 1>, scalar_prefetch = 0 : i64, scratch_operands = 1 : i64, tpu.core_type = #tpu.core_type<tc>, window_params = [{transform_indices = @transform_0, window_bounds = array<i64: 256, 512>}, {transform_indices = @transform_1, window_bounds = array<i64: 512, 16>}, {pipeline_mode = #tpu.pipeline_mode<synchronous>, transform_indices = @transform_2, window_bounds = array<i64: 1, 16>}, {transform_indices = @transform_3, window_bounds = array<i64: 256, 16>}]} {
    %c0_i32 = arith.constant 0 : i32
    %0 = arith.cmpi eq, %arg1, %c0_i32 : i32
    %1 = arith.extui %0 : i1 to i32
    %c0_i32_0 = arith.constant 0 : i32
    %2 = arith.cmpi ne, %1, %c0_i32_0 : i32
    scf.if %2 {
      %cst_10 = arith.constant 0.000000e+00 : f32
      %12 = vector.broadcast %cst_10 : f32 to vector<256x16xf32>
      %c0_11 = arith.constant 0 : index
      %c0_12 = arith.constant 0 : index
      %13 = vector.load %arg6[%c0_11, %c0_12] : memref<256x16xf32, #tpu.memory_space<vmem>>, vector<256x16xf32>
      tpu.vector_store %arg6[%c0_11, %c0_12], %12 {strides = array<i32>} : memref<256x16xf32, #tpu.memory_space<vmem>>, vector<256x16xf32>,
    } else {
    }
    %c0 = arith.constant 0 : index
    %c0_1 = arith.constant 0 : index
    %3 = vector.load %arg6[%c0, %c0_1] : memref<256x16xf32, #tpu.memory_space<vmem>>, vector<256x16xf32>
    %c0_2 = arith.constant 0 : index
    %c0_3 = arith.constant 0 : index
    %4 = vector.load %arg2[%c0_2, %c0_3] : memref<256x512xbf16, #tpu.memory_space<vmem>>, vector<256x512xbf16>
    %c0_4 = arith.constant 0 : index
    %c0_5 = arith.constant 0 : index
    %5 = vector.load %arg3[%c0_4, %c0_5] : memref<512x16xbf16, #tpu.memory_space<vmem>>, vector<512x16xbf16>
    %cst = arith.constant dense<0.000000e+00> : vector<256x16xf32>
    %6 = tpu.matmul %4, %5, %cst {dimension_numbers = #tpu.dot_dimension_numbers<[1], [0], [0], [1], [0, 0, 1, 1], [], []>} : vector<256x512xbf16>, vector<512x16xbf16>, vector<256x16xf32> -> vector<256x16xf32>
    %7 = arith.addf %3, %6 : vector<256x16xf32>
    %c0_6 = arith.constant 0 : index
    %c0_7 = arith.constant 0 : index
    %8 = vector.load %arg6[%c0_6, %c0_7] : memref<256x16xf32, #tpu.memory_space<vmem>>, vector<256x16xf32>
    tpu.vector_store %arg6[%c0_6, %c0_7], %7 {strides = array<i32>} : memref<256x16xf32, #tpu.memory_space<vmem>>, vector<256x16xf32>,
    %c0_i32_8 = arith.constant 0 : i32
    %9 = arith.cmpi eq, %arg1, %c0_i32_8 : i32
    %10 = arith.extui %9 : i1 to i32
    %c0_i32_9 = arith.constant 0 : i32
    %11 = arith.cmpi ne, %10, %c0_i32_9 : i32
    scf.if %11 {
      %c0_10 = arith.constant 0 : index
      %c0_11 = arith.constant 0 : index
      %12 = vector.load %arg6[%c0_10, %c0_11] : memref<256x16xf32, #tpu.memory_space<vmem>>, vector<256x16xf32>
      %c0_12 = arith.constant 0 : index
      %c0_13 = arith.constant 0 : index
      %13 = vector.load %arg4[%c0_12, %c0_13] : memref<1x16xf32, #tpu.memory_space<vmem>>, vector<1x16xf32>
      %14 = vector.broadcast %13 : vector<1x16xf32> to vector<256x16xf32>
      %15 = arith.addf %12, %14 : vector<256x16xf32>
      %cst_14 = arith.constant 0.000000e+00 : f32
      %16 = vector.broadcast %cst_14 : f32 to vector<256x16xf32>
      %17 = arith.maximumf %15, %16 : vector<256x16xf32>
      %18 = arith.truncf %17 : vector<256x16xf32> to vector<256x16xbf16>
      %c0_15 = arith.constant 0 : index
      %c0_16 = arith.constant 0 : index
      %19 = vector.load %arg5[%c0_15, %c0_16] : memref<256x16xbf16, #tpu.memory_space<vmem>>, vector<256x16xbf16>
      tpu.vector_store %arg5[%c0_15, %c0_16], %18 {strides = array<i32>} : memref<256x16xbf16, #tpu.memory_space<vmem>>, vector<256x16xbf16>,
    } else {
    }
    return
  }
  func.func @transform_0(%arg0: i32, %arg1: i32) -> (i32, i32) {
    %c0_i32 = arith.constant 0 : i32
    return %arg0, %arg1 : i32, i32
  }
  func.func @transform_1(%arg0: i32, %arg1: i32) -> (i32, i32) {
    %c0_i32 = arith.constant 0 : i32
    %c0_i32_0 = arith.constant 0 : i32
    return %arg1, %c0_i32 : i32, i32
  }
  func.func @transform_2(%arg0: i32, %arg1: i32) -> (i32, i32) {
    %c0_i32 = arith.constant 0 : i32
    %c0_i32_0 = arith.constant 0 : i32
    %c0_i32_1 = arith.constant 0 : i32
    return %c0_i32, %c0_i32_0 : i32, i32
  }
  func.func @transform_3(%arg0: i32, %arg1: i32) -> (i32, i32) {
    %c0_i32 = arith.constant 0 : i32
    %c0_i32_0 = arith.constant 0 : i32
    return %arg0, %c0_i32 : i32, i32
  }
}

module attributes {stable_mosaic.version = 11 : i64} {
  func.func @pool_head_kernel(%arg0: i32, %arg1: memref<16x512xbf16, #tpu.memory_space<vmem>>, %arg2: memref<16x512xf32, #tpu.memory_space<vmem>>, %arg3: memref<16x10xf32, #tpu.memory_space<vmem>>, %arg4: memref<1x10xf32, #tpu.memory_space<vmem>>, %arg5: memref<16x10xf32, #tpu.memory_space<vmem>>, %arg6: memref<16x16xf32, #tpu.memory_space<vmem>>) attributes {dimension_semantics = [#tpu.dimension_semantics<arbitrary>], iteration_bounds = array<i64: 1>, scalar_prefetch = 0 : i64, scratch_operands = 1 : i64, tpu.core_type = #tpu.core_type<tc>, window_params = [{transform_indices = @transform_0, window_bounds = array<i64: 16, 512>}, {transform_indices = @transform_1, window_bounds = array<i64: 16, 512>}, {pipeline_mode = #tpu.pipeline_mode<synchronous>, transform_indices = @transform_2, window_bounds = array<i64: 16, 10>}, {pipeline_mode = #tpu.pipeline_mode<synchronous>, transform_indices = @transform_3, window_bounds = array<i64: 1, 10>}, {pipeline_mode = #tpu.pipeline_mode<synchronous>, transform_indices = @transform_4, window_bounds = array<i64: 16, 10>}]} {
    %c0_i32 = arith.constant 0 : i32
    %0 = arith.cmpi eq, %arg0, %c0_i32 : i32
    %1 = arith.extui %0 : i1 to i32
    %cst = arith.constant -1.000000e+30 : f32
    %c0_i32_0 = arith.constant 0 : i32
    %2 = arith.cmpi ne, %1, %c0_i32_0 : i32
    scf.if %2 {
      %23 = vector.broadcast %cst : f32 to vector<16x16xf32>
      %c0_13 = arith.constant 0 : index
      %c0_14 = arith.constant 0 : index
      %24 = vector.load %arg6[%c0_13, %c0_14] : memref<16x16xf32, #tpu.memory_space<vmem>>, vector<16x16xf32>
      tpu.vector_store %arg6[%c0_13, %c0_14], %23 {strides = array<i32>} : memref<16x16xf32, #tpu.memory_space<vmem>>, vector<16x16xf32>,
    } else {
    }
    %c0 = arith.constant 0 : index
    %c0_1 = arith.constant 0 : index
    %3 = vector.load %arg1[%c0, %c0_1] : memref<16x512xbf16, #tpu.memory_space<vmem>>, vector<16x512xbf16>
    %4 = arith.extf %3 : vector<16x512xbf16> to vector<16x512xf32>
    %c0_2 = arith.constant 0 : index
    %c0_3 = arith.constant 0 : index
    %5 = vector.load %arg2[%c0_2, %c0_3] : memref<16x512xf32, #tpu.memory_space<vmem>>, vector<16x512xf32>
    %6 = vector.shape_cast %5 : vector<16x512xf32> to vector<16x1x512xf32>
    %cst_4 = arith.constant 0.000000e+00 : f32
    %7 = vector.broadcast %cst_4 : f32 to vector<16x1x512xf32>
    %8 = arith.cmpf ogt, %6, %7 : vector<16x1x512xf32>
    %9 = vector.shape_cast %4 : vector<16x512xf32> to vector<1x16x512xf32>
    %cst_5 = arith.constant -1.000000e+30 : f32
    %10 = vector.shape_cast %8 : vector<16x1x512xi1> to vector<16x1x512xi1>
    %11 = vector.broadcast %10 : vector<16x1x512xi1> to vector<16x16x512xi1>
    %12 = vector.shape_cast %9 : vector<1x16x512xf32> to vector<1x16x512xf32>
    %13 = vector.broadcast %12 : vector<1x16x512xf32> to vector<16x16x512xf32>
    %14 = vector.broadcast %cst_5 : f32 to vector<16x16x512xf32>
    %15 = arith.select %11, %13, %14 : vector<16x16x512xi1>, vector<16x16x512xf32>
    %c0_6 = arith.constant 0 : index
    %c0_7 = arith.constant 0 : index
    %16 = vector.load %arg6[%c0_6, %c0_7] : memref<16x16xf32, #tpu.memory_space<vmem>>, vector<16x16xf32>
    %cst_8 = arith.constant dense<0xFF800000> : vector<16x16xf32>
    %17 = vector.multi_reduction <maximumf>, %15, %cst_8 [2] : vector<16x16x512xf32> to vector<16x16xf32>
    %18 = arith.maximumf %16, %17 : vector<16x16xf32>
    %c0_9 = arith.constant 0 : index
    %c0_10 = arith.constant 0 : index
    %19 = vector.load %arg6[%c0_9, %c0_10] : memref<16x16xf32, #tpu.memory_space<vmem>>, vector<16x16xf32>
    tpu.vector_store %arg6[%c0_9, %c0_10], %18 {strides = array<i32>} : memref<16x16xf32, #tpu.memory_space<vmem>>, vector<16x16xf32>,
    %c0_i32_11 = arith.constant 0 : i32
    %20 = arith.cmpi eq, %arg0, %c0_i32_11 : i32
    %21 = arith.extui %20 : i1 to i32
    %c0_i32_12 = arith.constant 0 : i32
    %22 = arith.cmpi ne, %21, %c0_i32_12 : i32
    scf.if %22 {
      %c0_13 = arith.constant 0 : index
      %c0_14 = arith.constant 0 : index
      %23 = vector.load %arg6[%c0_13, %c0_14] : memref<16x16xf32, #tpu.memory_space<vmem>>, vector<16x16xf32>
      %c0_15 = arith.constant 0 : index
      %c0_16 = arith.constant 0 : index
      %24 = vector.load %arg3[%c0_15, %c0_16] : memref<16x10xf32, #tpu.memory_space<vmem>>, vector<16x10xf32>
      %cst_17 = arith.constant dense<0.000000e+00> : vector<16x10xf32>
      %25 = tpu.matmul %23, %24, %cst_17 {dimension_numbers = #tpu.dot_dimension_numbers<[1], [0], [0], [1], [0, 0, 1, 1], [], []>} : vector<16x16xf32>, vector<16x10xf32>, vector<16x10xf32> -> vector<16x10xf32>
      %c0_18 = arith.constant 0 : index
      %c0_19 = arith.constant 0 : index
      %26 = vector.load %arg4[%c0_18, %c0_19] : memref<1x10xf32, #tpu.memory_space<vmem>>, vector<1x10xf32>
      %27 = vector.broadcast %26 : vector<1x10xf32> to vector<16x10xf32>
      %28 = arith.addf %25, %27 : vector<16x10xf32>
      %cst_20 = arith.constant dense<0xFF800000> : vector<16xf32>
      %29 = vector.multi_reduction <maximumf>, %28, %cst_20 [1] : vector<16x10xf32> to vector<16xf32>
      %30 = vector.shape_cast %29 : vector<16xf32> to vector<16x1xf32>
      %31 = vector.broadcast %30 : vector<16x1xf32> to vector<16x10xf32>
      %32 = arith.subf %28, %31 : vector<16x10xf32>
      %33 = math.exp %32 : vector<16x10xf32>
      %cst_21 = arith.constant dense<0.000000e+00> : vector<16xf32>
      %34 = vector.multi_reduction <add>, %33, %cst_21 [1] : vector<16x10xf32> to vector<16xf32>
      %35 = vector.shape_cast %34 : vector<16xf32> to vector<16x1xf32>
      %36 = math.log %35 : vector<16x1xf32>
      %37 = vector.broadcast %36 : vector<16x1xf32> to vector<16x10xf32>
      %38 = arith.subf %32, %37 : vector<16x10xf32>
      %c0_22 = arith.constant 0 : index
      %c0_23 = arith.constant 0 : index
      %39 = vector.load %arg5[%c0_22, %c0_23] : memref<16x10xf32, #tpu.memory_space<vmem>>, vector<16x10xf32>
      tpu.vector_store %arg5[%c0_22, %c0_23], %38 {strides = array<i32>} : memref<16x10xf32, #tpu.memory_space<vmem>>, vector<16x10xf32>,
    } else {
    }
    return
  }
  func.func @transform_0(%arg0: i32) -> (i32, i32) {
    %c0_i32 = arith.constant 0 : i32
    %c0_i32_0 = arith.constant 0 : i32
    return %c0_i32, %arg0 : i32, i32
  }
  func.func @transform_1(%arg0: i32) -> (i32, i32) {
    %c0_i32 = arith.constant 0 : i32
    %c0_i32_0 = arith.constant 0 : i32
    return %c0_i32, %arg0 : i32, i32
  }
  func.func @transform_2(%arg0: i32) -> (i32, i32) {
    %c0_i32 = arith.constant 0 : i32
    %c0_i32_0 = arith.constant 0 : i32
    %c0_i32_1 = arith.constant 0 : i32
    return %c0_i32, %c0_i32_0 : i32, i32
  }
  func.func @transform_3(%arg0: i32) -> (i32, i32) {
    %c0_i32 = arith.constant 0 : i32
    %c0_i32_0 = arith.constant 0 : i32
    %c0_i32_1 = arith.constant 0 : i32
    return %c0_i32, %c0_i32_0 : i32, i32
  }
  func.func @transform_4(%arg0: i32) -> (i32, i32) {
    %c0_i32 = arith.constant 0 : i32
    %c0_i32_0 = arith.constant 0 : i32
    %c0_i32_1 = arith.constant 0 : i32
    return %c0_i32, %c0_i32_0 : i32, i32
  }
}

</mosaic_0001>

<llo_original>
// kernel: gcn_forward.3
$region0: #{gcn_forward.3}
  #allocation0 [shape = 'u32[]', space=smem, size = 0x4, offset = 0x4, fixed_abs, tag = 'smem constant byte address 0x4 - core index']
  #allocation1 [shape = 'u32[144,128]{1,0:T(1,128)}', space=vmem, size = 0x12000, scoped, tag = 'internal scratch']
  #allocation2 [shape = 'f32[256,16]{1,0:T(8,128)}', space=vmem, size = 0x20000, scoped, tag = 'scratch operand']
  %s0 = inlined_call_operand.vmem [shape: bf16[512,512], index: 0, kind: input, shape index: {}]
  %s1 = inlined_call_operand.vmem [shape: bf16[512,16], index: 1, kind: input, shape index: {}]
  %s2 = inlined_call_operand.vmem [shape: f32[1,16], index: 2, kind: input, shape index: {}]
  %s3 = inlined_call_operand.vmem [shape: bf16[512,16], index: 3, kind: output, shape index: {}]
  %s4 = sld [smem:[#allocation0]]
  $region53: #{gcn_forward.3} parent=0
    _
  %s6 = ssub.s32 1, %s4
  %s7 = scalar_select 0, %s6, %s4
  loop: start=0, step=1, limit=4
  $region2: #{gcn_forward.3} parent=0 // loop_pre_header
    _
  $region3: #{gcn_forward.3} parent=0 // loop_header
    %s9 = sphi 0, %s13
    %p10 = scmp.ge.s32.totalorder %s9, 4
    %s16 = sphi 0, %s28
    %s17 = sphi 0, %s24
    %s18 = sphi 0, %s16
    %s19 = sphi 0, %s17
    %s20 = sphi 0, %s18
    %s21 = sphi 0, %s19
    %s33 = sphi 0, %s35
    %s36 = sphi 0, %s33
    %s37 = sphi 0, %s36
    %s53 = sphi 0, %s37
    %s59 = sphi 0, %s61
    %s62 = sphi 0, %s59
    %s63 = sphi 0, %s62
    %s79 = sphi 0, %s63
    %s83 = sphi 0, %s83
    %s85 = sphi 0, %s83
    %s86 = sphi 0, %s85
    %s100 = sphi 0, %s86
    %s106 = sphi 0, %s108
    %s109 = sphi 0, %s106
    %s110 = sphi 0, %s109
    %s126 = sphi 0, %s110
  $region4: #{gcn_forward.3} parent=0 // loop_header_branch
    %12 = sbr.rel (%p10) target = $region8
  $region5: #{gcn_forward.3} parent=0 // loop_body
    %s14 = ssub.s32 %s9, 1
    %s15 = ssub.s32 %s9, 2
    %s22 = sadd.s32 1, %s17
    %p23 = scmp.ge.s32.totalorder %s22, 1
    %s24 = scalar_select %p23, 0, %s22
    %s25 = sadd.s32 1, %s16
    %s26 = scalar_select %p23, %s25, %s16
    %p27 = scmp.ge.s32.totalorder %s26, 2
    %s28 = scalar_select %p27, 0, %s26
    %s29 = ssub.s32 %s16, %s28
    %s30 = ssub.s32 %s17, %s24
    %s31 = sor.u32 %s29, %s30
    %p32 = scmp.eq.s32.totalorder %s31, 0
    %s34 = sadd.s32 %s33, 1
    %s35 = scalar_select %p32, %s33, %s34
    %p38 = pneg %p32
    %p39 = scmp.eq.s32.totalorder %s9, 1
    %p40 = por %p38, %p39
    %p41 = scmp.ne.s32.totalorder %s33, %s36
    %p42 = scmp.eq.s32.totalorder %s9, 0
    %p43 = por %p41, %p42
    %p44 = scmp.ne.s32.totalorder %s33, %s36
    %p45 = scmp.eq.s32.totalorder %s14, 1
    %p46 = por %p44, %p45
    %p47 = scmp.ne.s32.totalorder %s36, %s37
    %p48 = scmp.eq.s32.totalorder %s14, 0
    %p49 = por %p47, %p48
    %p50 = scmp.ne.s32.totalorder %s36, %s37
    %p51 = scmp.eq.s32.totalorder %s15, 1
    %p52 = por %p50, %p51
    %p54 = scmp.ne.s32.totalorder %s37, %s53
    %p55 = scmp.eq.s32.totalorder %s15, 0
    %p56 = por %p54, %p55
    %s57 = ssub.s32 %s17, %s24
    %p58 = scmp.eq.s32.totalorder %s57, 0
    %s60 = sadd.s32 %s59, 1
    %s61 = scalar_select %p58, %s59, %s60
    %p64 = pneg %p58
    %p65 = scmp.eq.s32.totalorder %s9, 1
    %p66 = por %p64, %p65
    %p67 = scmp.ne.s32.totalorder %s59, %s62
    %p68 = scmp.eq.s32.totalorder %s9, 0
    %p69 = por %p67, %p68
    %p70 = scmp.ne.s32.totalorder %s59, %s62
    %p71 = scmp.eq.s32.totalorder %s14, 1
    %p72 = por %p70, %p71
    %p73 = scmp.ne.s32.totalorder %s62, %s63
    %p74 = scmp.eq.s32.totalorder %s14, 0
    %p75 = por %p73, %p74
    %p76 = scmp.ne.s32.totalorder %s62, %s63
    %p77 = scmp.eq.s32.totalorder %s15, 1
    %p78 = por %p76, %p77
    %p80 = scmp.ne.s32.totalorder %s63, %s79
    %p81 = scmp.eq.s32.totalorder %s15, 0
    %p82 = por %p80, %p81
    %s84 = sadd.s32 %s83, 1
    %p87 = scmp.eq.s32.totalorder %s9, 1
    %p88 = scmp.ne.s32.totalorder %s83, %s85
    %p89 = scmp.eq.s32.totalorder %s9, 0
    %p90 = por %p88, %p89
    %p91 = scmp.ne.s32.totalorder %s83, %s85
    %p92 = scmp.eq.s32.totalorder %s14, 1
    %p93 = por %p91, %p92
    %p94 = scmp.ne.s32.totalorder %s85, %s86
    %p95 = scmp.eq.s32.totalorder %s14, 0
    %p96 = por %p94, %p95
    %p97 = scmp.ne.s32.totalorder %s85, %s86
    %p98 = scmp.eq.s32.totalorder %s15, 1
    %p99 = por %p97, %p98
    %p101 = scmp.ne.s32.totalorder %s86, %s100
    %p102 = scmp.eq.s32.totalorder %s15, 0
    %p103 = por %p101, %p102
    %s104 = ssub.s32 %s16, %s28
    %p105 = scmp.eq.s32.totalorder %s104, 0
    %s107 = sadd.s32 %s106, 1
    %s108 = scalar_select %p105, %s106, %s107
    %p111 = pneg %p105
    %p112 = scmp.eq.s32.totalorder %s9, 1
    %p113 = por %p111, %p112
    %p114 = scmp.ne.s32.totalorder %s106, %s109
    %p115 = scmp.eq.s32.totalorder %s9, 0
    %p116 = por %p114, %p115
    %p117 = scmp.ne.s32.totalorder %s106, %s109
    %p118 = scmp.eq.s32.totalorder %s14, 1
    %p119 = por %p117, %p118
    %p120 = scmp.ne.s32.totalorder %s109, %s110
    %p121 = scmp.eq.s32.totalorder %s14, 0
    %p122 = por %p120, %p121
    %p123 = scmp.ne.s32.totalorder %s109, %s110
    %p124 = scmp.eq.s32.totalorder %s15, 1
    %p125 = por %p123, %p124
    %p127 = scmp.ne.s32.totalorder %s110, %s126
    %p128 = scmp.eq.s32.totalorder %s15, 0
    %p129 = por %p127, %p128
    %p130 = scmp.le.s32.totalorder 1, %s9
    %p131 = scmp.lt.s32.totalorder %s9, 3
    %p132 = pnand %p130, %p131
    %p133 = pneg %p132
    // Predicated region
    $region9: #{gcn_forward.3} parent=5 // pred_check
      _
    $region10: #{gcn_forward.3} parent=5 // pred_check_branch
      %135 = sbr.rel (%p132) target = $region12
    $region11: #{gcn_forward.3} parent=5 // pred_region
      %s136 = ssub.s32 %s9, 1
      // Predicated region
      $region13: #{gcn_forward.3} parent=11 // pred_check
        %p137 = pneg %p75
      $region14: #{gcn_forward.3} parent=11 // pred_check_branch
        %139 = sbr.rel (%p137) target = $region16
      $region15: #{gcn_forward.3} parent=11 // pred_region
        %s140 = smul.u32 64, %s19
        %p141 = scmp.lt.s32.totalorder %s140, 63
        %s142 = scalar_select %p141, %s140, 63
        %s143 = smul.addr %s142, 4
        %s144 = scalar_lea.vmem %s1, %s143
        %s145 = smul.u32 64, %s19
      $region16: #{gcn_forward.3} parent=11 // pred_fallthru
        _
      // Predicated region
      $region17: #{gcn_forward.3} parent=11 // pred_check
        %p146 = pneg %p96
      $region18: #{gcn_forward.3} parent=11 // pred_check_branch
        %148 = sbr.rel (%p146) target = $region20
      $region19: #{gcn_forward.3} parent=11 // pred_region
        _
      $region20: #{gcn_forward.3} parent=11 // pred_fallthru
        _
    $region12: #{gcn_forward.3} parent=5 // pred_fallthru
      _
    %p149 = scmp.lt.s32.totalorder %s9, 2
    // Predicated region
    $region21: #{gcn_forward.3} parent=5 // pred_check
      %p150 = pneg %p149
    $region22: #{gcn_forward.3} parent=5 // pred_check_branch
      %152 = sbr.rel (%p150) target = $region24
    $region23: #{gcn_forward.3} parent=5 // pred_region
      // Predicated region
      $region25: #{gcn_forward.3} parent=23 // pred_check
        %p153 = pneg %p43
      $region26: #{gcn_forward.3} parent=23 // pred_check_branch
        %155 = sbr.rel (%p153) target = $region28
      $region27: #{gcn_forward.3} parent=23 // pred_region
        %s156 = smul.u32 32, %s16
        %s157 = smul.u32 4, %s17
        %p158 = scmp.lt.s32.totalorder %s156, 63
        %s159 = scalar_select %p158, %s156, 63
        %p160 = scmp.lt.s32.totalorder %s157, 3
        %s161 = scalar_select %p160, %s157, 3
        %s162 = smul.addr %s159, 4
        %s163 = sadd.s32 %s161, %s162
        %s164 = smul.addr %s163, 4
        %s165 = scalar_lea.vmem %s0, %s164
        %s166 = smul.u32 32, %s16
        %s167 = smul.u32 4, %s17
      $region28: #{gcn_forward.3} parent=23 // pred_fallthru
        _
    $region24: #{gcn_forward.3} parent=5 // pred_fallthru
      _
    %p168 = scmp.le.s32.totalorder 1, %s9
    %p169 = scmp.lt.s32.totalorder %s9, 3
    %p170 = pnand %p168, %p169
    %p171 = pneg %p170
    // Predicated region
    $region29: #{gcn_forward.3} parent=5 // pred_check
      _
    $region30: #{gcn_forward.3} parent=5 // pred_check_branch
      %173 = sbr.rel (%p170) target = $region32
    $region31: #{gcn_forward.3} parent=5 // pred_region
      %s174 = ssub.s32 %s9, 1
      %s175 = smul.u32 32, %s18
      %s176 = smul.u32 4, %s19
      %p177 = scmp.lt.s32.totalorder %s175, 63
      %s178 = scalar_select %p177, %s175, 63
      %p179 = scmp.lt.s32.totalorder %s176, 3
      %s180 = scalar_select %p179, %s176, 3
      %s181 = smul.addr %s178, 4
      %s182 = sadd.s32 %s180, %s181
      %s183 = smul.addr %s182, 4
      %s184 = scalar_lea.vmem %s0, %s183
      %p185 = pneg %p49
      %p186 = pneg %p46
      %s187 = smul.u32 64, %s19
      %p188 = scmp.lt.s32.totalorder %s187, 63
      %s189 = scalar_select %p188, %s187, 63
      %s190 = smul.addr %s189, 4
      %s191 = scalar_lea.vmem %s1, %s190
      %p192 = pneg %p75
      %p193 = pneg %p72
      %p194 = pneg %p96
      %p195 = pneg %p93
      %p196 = pneg %p122
      %p197 = pneg %p119
      %s198 = smul.u32 16, %s18
      %p199 = scmp.lt.s32.totalorder %s198, 31
      %s200 = scalar_select %p199, %s198, 31
      %s201 = smul.addr %s200, 8
      %s202 = scalar_lea.vmem %s3, %s201
      %s203 = smul.u32 32, %s18
      %s204 = smul.u32 4, %s19
      %p205 = scmp.lt.s32.totalorder %s203, 63
      %s206 = scalar_select %p205, %s203, 63
      %p207 = scmp.lt.s32.totalorder %s204, 3
      %s208 = scalar_select %p207, %s204, 3
      %s209 = smul.addr %s206, 4
      %s210 = sadd.s32 %s208, %s209
      %s211 = smul.addr %s210, 4
      %s212 = scalar_lea.vmem %s0, %s211
      %s213 = smul.u32 32, %s18
      %s214 = smul.u32 4, %s19
      %s215 = smul.u32 64, %s19
      %p216 = scmp.lt.s32.totalorder %s215, 63
      %s217 = scalar_select %p216, %s215, 63
      %s218 = smul.addr %s217, 4
      %s219 = scalar_lea.vmem %s1, %s218
      %s220 = smul.u32 64, %s19
      %s221 = smul.u32 16, %s18
      %p222 = scmp.lt.s32.totalorder %s221, 31
      %s223 = scalar_select %p222, %s221, 31
      %s224 = smul.addr %s223, 8
      %s225 = scalar_lea.vmem %s3, %s224
      %s226 = smul.u32 16, %s18
      %p228 = scmp.eq.s32.totalorder %s19, 0
      // Predicated region
      $region33: #{gcn_forward.3} parent=31 // pred_check
        %p229 = pneg %p228
      $region34: #{gcn_forward.3} parent=31 // pred_check_branch
        %231 = sbr.rel (%p229) target = $region36
      $region35: #{gcn_forward.3} parent=31 // pred_region
        %vm232 = vcmask 130048
        %233 = vst.msk [vmem:[#allocation2] sm:$0xff] %vm232, 0.0
        %234 = vst.msk [vmem:[#allocation2 + $0x8] sm:$0xff] %vm232, 0.0
        %235 = vst.msk [vmem:[#allocation2 + $0x10] sm:$0xff] %vm232, 0.0
        %236 = vst.msk [vmem:[#allocation2 + $0x18] sm:$0xff] %vm232, 0.0
        %237 = vst.msk [vmem:[#allocation2 + $0x20] sm:$0xff] %vm232, 0.0
        %238 = vst.msk [vmem:[#allocation2 + $0x28] sm:$0xff] %vm232, 0.0
        %239 = vst.msk [vmem:[#allocation2 + $0x30] sm:$0xff] %vm232, 0.0
        %240 = vst.msk [vmem:[#allocation2 + $0x38] sm:$0xff] %vm232, 0.0
        %241 = vst.msk [vmem:[#allocation2 + $0x40] sm:$0xff] %vm232, 0.0
        %242 = vst.msk [vmem:[#allocation2 + $0x48] sm:$0xff] %vm232, 0.0
        %243 = vst.msk [vmem:[#allocation2 + $0x50] sm:$0xff] %vm232, 0.0
        %244 = vst.msk [vmem:[#allocation2 + $0x58] sm:$0xff] %vm232, 0.0
        %245 = vst.msk [vmem:[#allocation2 + $0x60] sm:$0xff] %vm232, 0.0
        %246 = vst.msk [vmem:[#allocation2 + $0x68] sm:$0xff] %vm232, 0.0
        %247 = vst.msk [vmem:[#allocation2 + $0x70] sm:$0xff] %vm232, 0.0
        %248 = vst.msk [vmem:[#allocation2 + $0x78] sm:$0xff] %vm232, 0.0
        %249 = vst.msk [vmem:[#allocation2 + $0x80] sm:$0xff] %vm232, 0.0
        %250 = vst.msk [vmem:[#allocation2 + $0x88] sm:$0xff] %vm232, 0.0
        %251 = vst.msk [vmem:[#allocation2 + $0x90] sm:$0xff] %vm232, 0.0
        %252 = vst.msk [vmem:[#allocation2 + $0x98] sm:$0xff] %vm232, 0.0
        %253 = vst.msk [vmem:[#allocation2 + $0xa0] sm:$0xff] %vm232, 0.0
        %254 = vst.msk [vmem:[#allocation2 + $0xa8] sm:$0xff] %vm232, 0.0
        %255 = vst.msk [vmem:[#allocation2 + $0xb0] sm:$0xff] %vm232, 0.0
        %256 = vst.msk [vmem:[#allocation2 + $0xb8] sm:$0xff] %vm232, 0.0
        %257 = vst.msk [vmem:[#allocation2 + $0xc0] sm:$0xff] %vm232, 0.0
        %258 = vst.msk [vmem:[#allocation2 + $0xc8] sm:$0xff] %vm232, 0.0
        %259 = vst.msk [vmem:[#allocation2 + $0xd0] sm:$0xff] %vm232, 0.0
        %260 = vst.msk [vmem:[#allocation2 + $0xd8] sm:$0xff] %vm232, 0.0
        %261 = vst.msk [vmem:[#allocation2 + $0xe0] sm:$0xff] %vm232, 0.0
        %262 = vst.msk [vmem:[#allocation2 + $0xe8] sm:$0xff] %vm232, 0.0
        %263 = vst.msk [vmem:[#allocation2 + $0xf0] sm:$0xff] %vm232, 0.0
        %264 = vst.msk [vmem:[#allocation2 + $0xf8] sm:$0xff] %vm232, 0.0
      $region36: #{gcn_forward.3} parent=31 // pred_fallthru
        _
      %v265 = vld [vmem:[#allocation2] sm:$0xff]
      %v266 = vld [vmem:[#allocation2 + $0x8] sm:$0xff]
      %v267 = vld [vmem:[#allocation2 + $0x10] sm:$0xff]
      %v268 = vld [vmem:[#allocation2 + $0x18] sm:$0xff]
      %v269 = vld [vmem:[#allocation2 + $0x20] sm:$0xff]
      %v270 = vld [vmem:[#allocation2 + $0x28] sm:$0xff]
      %v271 = vld [vmem:[#allocation2 + $0x30] sm:$0xff]
      %v272 = vld [vmem:[#allocation2 + $0x38] sm:$0xff]
      %v273 = vld [vmem:[#allocation2 + $0x40] sm:$0xff]
      %v274 = vld [vmem:[#allocation2 + $0x48] sm:$0xff]
      %v275 = vld [vmem:[#allocation2 + $0x50] sm:$0xff]
      %v276 = vld [vmem:[#allocation2 + $0x58] sm:$0xff]
      %v277 = vld [vmem:[#allocation2 + $0x60] sm:$0xff]
      %v278 = vld [vmem:[#allocation2 + $0x68] sm:$0xff]
      %v279 = vld [vmem:[#allocation2 + $0x70] sm:$0xff]
      %v280 = vld [vmem:[#allocation2 + $0x78] sm:$0xff]
      %v281 = vld [vmem:[#allocation2 + $0x80] sm:$0xff]
      %v282 = vld [vmem:[#allocation2 + $0x88] sm:$0xff]
      %v283 = vld [vmem:[#allocation2 + $0x90] sm:$0xff]
      %v284 = vld [vmem:[#allocation2 + $0x98] sm:$0xff]
      %v285 = vld [vmem:[#allocation2 + $0xa0] sm:$0xff]
      %v286 = vld [vmem:[#allocation2 + $0xa8] sm:$0xff]
      %v287 = vld [vmem:[#allocation2 + $0xb0] sm:$0xff]
      %v288 = vld [vmem:[#allocation2 + $0xb8] sm:$0xff]
      %v289 = vld [vmem:[#allocation2 + $0xc0] sm:$0xff]
      %v290 = vld [vmem:[#allocation2 + $0xc8] sm:$0xff]
      %v291 = vld [vmem:[#allocation2 + $0xd0] sm:$0xff]
      %v292 = vld [vmem:[#allocation2 + $0xd8] sm:$0xff]
      %v293 = vld [vmem:[#allocation2 + $0xe0] sm:$0xff]
      %v294 = vld [vmem:[#allocation2 + $0xe8] sm:$0xff]
      %v295 = vld [vmem:[#allocation2 + $0xf0] sm:$0xff]
      %v296 = vld [vmem:[#allocation2 + $0xf8] sm:$0xff]
      %v297 = vld [vmem:[%s212] sm:$0xff]
      %v298 = vld [vmem:[%s212 + $0x8] sm:$0xff]
      %v299 = vld [vmem:[%s212 + $0x10] sm:$0xff]
      %v300 = vld [vmem:[%s212 + $0x18] sm:$0xff]
      %v301 = vld [vmem:[%s212 + $0x20] sm:$0xff]
      %v302 = vld [vmem:[%s212 + $0x28] sm:$0xff]
      %v303 = vld [vmem:[%s212 + $0x30] sm:$0xff]
      %v304 = vld [vmem:[%s212 + $0x38] sm:$0xff]
      %v305 = vld [vmem:[%s212 + $0x40] sm:$0xff]
      %v306 = vld [vmem:[%s212 + $0x48] sm:$0xff]
      %v307 = vld [vmem:[%s212 + $0x50] sm:$0xff]
      %v308 = vld [vmem:[%s212 + $0x58] sm:$0xff]
      %v309 = vld [vmem:[%s212 + $0x60] sm:$0xff]
      %v310 = vld [vmem:[%s212 + $0x68] sm:$0xff]
      %v311 = vld [vmem:[%s212 + $0x70] sm:$0xff]
      %v312 = vld [vmem:[%s212 + $0x78] sm:$0xff]
      %v313 = vld [vmem:[%s212 + $0x80] sm:$0xff]
      %v314 = vld [vmem:[%s212 + $0x88] sm:$0xff]
      %v315 = vld [vmem:[%s212 + $0x90] sm:$0xff]
      %v316 = vld [vmem:[%s212 + $0x98] sm:$0xff]
      %v317 = vld [vmem:[%s212 + $0xa0] sm:$0xff]
      %v318 = vld [vmem:[%s212 + $0xa8] sm:$0xff]
      %v319 = vld [vmem:[%s212 + $0xb0] sm:$0xff]
      %v320 = vld [vmem:[%s212 + $0xb8] sm:$0xff]
      %v321 = vld [vmem:[%s212 + $0xc0] sm:$0xff]
      %v322 = vld [vmem:[%s212 + $0xc8] sm:$0xff]
      %v323 = vld [vmem:[%s212 + $0xd0] sm:$0xff]
      %v324 = vld [vmem:[%s212 + $0xd8] sm:$0xff]
      %v325 = vld [vmem:[%s212 + $0xe0] sm:$0xff]
      %v326 = vld [vmem:[%s212 + $0xe8] sm:$0xff]
      %v327 = vld [vmem:[%s212 + $0xf0] sm:$0xff]
      %v328 = vld [vmem:[%s212 + $0xf8] sm:$0xff]
      %v329 = vld [vmem:[%s212 + $0x100] sm:$0xff]
      %v330 = vld [vmem:[%s212 + $0x108] sm:$0xff]
      %v331 = vld [vmem:[%s212 + $0x110] sm:$0xff]
      %v332 = vld [vmem:[%s212 + $0x118] sm:$0xff]
      %v333 = vld [vmem:[%s212 + $0x120] sm:$0xff]
      %v334 = vld [vmem:[%s212 + $0x128] sm:$0xff]
      %v335 = vld [vmem:[%s212 + $0x130] sm:$0xff]
      %v336 = vld [vmem:[%s212 + $0x138] sm:$0xff]
      %v337 = vld [vmem:[%s212 + $0x140] sm:$0xff]
      %v338 = vld [vmem:[%s212 + $0x148] sm:$0xff]
      %v339 = vld [vmem:[%s212 + $0x150] sm:$0xff]
      %v340 = vld [vmem:[%s212 + $0x158] sm:$0xff]
      %v341 = vld [vmem:[%s212 + $0x160] sm:$0xff]
      %v342 = vld [vmem:[%s212 + $0x168] sm:$0xff]
      %v343 = vld [vmem:[%s212 + $0x170] sm:$0xff]
      %v344 = vld [vmem:[%s212 + $0x178] sm:$0xff]
      %v345 = vld [vmem:[%s212 + $0x180] sm:$0xff]
      %v346 = vld [vmem:[%s212 + $0x188] sm:$0xff]
      %v347 = vld [vmem:[%s212 + $0x190] sm:$0xff]
      %v348 = vld [vmem:[%s212 + $0x198] sm:$0xff]
      %v349 = vld [vmem:[%s212 + $0x1a0] sm:$0xff]
      %v350 = vld [vmem:[%s212 + $0x1a8] sm:$0xff]
      %v351 = vld [vmem:[%s212 + $0x1b0] sm:$0xff]
      %v352 = vld [vmem:[%s212 + $0x1b8] sm:$0xff]
      %v353 = vld [vmem:[%s212 + $0x1c0] sm:$0xff]
      %v354 = vld [vmem:[%s212 + $0x1c8] sm:$0xff]
      %v355 = vld [vmem:[%s212 + $0x1d0] sm:$0xff]
      %v356 = vld [vmem:[%s212 + $0x1d8] sm:$0xff]
      %v357 = vld [vmem:[%s212 + $0x1e0] sm:$0xff]
      %v358 = vld [vmem:[%s212 + $0x1e8] sm:$0xff]
      %v359 = vld [vmem:[%s212 + $0x1f0] sm:$0xff]
      %v360 = vld [vmem:[%s212 + $0x1f8] sm:$0xff]
      %v361 = vld [vmem:[%s219] sm:$0xf]
      %v362 = vld [vmem:[%s219 + $0x4] sm:$0xf]
      %v363 = vld [vmem:[%s219 + $0x8] sm:$0xf]
      %v364 = vld [vmem:[%s219 + $0xc] sm:$0xf]
      %v365 = vld [vmem:[%s219 + $0x10] sm:$0xf]
      %v366 = vld [vmem:[%s219 + $0x14] sm:$0xf]
      %v367 = vld [vmem:[%s219 + $0x18] sm:$0xf]
      %v368 = vld [vmem:[%s219 + $0x1c] sm:$0xf]
      %v369 = vld [vmem:[%s219 + $0x20] sm:$0xf]
      %v370 = vld [vmem:[%s219 + $0x24] sm:$0xf]
      %v371 = vld [vmem:[%s219 + $0x28] sm:$0xf]
      %v372 = vld [vmem:[%s219 + $0x2c] sm:$0xf]
      %v373 = vld [vmem:[%s219 + $0x30] sm:$0xf]
      %v374 = vld [vmem:[%s219 + $0x34] sm:$0xf]
      %v375 = vld [vmem:[%s219 + $0x38] sm:$0xf]
      %v376 = vld [vmem:[%s219 + $0x3c] sm:$0xf]
      %v377 = vld [vmem:[%s219 + $0x40] sm:$0xf]
      %v378 = vld [vmem:[%s219 + $0x44] sm:$0xf]
      %v379 = vld [vmem:[%s219 + $0x48] sm:$0xf]
      %v380 = vld [vmem:[%s219 + $0x4c] sm:$0xf]
      %v381 = vld [vmem:[%s219 + $0x50] sm:$0xf]
      %v382 = vld [vmem:[%s219 + $0x54] sm:$0xf]
      %v383 = vld [vmem:[%s219 + $0x58] sm:$0xf]
      %v384 = vld [vmem:[%s219 + $0x5c] sm:$0xf]
      %v385 = vld [vmem:[%s219 + $0x60] sm:$0xf]
      %v386 = vld [vmem:[%s219 + $0x64] sm:$0xf]
      %v387 = vld [vmem:[%s219 + $0x68] sm:$0xf]
      %v388 = vld [vmem:[%s219 + $0x6c] sm:$0xf]
      %v389 = vld [vmem:[%s219 + $0x70] sm:$0xf]
      %v390 = vld [vmem:[%s219 + $0x74] sm:$0xf]
      %v391 = vld [vmem:[%s219 + $0x78] sm:$0xf]
      %v392 = vld [vmem:[%s219 + $0x7c] sm:$0xf]
      %v393 = vld [vmem:[%s219 + $0x80] sm:$0xf]
      %v394 = vld [vmem:[%s219 + $0x84] sm:$0xf]
      %v395 = vld [vmem:[%s219 + $0x88] sm:$0xf]
      %v396 = vld [vmem:[%s219 + $0x8c] sm:$0xf]
      %v397 = vld [vmem:[%s219 + $0x90] sm:$0xf]
      %v398 = vld [vmem:[%s219 + $0x94] sm:$0xf]
      %v399 = vld [vmem:[%s219 + $0x98] sm:$0xf]
      %v400 = vld [vmem:[%s219 + $0x9c] sm:$0xf]
      %v401 = vld [vmem:[%s219 + $0xa0] sm:$0xf]
      %v402 = vld [vmem:[%s219 + $0xa4] sm:$0xf]
      %v403 = vld [vmem:[%s219 + $0xa8] sm:$0xf]
      %v404 = vld [vmem:[%s219 + $0xac] sm:$0xf]
      %v405 = vld [vmem:[%s219 + $0xb0] sm:$0xf]
      %v406 = vld [vmem:[%s219 + $0xb4] sm:$0xf]
      %v407 = vld [vmem:[%s219 + $0xb8] sm:$0xf]
      %v408 = vld [vmem:[%s219 + $0xbc] sm:$0xf]
      %v409 = vld [vmem:[%s219 + $0xc0] sm:$0xf]
      %v410 = vld [vmem:[%s219 + $0xc4] sm:$0xf]
      %v411 = vld [vmem:[%s219 + $0xc8] sm:$0xf]
      %v412 = vld [vmem:[%s219 + $0xcc] sm:$0xf]
      %v413 = vld [vmem:[%s219 + $0xd0] sm:$0xf]
      %v414 = vld [vmem:[%s219 + $0xd4] sm:$0xf]
      %v415 = vld [vmem:[%s219 + $0xd8] sm:$0xf]
      %v416 = vld [vmem:[%s219 + $0xdc] sm:$0xf]
      %v417 = vld [vmem:[%s219 + $0xe0] sm:$0xf]
      %v418 = vld [vmem:[%s219 + $0xe4] sm:$0xf]
      %v419 = vld [vmem:[%s219 + $0xe8] sm:$0xf]
      %v420 = vld [vmem:[%s219 + $0xec] sm:$0xf]
      %v421 = vld [vmem:[%s219 + $0xf0] sm:$0xf]
      %v422 = vld [vmem:[%s219 + $0xf4] sm:$0xf]
      %v423 = vld [vmem:[%s219 + $0xf8] sm:$0xf]
      %v424 = vld [vmem:[%s219 + $0xfc] sm:$0xf]
      %v489 = vunpack.c.l.b16 %v297
      %v490 = vunpack.c.h.b16 %v297
      %v491 = vunpack.c.l.b16 %v298
      %v492 = vunpack.c.h.b16 %v298
      %v493 = vunpack.c.l.b16 %v299
      %v494 = vunpack.c.h.b16 %v299
      %v495 = vunpack.c.l.b16 %v300
      %v496 = vunpack.c.h.b16 %v300
      %v497 = vunpack.c.l.b16 %v301
      %v498 = vunpack.c.h.b16 %v301
      %v499 = vunpack.c.l.b16 %v302
      %v500 = vunpack.c.h.b16 %v302
      %v501 = vunpack.c.l.b16 %v303
      %v502 = vunpack.c.h.b16 %v303
      %v503 = vunpack.c.l.b16 %v304
      %v504 = vunpack.c.h.b16 %v304
      %v505 = vunpack.c.l.b16 %v305
      %v506 = vunpack.c.h.b16 %v305
      %v507 = vunpack.c.l.b16 %v306
      %v508 = vunpack.c.h.b16 %v306
      %v509 = vunpack.c.l.b16 %v307
      %v510 = vunpack.c.h.b16 %v307
      %v511 = vunpack.c.l.b16 %v308
      %v512 = vunpack.c.h.b16 %v308
      %v513 = vunpack.c.l.b16 %v309
      %v514 = vunpack.c.h.b16 %v309
      %v515 = vunpack.c.l.b16 %v310
      %v516 = vunpack.c.h.b16 %v310
      %v517 = vunpack.c.l.b16 %v311
      %v518 = vunpack.c.h.b16 %v311
      %v519 = vunpack.c.l.b16 %v312
      %v520 = vunpack.c.h.b16 %v312
      %v521 = vunpack.c.l.b16 %v313
      %v522 = vunpack.c.h.b16 %v313
      %v523 = vunpack.c.l.b16 %v314
      %v524 = vunpack.c.h.b16 %v314
      %v525 = vunpack.c.l.b16 %v315
      %v526 = vunpack.c.h.b16 %v315
      %v527 = vunpack.c.l.b16 %v316
      %v528 = vunpack.c.h.b16 %v316
      %v529 = vunpack.c.l.b16 %v317
      %v530 = vunpack.c.h.b16 %v317
      %v531 = vunpack.c.l.b16 %v318
      %v532 = vunpack.c.h.b16 %v318
      %v533 = vunpack.c.l.b16 %v319
      %v534 = vunpack.c.h.b16 %v319
      %v535 = vunpack.c.l.b16 %v320
      %v536 = vunpack.c.h.b16 %v320
      %v537 = vunpack.c.l.b16 %v321
      %v538 = vunpack.c.h.b16 %v321
      %v539 = vunpack.c.l.b16 %v322
      %v540 = vunpack.c.h.b16 %v322
      %v541 = vunpack.c.l.b16 %v323
      %v542 = vunpack.c.h.b16 %v323
      %v543 = vunpack.c.l.b16 %v324
      %v544 = vunpack.c.h.b16 %v324
      %v545 = vunpack.c.l.b16 %v325
      %v546 = vunpack.c.h.b16 %v325
      %v547 = vunpack.c.l.b16 %v326
      %v548 = vunpack.c.h.b16 %v326
      %v549 = vunpack.c.l.b16 %v327
      %v550 = vunpack.c.h.b16 %v327
      %v551 = vunpack.c.l.b16 %v328
      %v552 = vunpack.c.h.b16 %v328
      %v553 = vunpack.c.l.b16 %v329
      %v554 = vunpack.c.h.b16 %v329
      %v555 = vunpack.c.l.b16 %v330
      %v556 = vunpack.c.h.b16 %v330
      %v557 = vunpack.c.l.b16 %v331
      %v558 = vunpack.c.h.b16 %v331
      %v559 = vunpack.c.l.b16 %v332
      %v560 = vunpack.c.h.b16 %v332
      %v561 = vunpack.c.l.b16 %v333
      %v562 = vunpack.c.h.b16 %v333
      %v563 = vunpack.c.l.b16 %v334
      %v564 = vunpack.c.h.b16 %v334
      %v565 = vunpack.c.l.b16 %v335
      %v566 = vunpack.c.h.b16 %v335
      %v567 = vunpack.c.l.b16 %v336
      %v568 = vunpack.c.h.b16 %v336
      %v569 = vunpack.c.l.b16 %v337
      %v570 = vunpack.c.h.b16 %v337
      %v571 = vunpack.c.l.b16 %v338
      %v572 = vunpack.c.h.b16 %v338
      %v573 = vunpack.c.l.b16 %v339
      %v574 = vunpack.c.h.b16 %v339
      %v575 = vunpack.c.l.b16 %v340
      %v576 = vunpack.c.h.b16 %v340
      %v577 = vunpack.c.l.b16 %v341
      %v578 = vunpack.c.h.b16 %v341
      %v579 = vunpack.c.l.b16 %v342
      %v580 = vunpack.c.h.b16 %v342
      %v581 = vunpack.c.l.b16 %v343
      %v582 = vunpack.c.h.b16 %v343
      %v583 = vunpack.c.l.b16 %v344
      %v584 = vunpack.c.h.b16 %v344
      %v585 = vunpack.c.l.b16 %v345
      %v586 = vunpack.c.h.b16 %v345
      %v587 = vunpack.c.l.b16 %v346
      %v588 = vunpack.c.h.b16 %v346
      %v589 = vunpack.c.l.b16 %v347
      %v590 = vunpack.c.h.b16 %v347
      %v591 = vunpack.c.l.b16 %v348
      %v592 = vunpack.c.h.b16 %v348
      %v593 = vunpack.c.l.b16 %v349
      %v594 = vunpack.c.h.b16 %v349
      %v595 = vunpack.c.l.b16 %v350
      %v596 = vunpack.c.h.b16 %v350
      %v597 = vunpack.c.l.b16 %v351
      %v598 = vunpack.c.h.b16 %v351
      %v599 = vunpack.c.l.b16 %v352
      %v600 = vunpack.c.h.b16 %v352
      %v601 = vunpack.c.l.b16 %v353
      %v602 = vunpack.c.h.b16 %v353
      %v603 = vunpack.c.l.b16 %v354
      %v604 = vunpack.c.h.b16 %v354
      %v605 = vunpack.c.l.b16 %v355
      %v606 = vunpack.c.h.b16 %v355
      %v607 = vunpack.c.l.b16 %v356
      %v608 = vunpack.c.h.b16 %v356
      %v609 = vunpack.c.l.b16 %v357
      %v610 = vunpack.c.h.b16 %v357
      %v611 = vunpack.c.l.b16 %v358
      %v612 = vunpack.c.h.b16 %v358
      %v613 = vunpack.c.l.b16 %v359
      %v614 = vunpack.c.h.b16 %v359
      %v615 = vunpack.c.l.b16 %v360
      %v616 = vunpack.c.h.b16 %v360
      %v617 = vpack.c.b16 %v493, %v489
      %v618 = vpack.c.b16 %v494, %v490
      %v619 = vpack.c.b16 %v495, %v491
      %v620 = vpack.c.b16 %v496, %v492
      %v621 = vpack.c.b16 %v501, %v497
      %v622 = vpack.c.b16 %v502, %v498
      %v623 = vpack.c.b16 %v503, %v499
      %v624 = vpack.c.b16 %v504, %v500
      %v625 = vpack.c.b16 %v509, %v505
      %v626 = vpack.c.b16 %v510, %v506
      %v627 = vpack.c.b16 %v511, %v507
      %v628 = vpack.c.b16 %v512, %v508
      %v629 = vpack.c.b16 %v517, %v513
      %v630 = vpack.c.b16 %v518, %v514
      %v631 = vpack.c.b16 %v519, %v515
      %v632 = vpack.c.b16 %v520, %v516
      %v633 = vpack.c.b16 %v525, %v521
      %v634 = vpack.c.b16 %v526, %v522
      %v635 = vpack.c.b16 %v527, %v523
      %v636 = vpack.c.b16 %v528, %v524
      %v637 = vpack.c.b16 %v533, %v529
      %v638 = vpack.c.b16 %v534, %v530
      %v639 = vpack.c.b16 %v535, %v531
      %v640 = vpack.c.b16 %v536, %v532
      %v641 = vpack.c.b16 %v541, %v537
      %v642 = vpack.c.b16 %v542, %v538
      %v643 = vpack.c.b16 %v543, %v539
      %v644 = vpack.c.b16 %v544, %v540
      %v645 = vpack.c.b16 %v549, %v545
      %v646 = vpack.c.b16 %v550, %v546
      %v647 = vpack.c.b16 %v551, %v547
      %v648 = vpack.c.b16 %v552, %v548
      %v649 = vpack.c.b16 %v557, %v553
      %v650 = vpack.c.b16 %v558, %v554
      %v651 = vpack.c.b16 %v559, %v555
      %v652 = vpack.c.b16 %v560, %v556
      %v653 = vpack.c.b16 %v565, %v561
      %v654 = vpack.c.b16 %v566, %v562
      %v655 = vpack.c.b16 %v567, %v563
      %v656 = vpack.c.b16 %v568, %v564
      %v657 = vpack.c.b16 %v573, %v569
      %v658 = vpack.c.b16 %v574, %v570
      %v659 = vpack.c.b16 %v575, %v571
      %v660 = vpack.c.b16 %v576, %v572
      %v661 = vpack.c.b16 %v581, %v577
      %v662 = vpack.c.b16 %v582, %v578
      %v663 = vpack.c.b16 %v583, %v579
      %v664 = vpack.c.b16 %v584, %v580
      %v665 = vpack.c.b16 %v589, %v585
      %v666 = vpack.c.b16 %v590, %v586
      %v667 = vpack.c.b16 %v591, %v587
      %v668 = vpack.c.b16 %v592, %v588
      %v669 = vpack.c.b16 %v597, %v593
      %v670 = vpack.c.b16 %v598, %v594
      %v671 = vpack.c.b16 %v599, %v595
      %v672 = vpack.c.b16 %v600, %v596
      %v673 = vpack.c.b16 %v605, %v601
      %v674 = vpack.c.b16 %v606, %v602
      %v675 = vpack.c.b16 %v607, %v603
      %v676 = vpack.c.b16 %v608, %v604
      %v677 = vpack.c.b16 %v613, %v609
      %v678 = vpack.c.b16 %v614, %v610
      %v679 = vpack.c.b16 %v615, %v611
      %v680 = vpack.c.b16 %v616, %v612
      %v809 = vunpack.c.l.b16 %v361
      %v810 = vunpack.c.l.b16 %v362
      %v811 = vunpack.c.l.b16 %v363
      %v812 = vunpack.c.l.b16 %v364
      %v813 = vunpack.c.l.b16 %v365
      %v814 = vunpack.c.l.b16 %v366
      %v815 = vunpack.c.l.b16 %v367
      %v816 = vunpack.c.l.b16 %v368
      %v817 = vunpack.c.l.b16 %v369
      %v818 = vunpack.c.l.b16 %v370
      %v819 = vunpack.c.l.b16 %v371
      %v820 = vunpack.c.l.b16 %v372
      %v821 = vunpack.c.l.b16 %v373
      %v822 = vunpack.c.l.b16 %v374
      %v823 = vunpack.c.l.b16 %v375
      %v824 = vunpack.c.l.b16 %v376
      %v825 = vunpack.c.l.b16 %v377
      %v826 = vunpack.c.l.b16 %v378
      %v827 = vunpack.c.l.b16 %v379
      %v828 = vunpack.c.l.b16 %v380
      %v829 = vunpack.c.l.b16 %v381
      %v830 = vunpack.c.l.b16 %v382
      %v831 = vunpack.c.l.b16 %v383
      %v832 = vunpack.c.l.b16 %v384
      %v833 = vunpack.c.l.b16 %v385
      %v834 = vunpack.c.l.b16 %v386
      %v835 = vunpack.c.l.b16 %v387
      %v836 = vunpack.c.l.b16 %v388
      %v837 = vunpack.c.l.b16 %v389
      %v838 = vunpack.c.l.b16 %v390
      %v839 = vunpack.c.l.b16 %v391
      %v840 = vunpack.c.l.b16 %v392
      %v841 = vunpack.c.l.b16 %v393
      %v842 = vunpack.c.l.b16 %v394
      %v843 = vunpack.c.l.b16 %v395
      %v844 = vunpack.c.l.b16 %v396
      %v845 = vunpack.c.l.b16 %v397
      %v846 = vunpack.c.l.b16 %v398
      %v847 = vunpack.c.l.b16 %v399
      %v848 = vunpack.c.l.b16 %v400
      %v849 = vunpack.c.l.b16 %v401
      %v850 = vunpack.c.l.b16 %v402
      %v851 = vunpack.c.l.b16 %v403
      %v852 = vunpack.c.l.b16 %v404
      %v853 = vunpack.c.l.b16 %v405
      %v854 = vunpack.c.l.b16 %v406
      %v855 = vunpack.c.l.b16 %v407
      %v856 = vunpack.c.l.b16 %v408
      %v857 = vunpack.c.l.b16 %v409
      %v858 = vunpack.c.l.b16 %v410
      %v859 = vunpack.c.l.b16 %v411
      %v860 = vunpack.c.l.b16 %v412
      %v861 = vunpack.c.l.b16 %v413
      %v862 = vunpack.c.l.b16 %v414
      %v863 = vunpack.c.l.b16 %v415
      %v864 = vunpack.c.l.b16 %v416
      %v865 = vunpack.c.l.b16 %v417
      %v866 = vunpack.c.l.b16 %v418
      %v867 = vunpack.c.l.b16 %v419
      %v868 = vunpack.c.l.b16 %v420
      %v869 = vunpack.c.l.b16 %v421
      %v870 = vunpack.c.l.b16 %v422
      %v871 = vunpack.c.l.b16 %v423
      %v872 = vunpack.c.l.b16 %v424
      %v873 = vpack.c.b16 %v810, %v809
      %v874 = vpack.c.b16 %v812, %v811
      %v875 = vpack.c.b16 %v814, %v813
      %v876 = vpack.c.b16 %v816, %v815
      %v877 = vpack.c.b16 %v818, %v817
      %v878 = vpack.c.b16 %v820, %v819
      %v879 = vpack.c.b16 %v822, %v821
      %v880 = vpack.c.b16 %v824, %v823
      %v881 = vpack.c.b16 %v826, %v825
      %v882 = vpack.c.b16 %v828, %v827
      %v883 = vpack.c.b16 %v830, %v829
      %v884 = vpack.c.b16 %v832, %v831
      %v885 = vpack.c.b16 %v834, %v833
      %v886 = vpack.c.b16 %v836, %v835
      %v887 = vpack.c.b16 %v838, %v837
      %v888 = vpack.c.b16 %v840, %v839
      %v889 = vpack.c.b16 %v842, %v841
      %v890 = vpack.c.b16 %v844, %v843
      %v891 = vpack.c.b16 %v846, %v845
      %v892 = vpack.c.b16 %v848, %v847
      %v893 = vpack.c.b16 %v850, %v849
      %v894 = vpack.c.b16 %v852, %v851
      %v895 = vpack.c.b16 %v854, %v853
      %v896 = vpack.c.b16 %v856, %v855
      %v897 = vpack.c.b16 %v858, %v857
      %v898 = vpack.c.b16 %v860, %v859
      %v899 = vpack.c.b16 %v862, %v861
      %v900 = vpack.c.b16 %v864, %v863
      %v901 = vpack.c.b16 %v866, %v865
      %v902 = vpack.c.b16 %v868, %v867
      %v903 = vpack.c.b16 %v870, %v869
      %v904 = vpack.c.b16 %v872, %v871
      %937 = vmatprep.subr.bf16.mxu0 0
      %938 = vmatpush1.bf16.msra.mxu0 %v873
      %939 = vmatprep.subr.bf16.mxu0 0
      %940 = vmatpush1.bf16.msra.mxu0 %v874
      %941 = vmatprep.subr.bf16.mxu0 0
      %942 = vmatpush1.bf16.msra.mxu0 %v875
      %943 = vmatprep.subr.bf16.mxu0 0
      %944 = vmatpush1.bf16.msra.mxu0 %v876
      %945 = vmatprep.subr.bf16.mxu0 0
      %946 = vmatpush1.bf16.msra.mxu0 %v877
      %947 = vmatprep.subr.bf16.mxu0 0
      %948 = vmatpush1.bf16.msra.mxu0 %v878
      %949 = vmatprep.subr.bf16.mxu0 0
      %950 = vmatpush1.bf16.msra.mxu0 %v879
      %951 = vmatprep.subr.bf16.mxu0 0
      %952 = vmatpush1.bf16.msra.mxu0 %v880
      %953 = vmatprep.subr.bf16.mxu0 0
      %954 = vmatpush1.bf16.msra.mxu0 %v881
      %955 = vmatprep.subr.bf16.mxu0 0
      %956 = vmatpush1.bf16.msra.mxu0 %v882
      %957 = vmatprep.subr.bf16.mxu0 0
      %958 = vmatpush1.bf16.msra.mxu0 %v883
      %959 = vmatprep.subr.bf16.mxu0 0
      %960 = vmatpush1.bf16.msra.mxu0 %v884
      %961 = vmatprep.subr.bf16.mxu0 0
      %962 = vmatpush1.bf16.msra.mxu0 %v885
      %963 = vmatprep.subr.bf16.mxu0 0
      %964 = vmatpush1.bf16.msra.mxu0 %v886
      %965 = vmatprep.subr.bf16.mxu0 0
      %966 = vmatpush1.bf16.msra.mxu0 %v887
      %967 = vmatprep.subr.bf16.mxu0 0
      %968 = vmatpush1.bf16.msra.mxu0 %v888
      %969 = vmatprep.mubr.bf16.mxu0 %v618
      %970 = vmatmul.mubr.bf16.gmra.mrb[0].mxu0 %v617
      %v971 = vpop.f32.mrb[0].mxu0
      %v972 = vadd.f32 0.0, %v971
      %v973 = vpop.f32.mrb[0].mxu0
      %v974 = vpop.f32.mrb[0].mxu0
      %v975 = vadd.f32 0.0, %v974
      %v976 = vpop.f32.mrb[0].mxu0
      %977 = vmatprep.mubr.bf16.mxu0 %v622
      %978 = vmatmul.mubr.bf16.gmra.mrb[0].mxu0 %v621
      %v979 = vpop.f32.mrb[0].mxu0
      %v980 = vadd.f32 0.0, %v979
      %v981 = vpop.f32.mrb[0].mxu0
      %v982 = vpop.f32.mrb[0].mxu0
      %v983 = vadd.f32 0.0, %v982
      %v984 = vpop.f32.mrb[0].mxu0
      %985 = vmatprep.mubr.bf16.mxu0 %v626
      %986 = vmatmul.mubr.bf16.gmra.mrb[0].mxu0 %v625
      %v987 = vpop.f32.mrb[0].mxu0
      %v988 = vadd.f32 0.0, %v987
      %v989 = vpop.f32.mrb[0].mxu0
      %v990 = vpop.f32.mrb[0].mxu0
      %v991 = vadd.f32 0.0, %v990
      %v992 = vpop.f32.mrb[0].mxu0
      %993 = vmatprep.mubr.bf16.mxu0 %v630
      %994 = vmatmul.mubr.bf16.gmra.mrb[0].mxu0 %v629
      %v995 = vpop.f32.mrb[0].mxu0
      %v996 = vadd.f32 0.0, %v995
      %v997 = vpop.f32.mrb[0].mxu0
      %v998 = vpop.f32.mrb[0].mxu0
      %v999 = vadd.f32 0.0, %v998
      %v1000 = vpop.f32.mrb[0].mxu0
      %1001 = vmatprep.mubr.bf16.mxu0 %v634
      %1002 = vmatmul.mubr.bf16.gmra.mrb[0].mxu0 %v633
      %v1003 = vpop.f32.mrb[0].mxu0
      %v1004 = vadd.f32 0.0, %v1003
      %v1005 = vpop.f32.mrb[0].mxu0
      %v1006 = vpop.f32.mrb[0].mxu0
      %v1007 = vadd.f32 0.0, %v1006
      %v1008 = vpop.f32.mrb[0].mxu0
      %1009 = vmatprep.mubr.bf16.mxu0 %v638
      %1010 = vmatmul.mubr.bf16.gmra.mrb[0].mxu0 %v637
      %v1011 = vpop.f32.mrb[0].mxu0
      %v1012 = vadd.f32 0.0, %v1011
      %v1013 = vpop.f32.mrb[0].mxu0
      %v1014 = vpop.f32.mrb[0].mxu0
      %v1015 = vadd.f32 0.0, %v1014
      %v1016 = vpop.f32.mrb[0].mxu0
      %1017 = vmatprep.mubr.bf16.mxu0 %v642
      %1018 = vmatmul.mubr.bf16.gmra.mrb[0].mxu0 %v641
      %v1019 = vpop.f32.mrb[0].mxu0
      %v1020 = vadd.f32 0.0, %v1019
      %v1021 = vpop.f32.mrb[0].mxu0
      %v1022 = vpop.f32.mrb[0].mxu0
      %v1023 = vadd.f32 0.0, %v1022
      %v1024 = vpop.f32.mrb[0].mxu0
      %1025 = vmatprep.mubr.bf16.mxu0 %v646
      %1026 = vmatmul.mubr.bf16.gmra.mrb[0].mxu0 %v645
      %v1027 = vpop.f32.mrb[0].mxu0
      %v1028 = vadd.f32 0.0, %v1027
      %v1029 = vpop.f32.mrb[0].mxu0
      %v1030 = vpop.f32.mrb[0].mxu0
      %v1031 = vadd.f32 0.0, %v1030
      %v1032 = vpop.f32.mrb[0].mxu0
      %1033 = vmatprep.mubr.bf16.mxu0 %v650
      %1034 = vmatmul.mubr.bf16.gmra.mrb[0].mxu0 %v649
      %v1035 = vpop.f32.mrb[0].mxu0
      %v1036 = vadd.f32 0.0, %v1035
      %v1037 = vpop.f32.mrb[0].mxu0
      %v1038 = vpop.f32.mrb[0].mxu0
      %v1039 = vadd.f32 0.0, %v1038
      %v1040 = vpop.f32.mrb[0].mxu0
      %1041 = vmatprep.mubr.bf16.mxu0 %v654
      %1042 = vmatmul.mubr.bf16.gmra.mrb[0].mxu0 %v653
      %v1043 = vpop.f32.mrb[0].mxu0
      %v1044 = vadd.f32 0.0, %v1043
      %v1045 = vpop.f32.mrb[0].mxu0
      %v1046 = vpop.f32.mrb[0].mxu0
      %v1047 = vadd.f32 0.0, %v1046
      %v1048 = vpop.f32.mrb[0].mxu0
      %1049 = vmatprep.mubr.bf16.mxu0 %v658
      %1050 = vmatmul.mubr.bf16.gmra.mrb[0].mxu0 %v657
      %v1051 = vpop.f32.mrb[0].mxu0
      %v1052 = vadd.f32 0.0, %v1051
      %v1053 = vpop.f32.mrb[0].mxu0
      %v1054 = vpop.f32.mrb[0].mxu0
      %v1055 = vadd.f32 0.0, %v1054
      %v1056 = vpop.f32.mrb[0].mxu0
      %1057 = vmatprep.mubr.bf16.mxu0 %v662
      %1058 = vmatmul.mubr.bf16.gmra.mrb[0].mxu0 %v661
      %v1059 = vpop.f32.mrb[0].mxu0
      %v1060 = vadd.f32 0.0, %v1059
      %v1061 = vpop.f32.mrb[0].mxu0
      %v1062 = vpop.f32.mrb[0].mxu0
      %v1063 = vadd.f32 0.0, %v1062
      %v1064 = vpop.f32.mrb[0].mxu0
      %1065 = vmatprep.mubr.bf16.mxu0 %v666
      %1066 = vmatmul.mubr.bf16.gmra.mrb[0].mxu0 %v665
      %v1067 = vpop.f32.mrb[0].mxu0
      %v1068 = vadd.f32 0.0, %v1067
      %v1069 = vpop.f32.mrb[0].mxu0
      %v1070 = vpop.f32.mrb[0].mxu0
      %v1071 = vadd.f32 0.0, %v1070
      %v1072 = vpop.f32.mrb[0].mxu0
      %1073 = vmatprep.mubr.bf16.mxu0 %v670
      %1074 = vmatmul.mubr.bf16.gmra.mrb[0].mxu0 %v669
      %v1075 = vpop.f32.mrb[0].mxu0
      %v1076 = vadd.f32 0.0, %v1075
      %v1077 = vpop.f32.mrb[0].mxu0
      %v1078 = vpop.f32.mrb[0].mxu0
      %v1079 = vadd.f32 0.0, %v1078
      %v1080 = vpop.f32.mrb[0].mxu0
      %1081 = vmatprep.mubr.bf16.mxu0 %v674
      %1082 = vmatmul.mubr.bf16.gmra.mrb[0].mxu0 %v673
      %v1083 = vpop.f32.mrb[0].mxu0
      %v1084 = vadd.f32 0.0, %v1083
      %v1085 = vpop.f32.mrb[0].mxu0
      %v1086 = vpop.f32.mrb[0].mxu0
      %v1087 = vadd.f32 0.0, %v1086
      %v1088 = vpop.f32.mrb[0].mxu0
      %1089 = vmatprep.mubr.bf16.mxu0 %v678
      %1090 = vmatmul.mubr.bf16.gmra.mrb[0].mxu0 %v677
      %v1091 = vpop.f32.mrb[0].mxu0
      %v1092 = vadd.f32 0.0, %v1091
      %v1093 = vpop.f32.mrb[0].mxu0
      %v1094 = vpop.f32.mrb[0].mxu0
      %v1095 = vadd.f32 0.0, %v1094
      %v1096 = vpop.f32.mrb[0].mxu0
      %1097 = vdwg.mxu0
      %1098 = vmatprep.subr.bf16.mxu0 0
      %1099 = vmatpush1.bf16.msra.mxu0 %v889
      %1100 = vmatprep.subr.bf16.mxu0 0
      %1101 = vmatpush1.bf16.msra.mxu0 %v890
      %1102 = vmatprep.subr.bf16.mxu0 0
      %1103 = vmatpush1.bf16.msra.mxu0 %v891
      %1104 = vmatprep.subr.bf16.mxu0 0
      %1105 = vmatpush1.bf16.msra.mxu0 %v892
      %1106 = vmatprep.subr.bf16.mxu0 0
      %1107 = vmatpush1.bf16.msra.mxu0 %v893
      %1108 = vmatprep.subr.bf16.mxu0 0
      %1109 = vmatpush1.bf16.msra.mxu0 %v894
      %1110 = vmatprep.subr.bf16.mxu0 0
      %1111 = vmatpush1.bf16.msra.mxu0 %v895
      %1112 = vmatprep.subr.bf16.mxu0 0
      %1113 = vmatpush1.bf16.msra.mxu0 %v896
      %1114 = vmatprep.subr.bf16.mxu0 0
      %1115 = vmatpush1.bf16.msra.mxu0 %v897
      %1116 = vmatprep.subr.bf16.mxu0 0
      %1117 = vmatpush1.bf16.msra.mxu0 %v898
      %1118 = vmatprep.subr.bf16.mxu0 0
      %1119 = vmatpush1.bf16.msra.mxu0 %v899
      %1120 = vmatprep.subr.bf16.mxu0 0
      %1121 = vmatpush1.bf16.msra.mxu0 %v900
      %1122 = vmatprep.subr.bf16.mxu0 0
      %1123 = vmatpush1.bf16.msra.mxu0 %v901
      %1124 = vmatprep.subr.bf16.mxu0 0
      %1125 = vmatpush1.bf16.msra.mxu0 %v902
      %1126 = vmatprep.subr.bf16.mxu0 0
      %1127 = vmatpush1.bf16.msra.mxu0 %v903
      %1128 = vmatprep.subr.bf16.mxu0 0
      %1129 = vmatpush1.bf16.msra.mxu0 %v904
      %1130 = vmatprep.mubr.bf16.mxu0 %v620
      %1131 = vmatmul.mubr.bf16.gmra.mrb[0].mxu0 %v619
      %v1132 = vpop.f32.mrb[0].mxu0
      %v1133 = vadd.f32 %v972, %v1132
      %v1134 = vpop.f32.mrb[0].mxu0
      %v1135 = vpop.f32.mrb[0].mxu0
      %v1136 = vadd.f32 %v975, %v1135
      %v1137 = vpop.f32.mrb[0].mxu0
      %1138 = vmatprep.mubr.bf16.mxu0 %v624
      %1139 = vmatmul.mubr.bf16.gmra.mrb[0].mxu0 %v623
      %v1140 = vpop.f32.mrb[0].mxu0
      %v1141 = vadd.f32 %v980, %v1140
      %v1142 = vpop.f32.mrb[0].mxu0
      %v1143 = vpop.f32.mrb[0].mxu0
      %v1144 = vadd.f32 %v983, %v1143
      %v1145 = vpop.f32.mrb[0].mxu0
      %1146 = vmatprep.mubr.bf16.mxu0 %v628
      %1147 = vmatmul.mubr.bf16.gmra.mrb[0].mxu0 %v627
      %v1148 = vpop.f32.mrb[0].mxu0
      %v1149 = vadd.f32 %v988, %v1148
      %v1150 = vpop.f32.mrb[0].mxu0
      %v1151 = vpop.f32.mrb[0].mxu0
      %v1152 = vadd.f32 %v991, %v1151
      %v1153 = vpop.f32.mrb[0].mxu0
      %1154 = vmatprep.mubr.bf16.mxu0 %v632
      %1155 = vmatmul.mubr.bf16.gmra.mrb[0].mxu0 %v631
      %v1156 = vpop.f32.mrb[0].mxu0
      %v1157 = vadd.f32 %v996, %v1156
      %v1158 = vpop.f32.mrb[0].mxu0
      %v1159 = vpop.f32.mrb[0].mxu0
      %v1160 = vadd.f32 %v999, %v1159
      %v1161 = vpop.f32.mrb[0].mxu0
      %1162 = vmatprep.mubr.bf16.mxu0 %v636
      %1163 = vmatmul.mubr.bf16.gmra.mrb[0].mxu0 %v635
      %v1164 = vpop.f32.mrb[0].mxu0
      %v1165 = vadd.f32 %v1004, %v1164
      %v1166 = vpop.f32.mrb[0].mxu0
      %v1167 = vpop.f32.mrb[0].mxu0
      %v1168 = vadd.f32 %v1007, %v1167
      %v1169 = vpop.f32.mrb[0].mxu0
      %1170 = vmatprep.mubr.bf16.mxu0 %v640
      %1171 = vmatmul.mubr.bf16.gmra.mrb[0].mxu0 %v639
      %v1172 = vpop.f32.mrb[0].mxu0
      %v1173 = vadd.f32 %v1012, %v1172
      %v1174 = vpop.f32.mrb[0].mxu0
      %v1175 = vpop.f32.mrb[0].mxu0
      %v1176 = vadd.f32 %v1015, %v1175
      %v1177 = vpop.f32.mrb[0].mxu0
      %1178 = vmatprep.mubr.bf16.mxu0 %v644
      %1179 = vmatmul.mubr.bf16.gmra.mrb[0].mxu0 %v643
      %v1180 = vpop.f32.mrb[0].mxu0
      %v1181 = vadd.f32 %v1020, %v1180
      %v1182 = vpop.f32.mrb[0].mxu0
      %v1183 = vpop.f32.mrb[0].mxu0
      %v1184 = vadd.f32 %v1023, %v1183
      %v1185 = vpop.f32.mrb[0].mxu0
      %1186 = vmatprep.mubr.bf16.mxu0 %v648
      %1187 = vmatmul.mubr.bf16.gmra.mrb[0].mxu0 %v647
      %v1188 = vpop.f32.mrb[0].mxu0
      %v1189 = vadd.f32 %v1028, %v1188
      %v1190 = vpop.f32.mrb[0].mxu0
      %v1191 = vpop.f32.mrb[0].mxu0
      %v1192 = vadd.f32 %v1031, %v1191
      %v1193 = vpop.f32.mrb[0].mxu0
      %1194 = vmatprep.mubr.bf16.mxu0 %v652
      %1195 = vmatmul.mubr.bf16.gmra.mrb[0].mxu0 %v651
      %v1196 = vpop.f32.mrb[0].mxu0
      %v1197 = vadd.f32 %v1036, %v1196
      %v1198 = vpop.f32.mrb[0].mxu0
      %v1199 = vpop.f32.mrb[0].mxu0
      %v1200 = vadd.f32 %v1039, %v1199
      %v1201 = vpop.f32.mrb[0].mxu0
      %1202 = vmatprep.mubr.bf16.mxu0 %v656
      %1203 = vmatmul.mubr.bf16.gmra.mrb[0].mxu0 %v655
      %v1204 = vpop.f32.mrb[0].mxu0
      %v1205 = vadd.f32 %v1044, %v1204
      %v1206 = vpop.f32.mrb[0].mxu0
      %v1207 = vpop.f32.mrb[0].mxu0
      %v1208 = vadd.f32 %v1047, %v1207
      %v1209 = vpop.f32.mrb[0].mxu0
      %1210 = vmatprep.mubr.bf16.mxu0 %v660
      %1211 = vmatmul.mubr.bf16.gmra.mrb[0].mxu0 %v659
      %v1212 = vpop.f32.mrb[0].mxu0
      %v1213 = vadd.f32 %v1052, %v1212
      %v1214 = vpop.f32.mrb[0].mxu0
      %v1215 = vpop.f32.mrb[0].mxu0
      %v1216 = vadd.f32 %v1055, %v1215
      %v1217 = vpop.f32.mrb[0].mxu0
      %1218 = vmatprep.mubr.bf16.mxu0 %v664
      %1219 = vmatmul.mubr.bf16.gmra.mrb[0].mxu0 %v663
      %v1220 = vpop.f32.mrb[0].mxu0
      %v1221 = vadd.f32 %v1060, %v1220
      %v1222 = vpop.f32.mrb[0].mxu0
      %v1223 = vpop.f32.mrb[0].mxu0
      %v1224 = vadd.f32 %v1063, %v1223
      %v1225 = vpop.f32.mrb[0].mxu0
      %1226 = vmatprep.mubr.bf16.mxu0 %v668
      %1227 = vmatmul.mubr.bf16.gmra.mrb[0].mxu0 %v667
      %v1228 = vpop.f32.mrb[0].mxu0
      %v1229 = vadd.f32 %v1068, %v1228
      %v1230 = vpop.f32.mrb[0].mxu0
      %v1231 = vpop.f32.mrb[0].mxu0
      %v1232 = vadd.f32 %v1071, %v1231
      %v1233 = vpop.f32.mrb[0].mxu0
      %1234 = vmatprep.mubr.bf16.mxu0 %v672
      %1235 = vmatmul.mubr.bf16.gmra.mrb[0].mxu0 %v671
      %v1236 = vpop.f32.mrb[0].mxu0
      %v1237 = vadd.f32 %v1076, %v1236
      %v1238 = vpop.f32.mrb[0].mxu0
      %v1239 = vpop.f32.mrb[0].mxu0
      %v1240 = vadd.f32 %v1079, %v1239
      %v1241 = vpop.f32.mrb[0].mxu0
      %1242 = vmatprep.mubr.bf16.mxu0 %v676
      %1243 = vmatmul.mubr.bf16.gmra.mrb[0].mxu0 %v675
      %v1244 = vpop.f32.mrb[0].mxu0
      %v1245 = vadd.f32 %v1084, %v1244
      %v1246 = vpop.f32.mrb[0].mxu0
      %v1247 = vpop.f32.mrb[0].mxu0
      %v1248 = vadd.f32 %v1087, %v1247
      %v1249 = vpop.f32.mrb[0].mxu0
      %1250 = vmatprep.mubr.bf16.mxu0 %v680
      %1251 = vmatmul.mubr.bf16.gmra.mrb[0].mxu0 %v679
      %v1252 = vpop.f32.mrb[0].mxu0
      %v1253 = vadd.f32 %v1092, %v1252
      %v1254 = vpop.f32.mrb[0].mxu0
      %v1255 = vpop.f32.mrb[0].mxu0
      %v1256 = vadd.f32 %v1095, %v1255
      %v1257 = vpop.f32.mrb[0].mxu0
      %1258 = vdwg.mxu0
      %v1259 = vadd.f32 %v265, %v1133
      %v1260 = vadd.f32 %v266, %v1136
      %v1261 = vadd.f32 %v267, %v1141
      %v1262 = vadd.f32 %v268, %v1144
      %v1263 = vadd.f32 %v269, %v1149
      %v1264 = vadd.f32 %v270, %v1152
      %v1265 = vadd.f32 %v271, %v1157
      %v1266 = vadd.f32 %v272, %v1160
      %v1267 = vadd.f32 %v273, %v1165
      %v1268 = vadd.f32 %v274, %v1168
      %v1269 = vadd.f32 %v275, %v1173
      %v1270 = vadd.f32 %v276, %v1176
      %v1271 = vadd.f32 %v277, %v1181
      %v1272 = vadd.f32 %v278, %v1184
      %v1273 = vadd.f32 %v279, %v1189
      %v1274 = vadd.f32 %v280, %v1192
      %v1275 = vadd.f32 %v281, %v1197
      %v1276 = vadd.f32 %v282, %v1200
      %v1277 = vadd.f32 %v283, %v1205
      %v1278 = vadd.f32 %v284, %v1208
      %v1279 = vadd.f32 %v285, %v1213
      %v1280 = vadd.f32 %v286, %v1216
      %v1281 = vadd.f32 %v287, %v1221
      %v1282 = vadd.f32 %v288, %v1224
      %v1283 = vadd.f32 %v289, %v1229
      %v1284 = vadd.f32 %v290, %v1232
      %v1285 = vadd.f32 %v291, %v1237
      %v1286 = vadd.f32 %v292, %v1240
      %v1287 = vadd.f32 %v293, %v1245
      %v1288 = vadd.f32 %v294, %v1248
      %v1289 = vadd.f32 %v295, %v1253
      %v1290 = vadd.f32 %v296, %v1256
      %vm1291 = vcmask 130048
      %1292 = vst.msk [vmem:[#allocation2] sm:$0xff] %vm1291, %v1259
      %1293 = vst.msk [vmem:[#allocation2 + $0x8] sm:$0xff] %vm1291, %v1260
      %1294 = vst.msk [vmem:[#allocation2 + $0x10] sm:$0xff] %vm1291, %v1261
      %1295 = vst.msk [vmem:[#allocation2 + $0x18] sm:$0xff] %vm1291, %v1262
      %1296 = vst.msk [vmem:[#allocation2 + $0x20] sm:$0xff] %vm1291, %v1263
      %1297 = vst.msk [vmem:[#allocation2 + $0x28] sm:$0xff] %vm1291, %v1264
      %1298 = vst.msk [vmem:[#allocation2 + $0x30] sm:$0xff] %vm1291, %v1265
      %1299 = vst.msk [vmem:[#allocation2 + $0x38] sm:$0xff] %vm1291, %v1266
      %1300 = vst.msk [vmem:[#allocation2 + $0x40] sm:$0xff] %vm1291, %v1267
      %1301 = vst.msk [vmem:[#allocation2 + $0x48] sm:$0xff] %vm1291, %v1268
      %1302 = vst.msk [vmem:[#allocation2 + $0x50] sm:$0xff] %vm1291, %v1269
      %1303 = vst.msk [vmem:[#allocation2 + $0x58] sm:$0xff] %vm1291, %v1270
      %1304 = vst.msk [vmem:[#allocation2 + $0x60] sm:$0xff] %vm1291, %v1271
      %1305 = vst.msk [vmem:[#allocation2 + $0x68] sm:$0xff] %vm1291, %v1272
      %1306 = vst.msk [vmem:[#allocation2 + $0x70] sm:$0xff] %vm1291, %v1273
      %1307 = vst.msk [vmem:[#allocation2 + $0x78] sm:$0xff] %vm1291, %v1274
      %1308 = vst.msk [vmem:[#allocation2 + $0x80] sm:$0xff] %vm1291, %v1275
      %1309 = vst.msk [vmem:[#allocation2 + $0x88] sm:$0xff] %vm1291, %v1276
      %1310 = vst.msk [vmem:[#allocation2 + $0x90] sm:$0xff] %vm1291, %v1277
      %1311 = vst.msk [vmem:[#allocation2 + $0x98] sm:$0xff] %vm1291, %v1278
      %1312 = vst.msk [vmem:[#allocation2 + $0xa0] sm:$0xff] %vm1291, %v1279
      %1313 = vst.msk [vmem:[#allocation2 + $0xa8] sm:$0xff] %vm1291, %v1280
      %1314 = vst.msk [vmem:[#allocation2 + $0xb0] sm:$0xff] %vm1291, %v1281
      %1315 = vst.msk [vmem:[#allocation2 + $0xb8] sm:$0xff] %vm1291, %v1282
      %1316 = vst.msk [vmem:[#allocation2 + $0xc0] sm:$0xff] %vm1291, %v1283
      %1317 = vst.msk [vmem:[#allocation2 + $0xc8] sm:$0xff] %vm1291, %v1284
      %1318 = vst.msk [vmem:[#allocation2 + $0xd0] sm:$0xff] %vm1291, %v1285
      %1319 = vst.msk [vmem:[#allocation2 + $0xd8] sm:$0xff] %vm1291, %v1286
      %1320 = vst.msk [vmem:[#allocation2 + $0xe0] sm:$0xff] %vm1291, %v1287
      %1321 = vst.msk [vmem:[#allocation2 + $0xe8] sm:$0xff] %vm1291, %v1288
      %1322 = vst.msk [vmem:[#allocation2 + $0xf0] sm:$0xff] %vm1291, %v1289
      %1323 = vst.msk [vmem:[#allocation2 + $0xf8] sm:$0xff] %vm1291, %v1290
      // Predicated region
      $region37: #{gcn_forward.3} parent=31 // pred_check
        %p1324 = pneg %p228
      $region38: #{gcn_forward.3} parent=31 // pred_check_branch
        %1326 = sbr.rel (%p1324) target = $region40
      $region39: #{gcn_forward.3} parent=31 // pred_region
        %v1327 = vld [vmem:[#allocation2] sm:$0xff]
        %v1328 = vld [vmem:[#allocation2 + $0x8] sm:$0xff]
        %v1329 = vld [vmem:[#allocation2 + $0x10] sm:$0xff]
        %v1330 = vld [vmem:[#allocation2 + $0x18] sm:$0xff]
        %v1331 = vld [vmem:[#allocation2 + $0x20] sm:$0xff]
        %v1332 = vld [vmem:[#allocation2 + $0x28] sm:$0xff]
        %v1333 = vld [vmem:[#allocation2 + $0x30] sm:$0xff]
        %v1334 = vld [vmem:[#allocation2 + $0x38] sm:$0xff]
        %v1335 = vld [vmem:[#allocation2 + $0x40] sm:$0xff]
        %v1336 = vld [vmem:[#allocation2 + $0x48] sm:$0xff]
        %v1337 = vld [vmem:[#allocation2 + $0x50] sm:$0xff]
        %v1338 = vld [vmem:[#allocation2 + $0x58] sm:$0xff]
        %v1339 = vld [vmem:[#allocation2 + $0x60] sm:$0xff]
        %v1340 = vld [vmem:[#allocation2 + $0x68] sm:$0xff]
        %v1341 = vld [vmem:[#allocation2 + $0x70] sm:$0xff]
        %v1342 = vld [vmem:[#allocation2 + $0x78] sm:$0xff]
        %v1343 = vld [vmem:[#allocation2 + $0x80] sm:$0xff]
        %v1344 = vld [vmem:[#allocation2 + $0x88] sm:$0xff]
        %v1345 = vld [vmem:[#allocation2 + $0x90] sm:$0xff]
        %v1346 = vld [vmem:[#allocation2 + $0x98] sm:$0xff]
        %v1347 = vld [vmem:[#allocation2 + $0xa0] sm:$0xff]
        %v1348 = vld [vmem:[#allocation2 + $0xa8] sm:$0xff]
        %v1349 = vld [vmem:[#allocation2 + $0xb0] sm:$0xff]
        %v1350 = vld [vmem:[#allocation2 + $0xb8] sm:$0xff]
        %v1351 = vld [vmem:[#allocation2 + $0xc0] sm:$0xff]
        %v1352 = vld [vmem:[#allocation2 + $0xc8] sm:$0xff]
        %v1353 = vld [vmem:[#allocation2 + $0xd0] sm:$0xff]
        %v1354 = vld [vmem:[#allocation2 + $0xd8] sm:$0xff]
        %v1355 = vld [vmem:[#allocation2 + $0xe0] sm:$0xff]
        %v1356 = vld [vmem:[#allocation2 + $0xe8] sm:$0xff]
        %v1357 = vld [vmem:[#allocation2 + $0xf0] sm:$0xff]
        %v1358 = vld [vmem:[#allocation2 + $0xf8] sm:$0xff]
        %v1359 = vld [vmem:[%s2] sm:$0x1]
        %v1361 = vlaneseq
        %v1362 = vshrl.u32 %v1361, 7
        %v1363 = vsub.s32 0, %v1362
        %v1364 = vrot.slane %v1359, %v1363
        %v1366 = vadd.f32 %v1327, %v1364
        %v1367 = vadd.f32 %v1328, %v1364
        %v1368 = vadd.f32 %v1329, %v1364
        %v1369 = vadd.f32 %v1330, %v1364
        %v1370 = vadd.f32 %v1331, %v1364
        %v1371 = vadd.f32 %v1332, %v1364
        %v1372 = vadd.f32 %v1333, %v1364
        %v1373 = vadd.f32 %v1334, %v1364
        %v1374 = vadd.f32 %v1335, %v1364
        %v1375 = vadd.f32 %v1336, %v1364
        %v1376 = vadd.f32 %v1337, %v1364
        %v1377 = vadd.f32 %v1338, %v1364
        %v1378 = vadd.f32 %v1339, %v1364
        %v1379 = vadd.f32 %v1340, %v1364
        %v1380 = vadd.f32 %v1341, %v1364
        %v1381 = vadd.f32 %v1342, %v1364
        %v1382 = vadd.f32 %v1343, %v1364
        %v1383 = vadd.f32 %v1344, %v1364
        %v1384 = vadd.f32 %v1345, %v1364
        %v1385 = vadd.f32 %v1346, %v1364
        %v1386 = vadd.f32 %v1347, %v1364
        %v1387 = vadd.f32 %v1348, %v1364
        %v1388 = vadd.f32 %v1349, %v1364
        %v1389 = vadd.f32 %v1350, %v1364
        %v1390 = vadd.f32 %v1351, %v1364
        %v1391 = vadd.f32 %v1352, %v1364
        %v1392 = vadd.f32 %v1353, %v1364
        %v1393 = vadd.f32 %v1354, %v1364
        %v1394 = vadd.f32 %v1355, %v1364
        %v1395 = vadd.f32 %v1356, %v1364
        %v1396 = vadd.f32 %v1357, %v1364
        %v1397 = vadd.f32 %v1358, %v1364
        %v1398 = vmax.f32 %v1366, 0.0
        %v1399 = vmax.f32 %v1367, 0.0
        %v1400 = vmax.f32 %v1368, 0.0
        %v1401 = vmax.f32 %v1369, 0.0
        %v1402 = vmax.f32 %v1370, 0.0
        %v1403 = vmax.f32 %v1371, 0.0
        %v1404 = vmax.f32 %v1372, 0.0
        %v1405 = vmax.f32 %v1373, 0.0
        %v1406 = vmax.f32 %v1374, 0.0
        %v1407 = vmax.f32 %v1375, 0.0
        %v1408 = vmax.f32 %v1376, 0.0
        %v1409 = vmax.f32 %v1377, 0.0
        %v1410 = vmax.f32 %v1378, 0.0
        %v1411 = vmax.f32 %v1379, 0.0
        %v1412 = vmax.f32 %v1380, 0.0
        %v1413 = vmax.f32 %v1381, 0.0
        %v1414 = vmax.f32 %v1382, 0.0
        %v1415 = vmax.f32 %v1383, 0.0
        %v1416 = vmax.f32 %v1384, 0.0
        %v1417 = vmax.f32 %v1385, 0.0
        %v1418 = vmax.f32 %v1386, 0.0
        %v1419 = vmax.f32 %v1387, 0.0
        %v1420 = vmax.f32 %v1388, 0.0
        %v1421 = vmax.f32 %v1389, 0.0
        %v1422 = vmax.f32 %v1390, 0.0
        %v1423 = vmax.f32 %v1391, 0.0
        %v1424 = vmax.f32 %v1392, 0.0
        %v1425 = vmax.f32 %v1393, 0.0
        %v1426 = vmax.f32 %v1394, 0.0
        %v1427 = vmax.f32 %v1395, 0.0
        %v1428 = vmax.f32 %v1396, 0.0
        %v1429 = vmax.f32 %v1397, 0.0
        %v1430 = vpack.c.bf16 %v1399, %v1398
        %v1431 = vpack.c.bf16 %v1401, %v1400
        %v1432 = vpack.c.bf16 %v1403, %v1402
        %v1433 = vpack.c.bf16 %v1405, %v1404
        %v1434 = vpack.c.bf16 %v1407, %v1406
        %v1435 = vpack.c.bf16 %v1409, %v1408
        %v1436 = vpack.c.bf16 %v1411, %v1410
        %v1437 = vpack.c.bf16 %v1413, %v1412
        %v1438 = vpack.c.bf16 %v1415, %v1414
        %v1439 = vpack.c.bf16 %v1417, %v1416
        %v1440 = vpack.c.bf16 %v1419, %v1418
        %v1441 = vpack.c.bf16 %v1421, %v1420
        %v1442 = vpack.c.bf16 %v1423, %v1422
        %v1443 = vpack.c.bf16 %v1425, %v1424
        %v1444 = vpack.c.bf16 %v1427, %v1426
        %v1445 = vpack.c.bf16 %v1429, %v1428
        %1446 = vst.msk [vmem:[%s225] sm:$0xff] %vm1291, %v1430
        %1447 = vst.msk [vmem:[%s225 + $0x8] sm:$0xff] %vm1291, %v1431
        %1448 = vst.msk [vmem:[%s225 + $0x10] sm:$0xff] %vm1291, %v1432
        %1449 = vst.msk [vmem:[%s225 + $0x18] sm:$0xff] %vm1291, %v1433
        %1450 = vst.msk [vmem:[%s225 + $0x20] sm:$0xff] %vm1291, %v1434
        %1451 = vst.msk [vmem:[%s225 + $0x28] sm:$0xff] %vm1291, %v1435
        %1452 = vst.msk [vmem:[%s225 + $0x30] sm:$0xff] %vm1291, %v1436
        %1453 = vst.msk [vmem:[%s225 + $0x38] sm:$0xff] %vm1291, %v1437
        %1454 = vst.msk [vmem:[%s225 + $0x40] sm:$0xff] %vm1291, %v1438
        %1455 = vst.msk [vmem:[%s225 + $0x48] sm:$0xff] %vm1291, %v1439
        %1456 = vst.msk [vmem:[%s225 + $0x50] sm:$0xff] %vm1291, %v1440
        %1457 = vst.msk [vmem:[%s225 + $0x58] sm:$0xff] %vm1291, %v1441
        %1458 = vst.msk [vmem:[%s225 + $0x60] sm:$0xff] %vm1291, %v1442
        %1459 = vst.msk [vmem:[%s225 + $0x68] sm:$0xff] %vm1291, %v1443
        %1460 = vst.msk [vmem:[%s225 + $0x70] sm:$0xff] %vm1291, %v1444
        %1461 = vst.msk [vmem:[%s225 + $0x78] sm:$0xff] %vm1291, %v1445
      $region40: #{gcn_forward.3} parent=31 // pred_fallthru
        _
      %s1462 = smul.u32 16, %s18
      %p1463 = scmp.lt.s32.totalorder %s1462, 31
      %s1464 = scalar_select %p1463, %s1462, 31
      %s1465 = smul.addr %s1464, 8
      %s1466 = scalar_lea.vmem %s3, %s1465
      // Predicated region
      $region41: #{gcn_forward.3} parent=31 // pred_check
        %p1467 = pneg %p119
      $region42: #{gcn_forward.3} parent=31 // pred_check_branch
        %1469 = sbr.rel (%p1467) target = $region44
      $region43: #{gcn_forward.3} parent=31 // pred_region
        %s1470 = smul.u32 16, %s18
      $region44: #{gcn_forward.3} parent=31 // pred_fallthru
        _
    $region32: #{gcn_forward.3} parent=5 // pred_fallthru
      _
    %p1471 = scmp.le.s32.totalorder 2, %s9
    // Predicated region
    $region45: #{gcn_forward.3} parent=5 // pred_check
      %p1472 = pneg %p1471
    $region46: #{gcn_forward.3} parent=5 // pred_check_branch
      %1474 = sbr.rel (%p1472) target = $region48
    $region47: #{gcn_forward.3} parent=5 // pred_region
      %s1475 = ssub.s32 %s9, 2
      // Predicated region
      $region49: #{gcn_forward.3} parent=47 // pred_check
        %p1476 = pneg %p125
      $region50: #{gcn_forward.3} parent=47 // pred_check_branch
        %1478 = sbr.rel (%p1476) target = $region52
      $region51: #{gcn_forward.3} parent=47 // pred_region
        %s1479 = smul.u32 16, %s20
        %p1480 = scmp.lt.s32.totalorder %s1479, 31
        %s1481 = scalar_select %p1480, %s1479, 31
        %s1482 = smul.addr %s1481, 8
        %s1483 = scalar_lea.vmem %s3, %s1482
      $region52: #{gcn_forward.3} parent=47 // pred_fallthru
        _
    $region48: #{gcn_forward.3} parent=5 // pred_fallthru
      _
  $region6: #{gcn_forward.3} parent=0 // loop_footer
    %s13 = sadd.s32 1, %s9
  $region7: #{gcn_forward.3} parent=0 // loop_footer_branch
    %8 = sbr.rel target = $region3
  $region8: #{gcn_forward.3} parent=0 // loop_exit
    _

// kernel: gcn_forward.4
$region0: #{gcn_forward.4}
  #allocation0 [shape = 'u32[]', space=smem, size = 0x4, offset = 0x4, fixed_abs, tag = 'smem constant byte address 0x4 - core index']
  #allocation1 [shape = 'u32[144,128]{1,0:T(1,128)}', space=vmem, size = 0x12000, scoped, tag = 'internal scratch']
  #allocation2 [shape = 'f32[256,16]{1,0:T(8,128)}', space=vmem, size = 0x20000, scoped, tag = 'scratch operand']
  %s0 = inlined_call_operand.vmem [shape: bf16[512,512], index: 0, kind: input, shape index: {}]
  %s1 = inlined_call_operand.vmem [shape: bf16[512,16], index: 1, kind: input, shape index: {}]
  %s2 = inlined_call_operand.vmem [shape: f32[1,16], index: 2, kind: input, shape index: {}]
  %s3 = inlined_call_operand.vmem [shape: bf16[512,16], index: 3, kind: output, shape index: {}]
  %s4 = sld [smem:[#allocation0]]
  $region53: #{gcn_forward.4} parent=0
    _
  %s6 = ssub.s32 1, %s4
  %s7 = scalar_select 0, %s6, %s4
  loop: start=0, step=1, limit=4
  $region2: #{gcn_forward.4} parent=0 // loop_pre_header
    _
  $region3: #{gcn_forward.4} parent=0 // loop_header
    %s9 = sphi 0, %s13
    %p10 = scmp.ge.s32.totalorder %s9, 4
    %s16 = sphi 0, %s28
    %s17 = sphi 0, %s24
    %s18 = sphi 0, %s16
    %s19 = sphi 0, %s17
    %s20 = sphi 0, %s18
    %s21 = sphi 0, %s19
    %s33 = sphi 0, %s35
    %s36 = sphi 0, %s33
    %s37 = sphi 0, %s36
    %s53 = sphi 0, %s37
    %s59 = sphi 0, %s61
    %s62 = sphi 0, %s59
    %s63 = sphi 0, %s62
    %s79 = sphi 0, %s63
    %s83 = sphi 0, %s83
    %s85 = sphi 0, %s83
    %s86 = sphi 0, %s85
    %s100 = sphi 0, %s86
    %s106 = sphi 0, %s108
    %s109 = sphi 0, %s106
    %s110 = sphi 0, %s109
    %s126 = sphi 0, %s110
  $region4: #{gcn_forward.4} parent=0 // loop_header_branch
    %12 = sbr.rel (%p10) target = $region8
  $region5: #{gcn_forward.4} parent=0 // loop_body
    %s14 = ssub.s32 %s9, 1
    %s15 = ssub.s32 %s9, 2
    %s22 = sadd.s32 1, %s17
    %p23 = scmp.ge.s32.totalorder %s22, 1
    %s24 = scalar_select %p23, 0, %s22
    %s25 = sadd.s32 1, %s16
    %s26 = scalar_select %p23, %s25, %s16
    %p27 = scmp.ge.s32.totalorder %s26, 2
    %s28 = scalar_select %p27, 0, %s26
    %s29 = ssub.s32 %s16, %s28
    %s30 = ssub.s32 %s17, %s24
    %s31 = sor.u32 %s29, %s30
    %p32 = scmp.eq.s32.totalorder %s31, 0
    %s34 = sadd.s32 %s33, 1
    %s35 = scalar_select %p32, %s33, %s34
    %p38 = pneg %p32
    %p39 = scmp.eq.s32.totalorder %s9, 1
    %p40 = por %p38, %p39
    %p41 = scmp.ne.s32.totalorder %s33, %s36
    %p42 = scmp.eq.s32.totalorder %s9, 0
    %p43 = por %p41, %p42
    %p44 = scmp.ne.s32.totalorder %s33, %s36
    %p45 = scmp.eq.s32.totalorder %s14, 1
    %p46 = por %p44, %p45
    %p47 = scmp.ne.s32.totalorder %s36, %s37
    %p48 = scmp.eq.s32.totalorder %s14, 0
    %p49 = por %p47, %p48
    %p50 = scmp.ne.s32.totalorder %s36, %s37
    %p51 = scmp.eq.s32.totalorder %s15, 1
    %p52 = por %p50, %p51
    %p54 = scmp.ne.s32.totalorder %s37, %s53
    %p55 = scmp.eq.s32.totalorder %s15, 0
    %p56 = por %p54, %p55
    %s57 = ssub.s32 %s17, %s24
    %p58 = scmp.eq.s32.totalorder %s57, 0
    %s60 = sadd.s32 %s59, 1
    %s61 = scalar_select %p58, %s59, %s60
    %p64 = pneg %p58
    %p65 = scmp.eq.s32.totalorder %s9, 1
    %p66 = por %p64, %p65
    %p67 = scmp.ne.s32.totalorder %s59, %s62
    %p68 = scmp.eq.s32.totalorder %s9, 0
    %p69 = por %p67, %p68
    %p70 = scmp.ne.s32.totalorder %s59, %s62
    %p71 = scmp.eq.s32.totalorder %s14, 1
    %p72 = por %p70, %p71
    %p73 = scmp.ne.s32.totalorder %s62, %s63
    %p74 = scmp.eq.s32.totalorder %s14, 0
    %p75 = por %p73, %p74
    %p76 = scmp.ne.s32.totalorder %s62, %s63
    %p77 = scmp.eq.s32.totalorder %s15, 1
    %p78 = por %p76, %p77
    %p80 = scmp.ne.s32.totalorder %s63, %s79
    %p81 = scmp.eq.s32.totalorder %s15, 0
    %p82 = por %p80, %p81
    %s84 = sadd.s32 %s83, 1
    %p87 = scmp.eq.s32.totalorder %s9, 1
    %p88 = scmp.ne.s32.totalorder %s83, %s85
    %p89 = scmp.eq.s32.totalorder %s9, 0
    %p90 = por %p88, %p89
    %p91 = scmp.ne.s32.totalorder %s83, %s85
    %p92 = scmp.eq.s32.totalorder %s14, 1
    %p93 = por %p91, %p92
    %p94 = scmp.ne.s32.totalorder %s85, %s86
    %p95 = scmp.eq.s32.totalorder %s14, 0
    %p96 = por %p94, %p95
    %p97 = scmp.ne.s32.totalorder %s85, %s86
    %p98 = scmp.eq.s32.totalorder %s15, 1
    %p99 = por %p97, %p98
    %p101 = scmp.ne.s32.totalorder %s86, %s100
    %p102 = scmp.eq.s32.totalorder %s15, 0
    %p103 = por %p101, %p102
    %s104 = ssub.s32 %s16, %s28
    %p105 = scmp.eq.s32.totalorder %s104, 0
    %s107 = sadd.s32 %s106, 1
    %s108 = scalar_select %p105, %s106, %s107
    %p111 = pneg %p105
    %p112 = scmp.eq.s32.totalorder %s9, 1
    %p113 = por %p111, %p112
    %p114 = scmp.ne.s32.totalorder %s106, %s109
    %p115 = scmp.eq.s32.totalorder %s9, 0
    %p116 = por %p114, %p115
    %p117 = scmp.ne.s32.totalorder %s106, %s109
    %p118 = scmp.eq.s32.totalorder %s14, 1
    %p119 = por %p117, %p118
    %p120 = scmp.ne.s32.totalorder %s109, %s110
    %p121 = scmp.eq.s32.totalorder %s14, 0
    %p122 = por %p120, %p121
    %p123 = scmp.ne.s32.totalorder %s109, %s110
    %p124 = scmp.eq.s32.totalorder %s15, 1
    %p125 = por %p123, %p124
    %p127 = scmp.ne.s32.totalorder %s110, %s126
    %p128 = scmp.eq.s32.totalorder %s15, 0
    %p129 = por %p127, %p128
    %p130 = scmp.le.s32.totalorder 1, %s9
    %p131 = scmp.lt.s32.totalorder %s9, 3
    %p132 = pnand %p130, %p131
    %p133 = pneg %p132
    // Predicated region
    $region9: #{gcn_forward.4} parent=5 // pred_check
      _
    $region10: #{gcn_forward.4} parent=5 // pred_check_branch
      %135 = sbr.rel (%p132) target = $region12
    $region11: #{gcn_forward.4} parent=5 // pred_region
      %s136 = ssub.s32 %s9, 1
      // Predicated region
      $region13: #{gcn_forward.4} parent=11 // pred_check
        %p137 = pneg %p75
      $region14: #{gcn_forward.4} parent=11 // pred_check_branch
        %139 = sbr.rel (%p137) target = $region16
      $region15: #{gcn_forward.4} parent=11 // pred_region
        %s140 = smul.u32 64, %s19
        %p141 = scmp.lt.s32.totalorder %s140, 63
        %s142 = scalar_select %p141, %s140, 63
        %s143 = smul.addr %s142, 4
        %s144 = scalar_lea.vmem %s1, %s143
        %s145 = smul.u32 64, %s19
      $region16: #{gcn_forward.4} parent=11 // pred_fallthru
        _
      // Predicated region
      $region17: #{gcn_forward.4} parent=11 // pred_check
        %p146 = pneg %p96
      $region18: #{gcn_forward.4} parent=11 // pred_check_branch
        %148 = sbr.rel (%p146) target = $region20
      $region19: #{gcn_forward.4} parent=11 // pred_region
        _
      $region20: #{gcn_forward.4} parent=11 // pred_fallthru
        _
    $region12: #{gcn_forward.4} parent=5 // pred_fallthru
      _
    %p149 = scmp.lt.s32.totalorder %s9, 2
    // Predicated region
    $region21: #{gcn_forward.4} parent=5 // pred_check
      %p150 = pneg %p149
    $region22: #{gcn_forward.4} parent=5 // pred_check_branch
      %152 = sbr.rel (%p150) target = $region24
    $region23: #{gcn_forward.4} parent=5 // pred_region
      // Predicated region
      $region25: #{gcn_forward.4} parent=23 // pred_check
        %p153 = pneg %p43
      $region26: #{gcn_forward.4} parent=23 // pred_check_branch
        %155 = sbr.rel (%p153) target = $region28
      $region27: #{gcn_forward.4} parent=23 // pred_region
        %s156 = smul.u32 32, %s16
        %s157 = smul.u32 4, %s17
        %p158 = scmp.lt.s32.totalorder %s156, 63
        %s159 = scalar_select %p158, %s156, 63
        %p160 = scmp.lt.s32.totalorder %s157, 3
        %s161 = scalar_select %p160, %s157, 3
        %s162 = smul.addr %s159, 4
        %s163 = sadd.s32 %s161, %s162
        %s164 = smul.addr %s163, 4
        %s165 = scalar_lea.vmem %s0, %s164
        %s166 = smul.u32 32, %s16
        %s167 = smul.u32 4, %s17
      $region28: #{gcn_forward.4} parent=23 // pred_fallthru
        _
    $region24: #{gcn_forward.4} parent=5 // pred_fallthru
      _
    %p168 = scmp.le.s32.totalorder 1, %s9
    %p169 = scmp.lt.s32.totalorder %s9, 3
    %p170 = pnand %p168, %p169
    %p171 = pneg %p170
    // Predicated region
    $region29: #{gcn_forward.4} parent=5 // pred_check
      _
    $region30: #{gcn_forward.4} parent=5 // pred_check_branch
      %173 = sbr.rel (%p170) target = $region32
    $region31: #{gcn_forward.4} parent=5 // pred_region
      %s174 = ssub.s32 %s9, 1
      %s175 = smul.u32 32, %s18
      %s176 = smul.u32 4, %s19
      %p177 = scmp.lt.s32.totalorder %s175, 63
      %s178 = scalar_select %p177, %s175, 63
      %p179 = scmp.lt.s32.totalorder %s176, 3
      %s180 = scalar_select %p179, %s176, 3
      %s181 = smul.addr %s178, 4
      %s182 = sadd.s32 %s180, %s181
      %s183 = smul.addr %s182, 4
      %s184 = scalar_lea.vmem %s0, %s183
      %p185 = pneg %p49
      %p186 = pneg %p46
      %s187 = smul.u32 64, %s19
      %p188 = scmp.lt.s32.totalorder %s187, 63
      %s189 = scalar_select %p188, %s187, 63
      %s190 = smul.addr %s189, 4
      %s191 = scalar_lea.vmem %s1, %s190
      %p192 = pneg %p75
      %p193 = pneg %p72
      %p194 = pneg %p96
      %p195 = pneg %p93
      %p196 = pneg %p122
      %p197 = pneg %p119
      %s198 = smul.u32 32, %s18
      %p199 = scmp.lt.s32.totalorder %s198, 63
      %s200 = scalar_select %p199, %s198, 63
      %s201 = smul.addr %s200, 4
      %s202 = scalar_lea.vmem %s3, %s201
      %s203 = smul.u32 32, %s18
      %s204 = smul.u32 4, %s19
      %p205 = scmp.lt.s32.totalorder %s203, 63
      %s206 = scalar_select %p205, %s203, 63
      %p207 = scmp.lt.s32.totalorder %s204, 3
      %s208 = scalar_select %p207, %s204, 3
      %s209 = smul.addr %s206, 4
      %s210 = sadd.s32 %s208, %s209
      %s211 = smul.addr %s210, 4
      %s212 = scalar_lea.vmem %s0, %s211
      %s213 = smul.u32 32, %s18
      %s214 = smul.u32 4, %s19
      %s215 = smul.u32 64, %s19
      %p216 = scmp.lt.s32.totalorder %s215, 63
      %s217 = scalar_select %p216, %s215, 63
      %s218 = smul.addr %s217, 4
      %s219 = scalar_lea.vmem %s1, %s218
      %s220 = smul.u32 64, %s19
      %s221 = smul.u32 32, %s18
      %p222 = scmp.lt.s32.totalorder %s221, 63
      %s223 = scalar_select %p222, %s221, 63
      %s224 = smul.addr %s223, 4
      %s225 = scalar_lea.vmem %s3, %s224
      %s226 = smul.u32 32, %s18
      %p228 = scmp.eq.s32.totalorder %s19, 0
      // Predicated region
      $region33: #{gcn_forward.4} parent=31 // pred_check
        %p229 = pneg %p228
      $region34: #{gcn_forward.4} parent=31 // pred_check_branch
        %231 = sbr.rel (%p229) target = $region36
      $region35: #{gcn_forward.4} parent=31 // pred_region
        %vm232 = vcmask 130048
        %233 = vst.msk [vmem:[#allocation2] sm:$0xff] %vm232, 0.0
        %234 = vst.msk [vmem:[#allocation2 + $0x8] sm:$0xff] %vm232, 0.0
        %235 = vst.msk [vmem:[#allocation2 + $0x10] sm:$0xff] %vm232, 0.0
        %236 = vst.msk [vmem:[#allocation2 + $0x18] sm:$0xff] %vm232, 0.0
        %237 = vst.msk [vmem:[#allocation2 + $0x20] sm:$0xff] %vm232, 0.0
        %238 = vst.msk [vmem:[#allocation2 + $0x28] sm:$0xff] %vm232, 0.0
        %239 = vst.msk [vmem:[#allocation2 + $0x30] sm:$0xff] %vm232, 0.0
        %240 = vst.msk [vmem:[#allocation2 + $0x38] sm:$0xff] %vm232, 0.0
        %241 = vst.msk [vmem:[#allocation2 + $0x40] sm:$0xff] %vm232, 0.0
        %242 = vst.msk [vmem:[#allocation2 + $0x48] sm:$0xff] %vm232, 0.0
        %243 = vst.msk [vmem:[#allocation2 + $0x50] sm:$0xff] %vm232, 0.0
        %244 = vst.msk [vmem:[#allocation2 + $0x58] sm:$0xff] %vm232, 0.0
        %245 = vst.msk [vmem:[#allocation2 + $0x60] sm:$0xff] %vm232, 0.0
        %246 = vst.msk [vmem:[#allocation2 + $0x68] sm:$0xff] %vm232, 0.0
        %247 = vst.msk [vmem:[#allocation2 + $0x70] sm:$0xff] %vm232, 0.0
        %248 = vst.msk [vmem:[#allocation2 + $0x78] sm:$0xff] %vm232, 0.0
        %249 = vst.msk [vmem:[#allocation2 + $0x80] sm:$0xff] %vm232, 0.0
        %250 = vst.msk [vmem:[#allocation2 + $0x88] sm:$0xff] %vm232, 0.0
        %251 = vst.msk [vmem:[#allocation2 + $0x90] sm:$0xff] %vm232, 0.0
        %252 = vst.msk [vmem:[#allocation2 + $0x98] sm:$0xff] %vm232, 0.0
        %253 = vst.msk [vmem:[#allocation2 + $0xa0] sm:$0xff] %vm232, 0.0
        %254 = vst.msk [vmem:[#allocation2 + $0xa8] sm:$0xff] %vm232, 0.0
        %255 = vst.msk [vmem:[#allocation2 + $0xb0] sm:$0xff] %vm232, 0.0
        %256 = vst.msk [vmem:[#allocation2 + $0xb8] sm:$0xff] %vm232, 0.0
        %257 = vst.msk [vmem:[#allocation2 + $0xc0] sm:$0xff] %vm232, 0.0
        %258 = vst.msk [vmem:[#allocation2 + $0xc8] sm:$0xff] %vm232, 0.0
        %259 = vst.msk [vmem:[#allocation2 + $0xd0] sm:$0xff] %vm232, 0.0
        %260 = vst.msk [vmem:[#allocation2 + $0xd8] sm:$0xff] %vm232, 0.0
        %261 = vst.msk [vmem:[#allocation2 + $0xe0] sm:$0xff] %vm232, 0.0
        %262 = vst.msk [vmem:[#allocation2 + $0xe8] sm:$0xff] %vm232, 0.0
        %263 = vst.msk [vmem:[#allocation2 + $0xf0] sm:$0xff] %vm232, 0.0
        %264 = vst.msk [vmem:[#allocation2 + $0xf8] sm:$0xff] %vm232, 0.0
      $region36: #{gcn_forward.4} parent=31 // pred_fallthru
        _
      %v265 = vld [vmem:[#allocation2] sm:$0xff]
      %v266 = vld [vmem:[#allocation2 + $0x8] sm:$0xff]
      %v267 = vld [vmem:[#allocation2 + $0x10] sm:$0xff]
      %v268 = vld [vmem:[#allocation2 + $0x18] sm:$0xff]
      %v269 = vld [vmem:[#allocation2 + $0x20] sm:$0xff]
      %v270 = vld [vmem:[#allocation2 + $0x28] sm:$0xff]
      %v271 = vld [vmem:[#allocation2 + $0x30] sm:$0xff]
      %v272 = vld [vmem:[#allocation2 + $0x38] sm:$0xff]
      %v273 = vld [vmem:[#allocation2 + $0x40] sm:$0xff]
      %v274 = vld [vmem:[#allocation2 + $0x48] sm:$0xff]
      %v275 = vld [vmem:[#allocation2 + $0x50] sm:$0xff]
      %v276 = vld [vmem:[#allocation2 + $0x58] sm:$0xff]
      %v277 = vld [vmem:[#allocation2 + $0x60] sm:$0xff]
      %v278 = vld [vmem:[#allocation2 + $0x68] sm:$0xff]
      %v279 = vld [vmem:[#allocation2 + $0x70] sm:$0xff]
      %v280 = vld [vmem:[#allocation2 + $0x78] sm:$0xff]
      %v281 = vld [vmem:[#allocation2 + $0x80] sm:$0xff]
      %v282 = vld [vmem:[#allocation2 + $0x88] sm:$0xff]
      %v283 = vld [vmem:[#allocation2 + $0x90] sm:$0xff]
      %v284 = vld [vmem:[#allocation2 + $0x98] sm:$0xff]
      %v285 = vld [vmem:[#allocation2 + $0xa0] sm:$0xff]
      %v286 = vld [vmem:[#allocation2 + $0xa8] sm:$0xff]
      %v287 = vld [vmem:[#allocation2 + $0xb0] sm:$0xff]
      %v288 = vld [vmem:[#allocation2 + $0xb8] sm:$0xff]
      %v289 = vld [vmem:[#allocation2 + $0xc0] sm:$0xff]
      %v290 = vld [vmem:[#allocation2 + $0xc8] sm:$0xff]
      %v291 = vld [vmem:[#allocation2 + $0xd0] sm:$0xff]
      %v292 = vld [vmem:[#allocation2 + $0xd8] sm:$0xff]
      %v293 = vld [vmem:[#allocation2 + $0xe0] sm:$0xff]
      %v294 = vld [vmem:[#allocation2 + $0xe8] sm:$0xff]
      %v295 = vld [vmem:[#allocation2 + $0xf0] sm:$0xff]
      %v296 = vld [vmem:[#allocation2 + $0xf8] sm:$0xff]
      %v297 = vld [vmem:[%s212] sm:$0xff]
      %v298 = vld [vmem:[%s212 + $0x8] sm:$0xff]
      %v299 = vld [vmem:[%s212 + $0x10] sm:$0xff]
      %v300 = vld [vmem:[%s212 + $0x18] sm:$0xff]
      %v301 = vld [vmem:[%s212 + $0x20] sm:$0xff]
      %v302 = vld [vmem:[%s212 + $0x28] sm:$0xff]
      %v303 = vld [vmem:[%s212 + $0x30] sm:$0xff]
      %v304 = vld [vmem:[%s212 + $0x38] sm:$0xff]
      %v305 = vld [vmem:[%s212 + $0x40] sm:$0xff]
      %v306 = vld [vmem:[%s212 + $0x48] sm:$0xff]
      %v307 = vld [vmem:[%s212 + $0x50] sm:$0xff]
      %v308 = vld [vmem:[%s212 + $0x58] sm:$0xff]
      %v309 = vld [vmem:[%s212 + $0x60] sm:$0xff]
      %v310 = vld [vmem:[%s212 + $0x68] sm:$0xff]
      %v311 = vld [vmem:[%s212 + $0x70] sm:$0xff]
      %v312 = vld [vmem:[%s212 + $0x78] sm:$0xff]
      %v313 = vld [vmem:[%s212 + $0x80] sm:$0xff]
      %v314 = vld [vmem:[%s212 + $0x88] sm:$0xff]
      %v315 = vld [vmem:[%s212 + $0x90] sm:$0xff]
      %v316 = vld [vmem:[%s212 + $0x98] sm:$0xff]
      %v317 = vld [vmem:[%s212 + $0xa0] sm:$0xff]
      %v318 = vld [vmem:[%s212 + $0xa8] sm:$0xff]
      %v319 = vld [vmem:[%s212 + $0xb0] sm:$0xff]
      %v320 = vld [vmem:[%s212 + $0xb8] sm:$0xff]
      %v321 = vld [vmem:[%s212 + $0xc0] sm:$0xff]
      %v322 = vld [vmem:[%s212 + $0xc8] sm:$0xff]
      %v323 = vld [vmem:[%s212 + $0xd0] sm:$0xff]
      %v324 = vld [vmem:[%s212 + $0xd8] sm:$0xff]
      %v325 = vld [vmem:[%s212 + $0xe0] sm:$0xff]
      %v326 = vld [vmem:[%s212 + $0xe8] sm:$0xff]
      %v327 = vld [vmem:[%s212 + $0xf0] sm:$0xff]
      %v328 = vld [vmem:[%s212 + $0xf8] sm:$0xff]
      %v329 = vld [vmem:[%s212 + $0x100] sm:$0xff]
      %v330 = vld [vmem:[%s212 + $0x108] sm:$0xff]
      %v331 = vld [vmem:[%s212 + $0x110] sm:$0xff]
      %v332 = vld [vmem:[%s212 + $0x118] sm:$0xff]
      %v333 = vld [vmem:[%s212 + $0x120] sm:$0xff]
      %v334 = vld [vmem:[%s212 + $0x128] sm:$0xff]
      %v335 = vld [vmem:[%s212 + $0x130] sm:$0xff]
      %v336 = vld [vmem:[%s212 + $0x138] sm:$0xff]
      %v337 = vld [vmem:[%s212 + $0x140] sm:$0xff]
      %v338 = vld [vmem:[%s212 + $0x148] sm:$0xff]
      %v339 = vld [vmem:[%s212 + $0x150] sm:$0xff]
      %v340 = vld [vmem:[%s212 + $0x158] sm:$0xff]
      %v341 = vld [vmem:[%s212 + $0x160] sm:$0xff]
      %v342 = vld [vmem:[%s212 + $0x168] sm:$0xff]
      %v343 = vld [vmem:[%s212 + $0x170] sm:$0xff]
      %v344 = vld [vmem:[%s212 + $0x178] sm:$0xff]
      %v345 = vld [vmem:[%s212 + $0x180] sm:$0xff]
      %v346 = vld [vmem:[%s212 + $0x188] sm:$0xff]
      %v347 = vld [vmem:[%s212 + $0x190] sm:$0xff]
      %v348 = vld [vmem:[%s212 + $0x198] sm:$0xff]
      %v349 = vld [vmem:[%s212 + $0x1a0] sm:$0xff]
      %v350 = vld [vmem:[%s212 + $0x1a8] sm:$0xff]
      %v351 = vld [vmem:[%s212 + $0x1b0] sm:$0xff]
      %v352 = vld [vmem:[%s212 + $0x1b8] sm:$0xff]
      %v353 = vld [vmem:[%s212 + $0x1c0] sm:$0xff]
      %v354 = vld [vmem:[%s212 + $0x1c8] sm:$0xff]
      %v355 = vld [vmem:[%s212 + $0x1d0] sm:$0xff]
      %v356 = vld [vmem:[%s212 + $0x1d8] sm:$0xff]
      %v357 = vld [vmem:[%s212 + $0x1e0] sm:$0xff]
      %v358 = vld [vmem:[%s212 + $0x1e8] sm:$0xff]
      %v359 = vld [vmem:[%s212 + $0x1f0] sm:$0xff]
      %v360 = vld [vmem:[%s212 + $0x1f8] sm:$0xff]
      %v361 = vld [vmem:[%s219] sm:$0xf]
      %v362 = vld [vmem:[%s219 + $0x4] sm:$0xf]
      %v363 = vld [vmem:[%s219 + $0x8] sm:$0xf]
      %v364 = vld [vmem:[%s219 + $0xc] sm:$0xf]
      %v365 = vld [vmem:[%s219 + $0x10] sm:$0xf]
      %v366 = vld [vmem:[%s219 + $0x14] sm:$0xf]
      %v367 = vld [vmem:[%s219 + $0x18] sm:$0xf]
      %v368 = vld [vmem:[%s219 + $0x1c] sm:$0xf]
      %v369 = vld [vmem:[%s219 + $0x20] sm:$0xf]
      %v370 = vld [vmem:[%s219 + $0x24] sm:$0xf]
      %v371 = vld [vmem:[%s219 + $0x28] sm:$0xf]
      %v372 = vld [vmem:[%s219 + $0x2c] sm:$0xf]
      %v373 = vld [vmem:[%s219 + $0x30] sm:$0xf]
      %v374 = vld [vmem:[%s219 + $0x34] sm:$0xf]
      %v375 = vld [vmem:[%s219 + $0x38] sm:$0xf]
      %v376 = vld [vmem:[%s219 + $0x3c] sm:$0xf]
      %v377 = vld [vmem:[%s219 + $0x40] sm:$0xf]
      %v378 = vld [vmem:[%s219 + $0x44] sm:$0xf]
      %v379 = vld [vmem:[%s219 + $0x48] sm:$0xf]
      %v380 = vld [vmem:[%s219 + $0x4c] sm:$0xf]
      %v381 = vld [vmem:[%s219 + $0x50] sm:$0xf]
      %v382 = vld [vmem:[%s219 + $0x54] sm:$0xf]
      %v383 = vld [vmem:[%s219 + $0x58] sm:$0xf]
      %v384 = vld [vmem:[%s219 + $0x5c] sm:$0xf]
      %v385 = vld [vmem:[%s219 + $0x60] sm:$0xf]
      %v386 = vld [vmem:[%s219 + $0x64] sm:$0xf]
      %v387 = vld [vmem:[%s219 + $0x68] sm:$0xf]
      %v388 = vld [vmem:[%s219 + $0x6c] sm:$0xf]
      %v389 = vld [vmem:[%s219 + $0x70] sm:$0xf]
      %v390 = vld [vmem:[%s219 + $0x74] sm:$0xf]
      %v391 = vld [vmem:[%s219 + $0x78] sm:$0xf]
      %v392 = vld [vmem:[%s219 + $0x7c] sm:$0xf]
      %v393 = vld [vmem:[%s219 + $0x80] sm:$0xf]
      %v394 = vld [vmem:[%s219 + $0x84] sm:$0xf]
      %v395 = vld [vmem:[%s219 + $0x88] sm:$0xf]
      %v396 = vld [vmem:[%s219 + $0x8c] sm:$0xf]
      %v397 = vld [vmem:[%s219 + $0x90] sm:$0xf]
      %v398 = vld [vmem:[%s219 + $0x94] sm:$0xf]
      %v399 = vld [vmem:[%s219 + $0x98] sm:$0xf]
      %v400 = vld [vmem:[%s219 + $0x9c] sm:$0xf]
      %v401 = vld [vmem:[%s219 + $0xa0] sm:$0xf]
      %v402 = vld [vmem:[%s219 + $0xa4] sm:$0xf]
      %v403 = vld [vmem:[%s219 + $0xa8] sm:$0xf]
      %v404 = vld [vmem:[%s219 + $0xac] sm:$0xf]
      %v405 = vld [vmem:[%s219 + $0xb0] sm:$0xf]
      %v406 = vld [vmem:[%s219 + $0xb4] sm:$0xf]
      %v407 = vld [vmem:[%s219 + $0xb8] sm:$0xf]
      %v408 = vld [vmem:[%s219 + $0xbc] sm:$0xf]
      %v409 = vld [vmem:[%s219 + $0xc0] sm:$0xf]
      %v410 = vld [vmem:[%s219 + $0xc4] sm:$0xf]
      %v411 = vld [vmem:[%s219 + $0xc8] sm:$0xf]
      %v412 = vld [vmem:[%s219 + $0xcc] sm:$0xf]
      %v413 = vld [vmem:[%s219 + $0xd0] sm:$0xf]
      %v414 = vld [vmem:[%s219 + $0xd4] sm:$0xf]
      %v415 = vld [vmem:[%s219 + $0xd8] sm:$0xf]
      %v416 = vld [vmem:[%s219 + $0xdc] sm:$0xf]
      %v417 = vld [vmem:[%s219 + $0xe0] sm:$0xf]
      %v418 = vld [vmem:[%s219 + $0xe4] sm:$0xf]
      %v419 = vld [vmem:[%s219 + $0xe8] sm:$0xf]
      %v420 = vld [vmem:[%s219 + $0xec] sm:$0xf]
      %v421 = vld [vmem:[%s219 + $0xf0] sm:$0xf]
      %v422 = vld [vmem:[%s219 + $0xf4] sm:$0xf]
      %v423 = vld [vmem:[%s219 + $0xf8] sm:$0xf]
      %v424 = vld [vmem:[%s219 + $0xfc] sm:$0xf]
      %v489 = vunpack.c.l.b16 %v297
      %v490 = vunpack.c.h.b16 %v297
      %v491 = vunpack.c.l.b16 %v298
      %v492 = vunpack.c.h.b16 %v298
      %v493 = vunpack.c.l.b16 %v299
      %v494 = vunpack.c.h.b16 %v299
      %v495 = vunpack.c.l.b16 %v300
      %v496 = vunpack.c.h.b16 %v300
      %v497 = vunpack.c.l.b16 %v301
      %v498 = vunpack.c.h.b16 %v301
      %v499 = vunpack.c.l.b16 %v302
      %v500 = vunpack.c.h.b16 %v302
      %v501 = vunpack.c.l.b16 %v303
      %v502 = vunpack.c.h.b16 %v303
      %v503 = vunpack.c.l.b16 %v304
      %v504 = vunpack.c.h.b16 %v304
      %v505 = vunpack.c.l.b16 %v305
      %v506 = vunpack.c.h.b16 %v305
      %v507 = vunpack.c.l.b16 %v306
      %v508 = vunpack.c.h.b16 %v306
      %v509 = vunpack.c.l.b16 %v307
      %v510 = vunpack.c.h.b16 %v307
      %v511 = vunpack.c.l.b16 %v308
      %v512 = vunpack.c.h.b16 %v308
      %v513 = vunpack.c.l.b16 %v309
      %v514 = vunpack.c.h.b16 %v309
      %v515 = vunpack.c.l.b16 %v310
      %v516 = vunpack.c.h.b16 %v310
      %v517 = vunpack.c.l.b16 %v311
      %v518 = vunpack.c.h.b16 %v311
      %v519 = vunpack.c.l.b16 %v312
      %v520 = vunpack.c.h.b16 %v312
      %v521 = vunpack.c.l.b16 %v313
      %v522 = vunpack.c.h.b16 %v313
      %v523 = vunpack.c.l.b16 %v314
      %v524 = vunpack.c.h.b16 %v314
      %v525 = vunpack.c.l.b16 %v315
      %v526 = vunpack.c.h.b16 %v315
      %v527 = vunpack.c.l.b16 %v316
      %v528 = vunpack.c.h.b16 %v316
      %v529 = vunpack.c.l.b16 %v317
      %v530 = vunpack.c.h.b16 %v317
      %v531 = vunpack.c.l.b16 %v318
      %v532 = vunpack.c.h.b16 %v318
      %v533 = vunpack.c.l.b16 %v319
      %v534 = vunpack.c.h.b16 %v319
      %v535 = vunpack.c.l.b16 %v320
      %v536 = vunpack.c.h.b16 %v320
      %v537 = vunpack.c.l.b16 %v321
      %v538 = vunpack.c.h.b16 %v321
      %v539 = vunpack.c.l.b16 %v322
      %v540 = vunpack.c.h.b16 %v322
      %v541 = vunpack.c.l.b16 %v323
      %v542 = vunpack.c.h.b16 %v323
      %v543 = vunpack.c.l.b16 %v324
      %v544 = vunpack.c.h.b16 %v324
      %v545 = vunpack.c.l.b16 %v325
      %v546 = vunpack.c.h.b16 %v325
      %v547 = vunpack.c.l.b16 %v326
      %v548 = vunpack.c.h.b16 %v326
      %v549 = vunpack.c.l.b16 %v327
      %v550 = vunpack.c.h.b16 %v327
      %v551 = vunpack.c.l.b16 %v328
      %v552 = vunpack.c.h.b16 %v328
      %v553 = vunpack.c.l.b16 %v329
      %v554 = vunpack.c.h.b16 %v329
      %v555 = vunpack.c.l.b16 %v330
      %v556 = vunpack.c.h.b16 %v330
      %v557 = vunpack.c.l.b16 %v331
      %v558 = vunpack.c.h.b16 %v331
      %v559 = vunpack.c.l.b16 %v332
      %v560 = vunpack.c.h.b16 %v332
      %v561 = vunpack.c.l.b16 %v333
      %v562 = vunpack.c.h.b16 %v333
      %v563 = vunpack.c.l.b16 %v334
      %v564 = vunpack.c.h.b16 %v334
      %v565 = vunpack.c.l.b16 %v335
      %v566 = vunpack.c.h.b16 %v335
      %v567 = vunpack.c.l.b16 %v336
      %v568 = vunpack.c.h.b16 %v336
      %v569 = vunpack.c.l.b16 %v337
      %v570 = vunpack.c.h.b16 %v337
      %v571 = vunpack.c.l.b16 %v338
      %v572 = vunpack.c.h.b16 %v338
      %v573 = vunpack.c.l.b16 %v339
      %v574 = vunpack.c.h.b16 %v339
      %v575 = vunpack.c.l.b16 %v340
      %v576 = vunpack.c.h.b16 %v340
      %v577 = vunpack.c.l.b16 %v341
      %v578 = vunpack.c.h.b16 %v341
      %v579 = vunpack.c.l.b16 %v342
      %v580 = vunpack.c.h.b16 %v342
      %v581 = vunpack.c.l.b16 %v343
      %v582 = vunpack.c.h.b16 %v343
      %v583 = vunpack.c.l.b16 %v344
      %v584 = vunpack.c.h.b16 %v344
      %v585 = vunpack.c.l.b16 %v345
      %v586 = vunpack.c.h.b16 %v345
      %v587 = vunpack.c.l.b16 %v346
      %v588 = vunpack.c.h.b16 %v346
      %v589 = vunpack.c.l.b16 %v347
      %v590 = vunpack.c.h.b16 %v347
      %v591 = vunpack.c.l.b16 %v348
      %v592 = vunpack.c.h.b16 %v348
      %v593 = vunpack.c.l.b16 %v349
      %v594 = vunpack.c.h.b16 %v349
      %v595 = vunpack.c.l.b16 %v350
      %v596 = vunpack.c.h.b16 %v350
      %v597 = vunpack.c.l.b16 %v351
      %v598 = vunpack.c.h.b16 %v351
      %v599 = vunpack.c.l.b16 %v352
      %v600 = vunpack.c.h.b16 %v352
      %v601 = vunpack.c.l.b16 %v353
      %v602 = vunpack.c.h.b16 %v353
      %v603 = vunpack.c.l.b16 %v354
      %v604 = vunpack.c.h.b16 %v354
      %v605 = vunpack.c.l.b16 %v355
      %v606 = vunpack.c.h.b16 %v355
      %v607 = vunpack.c.l.b16 %v356
      %v608 = vunpack.c.h.b16 %v356
      %v609 = vunpack.c.l.b16 %v357
      %v610 = vunpack.c.h.b16 %v357
      %v611 = vunpack.c.l.b16 %v358
      %v612 = vunpack.c.h.b16 %v358
      %v613 = vunpack.c.l.b16 %v359
      %v614 = vunpack.c.h.b16 %v359
      %v615 = vunpack.c.l.b16 %v360
      %v616 = vunpack.c.h.b16 %v360
      %v617 = vpack.c.b16 %v493, %v489
      %v618 = vpack.c.b16 %v494, %v490
      %v619 = vpack.c.b16 %v495, %v491
      %v620 = vpack.c.b16 %v496, %v492
      %v621 = vpack.c.b16 %v501, %v497
      %v622 = vpack.c.b16 %v502, %v498
      %v623 = vpack.c.b16 %v503, %v499
      %v624 = vpack.c.b16 %v504, %v500
      %v625 = vpack.c.b16 %v509, %v505
      %v626 = vpack.c.b16 %v510, %v506
      %v627 = vpack.c.b16 %v511, %v507
      %v628 = vpack.c.b16 %v512, %v508
      %v629 = vpack.c.b16 %v517, %v513
      %v630 = vpack.c.b16 %v518, %v514
      %v631 = vpack.c.b16 %v519, %v515
      %v632 = vpack.c.b16 %v520, %v516
      %v633 = vpack.c.b16 %v525, %v521
      %v634 = vpack.c.b16 %v526, %v522
      %v635 = vpack.c.b16 %v527, %v523
      %v636 = vpack.c.b16 %v528, %v524
      %v637 = vpack.c.b16 %v533, %v529
      %v638 = vpack.c.b16 %v534, %v530
      %v639 = vpack.c.b16 %v535, %v531
      %v640 = vpack.c.b16 %v536, %v532
      %v641 = vpack.c.b16 %v541, %v537
      %v642 = vpack.c.b16 %v542, %v538
      %v643 = vpack.c.b16 %v543, %v539
      %v644 = vpack.c.b16 %v544, %v540
      %v645 = vpack.c.b16 %v549, %v545
      %v646 = vpack.c.b16 %v550, %v546
      %v647 = vpack.c.b16 %v551, %v547
      %v648 = vpack.c.b16 %v552, %v548
      %v649 = vpack.c.b16 %v557, %v553
      %v650 = vpack.c.b16 %v558, %v554
      %v651 = vpack.c.b16 %v559, %v555
      %v652 = vpack.c.b16 %v560, %v556
      %v653 = vpack.c.b16 %v565, %v561
      %v654 = vpack.c.b16 %v566, %v562
      %v655 = vpack.c.b16 %v567, %v563
      %v656 = vpack.c.b16 %v568, %v564
      %v657 = vpack.c.b16 %v573, %v569
      %v658 = vpack.c.b16 %v574, %v570
      %v659 = vpack.c.b16 %v575, %v571
      %v660 = vpack.c.b16 %v576, %v572
      %v661 = vpack.c.b16 %v581, %v577
      %v662 = vpack.c.b16 %v582, %v578
      %v663 = vpack.c.b16 %v583, %v579
      %v664 = vpack.c.b16 %v584, %v580
      %v665 = vpack.c.b16 %v589, %v585
      %v666 = vpack.c.b16 %v590, %v586
      %v667 = vpack.c.b16 %v591, %v587
      %v668 = vpack.c.b16 %v592, %v588
      %v669 = vpack.c.b16 %v597, %v593
      %v670 = vpack.c.b16 %v598, %v594
      %v671 = vpack.c.b16 %v599, %v595
      %v672 = vpack.c.b16 %v600, %v596
      %v673 = vpack.c.b16 %v605, %v601
      %v674 = vpack.c.b16 %v606, %v602
      %v675 = vpack.c.b16 %v607, %v603
      %v676 = vpack.c.b16 %v608, %v604
      %v677 = vpack.c.b16 %v613, %v609
      %v678 = vpack.c.b16 %v614, %v610
      %v679 = vpack.c.b16 %v615, %v611
      %v680 = vpack.c.b16 %v616, %v612
      %v809 = vunpack.c.l.b16 %v361
      %v810 = vunpack.c.l.b16 %v362
      %v811 = vunpack.c.l.b16 %v363
      %v812 = vunpack.c.l.b16 %v364
      %v813 = vunpack.c.l.b16 %v365
      %v814 = vunpack.c.l.b16 %v366
      %v815 = vunpack.c.l.b16 %v367
      %v816 = vunpack.c.l.b16 %v368
      %v817 = vunpack.c.l.b16 %v369
      %v818 = vunpack.c.l.b16 %v370
      %v819 = vunpack.c.l.b16 %v371
      %v820 = vunpack.c.l.b16 %v372
      %v821 = vunpack.c.l.b16 %v373
      %v822 = vunpack.c.l.b16 %v374
      %v823 = vunpack.c.l.b16 %v375
      %v824 = vunpack.c.l.b16 %v376
      %v825 = vunpack.c.l.b16 %v377
      %v826 = vunpack.c.l.b16 %v378
      %v827 = vunpack.c.l.b16 %v379
      %v828 = vunpack.c.l.b16 %v380
      %v829 = vunpack.c.l.b16 %v381
      %v830 = vunpack.c.l.b16 %v382
      %v831 = vunpack.c.l.b16 %v383
      %v832 = vunpack.c.l.b16 %v384
      %v833 = vunpack.c.l.b16 %v385
      %v834 = vunpack.c.l.b16 %v386
      %v835 = vunpack.c.l.b16 %v387
      %v836 = vunpack.c.l.b16 %v388
      %v837 = vunpack.c.l.b16 %v389
      %v838 = vunpack.c.l.b16 %v390
      %v839 = vunpack.c.l.b16 %v391
      %v840 = vunpack.c.l.b16 %v392
      %v841 = vunpack.c.l.b16 %v393
      %v842 = vunpack.c.l.b16 %v394
      %v843 = vunpack.c.l.b16 %v395
      %v844 = vunpack.c.l.b16 %v396
      %v845 = vunpack.c.l.b16 %v397
      %v846 = vunpack.c.l.b16 %v398
      %v847 = vunpack.c.l.b16 %v399
      %v848 = vunpack.c.l.b16 %v400
      %v849 = vunpack.c.l.b16 %v401
      %v850 = vunpack.c.l.b16 %v402
      %v851 = vunpack.c.l.b16 %v403
      %v852 = vunpack.c.l.b16 %v404
      %v853 = vunpack.c.l.b16 %v405
      %v854 = vunpack.c.l.b16 %v406
      %v855 = vunpack.c.l.b16 %v407
      %v856 = vunpack.c.l.b16 %v408
      %v857 = vunpack.c.l.b16 %v409
      %v858 = vunpack.c.l.b16 %v410
      %v859 = vunpack.c.l.b16 %v411
      %v860 = vunpack.c.l.b16 %v412
      %v861 = vunpack.c.l.b16 %v413
      %v862 = vunpack.c.l.b16 %v414
      %v863 = vunpack.c.l.b16 %v415
      %v864 = vunpack.c.l.b16 %v416
      %v865 = vunpack.c.l.b16 %v417
      %v866 = vunpack.c.l.b16 %v418
      %v867 = vunpack.c.l.b16 %v419
      %v868 = vunpack.c.l.b16 %v420
      %v869 = vunpack.c.l.b16 %v421
      %v870 = vunpack.c.l.b16 %v422
      %v871 = vunpack.c.l.b16 %v423
      %v872 = vunpack.c.l.b16 %v424
      %v873 = vpack.c.b16 %v810, %v809
      %v874 = vpack.c.b16 %v812, %v811
      %v875 = vpack.c.b16 %v814, %v813
      %v876 = vpack.c.b16 %v816, %v815
      %v877 = vpack.c.b16 %v818, %v817
      %v878 = vpack.c.b16 %v820, %v819
      %v879 = vpack.c.b16 %v822, %v821
      %v880 = vpack.c.b16 %v824, %v823
      %v881 = vpack.c.b16 %v826, %v825
      %v882 = vpack.c.b16 %v828, %v827
      %v883 = vpack.c.b16 %v830, %v829
      %v884 = vpack.c.b16 %v832, %v831
      %v885 = vpack.c.b16 %v834, %v833
      %v886 = vpack.c.b16 %v836, %v835
      %v887 = vpack.c.b16 %v838, %v837
      %v888 = vpack.c.b16 %v840, %v839
      %v889 = vpack.c.b16 %v842, %v841
      %v890 = vpack.c.b16 %v844, %v843
      %v891 = vpack.c.b16 %v846, %v845
      %v892 = vpack.c.b16 %v848, %v847
      %v893 = vpack.c.b16 %v850, %v849
      %v894 = vpack.c.b16 %v852, %v851
      %v895 = vpack.c.b16 %v854, %v853
      %v896 = vpack.c.b16 %v856, %v855
      %v897 = vpack.c.b16 %v858, %v857
      %v898 = vpack.c.b16 %v860, %v859
      %v899 = vpack.c.b16 %v862, %v861
      %v900 = vpack.c.b16 %v864, %v863
      %v901 = vpack.c.b16 %v866, %v865
      %v902 = vpack.c.b16 %v868, %v867
      %v903 = vpack.c.b16 %v870, %v869
      %v904 = vpack.c.b16 %v872, %v871
      %937 = vmatprep.subr.bf16.mxu0 0
      %938 = vmatpush1.bf16.msra.mxu0 %v873
      %939 = vmatprep.subr.bf16.mxu0 0
      %940 = vmatpush1.bf16.msra.mxu0 %v874
      %941 = vmatprep.subr.bf16.mxu0 0
      %942 = vmatpush1.bf16.msra.mxu0 %v875
      %943 = vmatprep.subr.bf16.mxu0 0
      %944 = vmatpush1.bf16.msra.mxu0 %v876
      %945 = vmatprep.subr.bf16.mxu0 0
      %946 = vmatpush1.bf16.msra.mxu0 %v877
      %947 = vmatprep.subr.bf16.mxu0 0
      %948 = vmatpush1.bf16.msra.mxu0 %v878
      %949 = vmatprep.subr.bf16.mxu0 0
      %950 = vmatpush1.bf16.msra.mxu0 %v879
      %951 = vmatprep.subr.bf16.mxu0 0
      %952 = vmatpush1.bf16.msra.mxu0 %v880
      %953 = vmatprep.subr.bf16.mxu0 0
      %954 = vmatpush1.bf16.msra.mxu0 %v881
      %955 = vmatprep.subr.bf16.mxu0 0
      %956 = vmatpush1.bf16.msra.mxu0 %v882
      %957 = vmatprep.subr.bf16.mxu0 0
      %958 = vmatpush1.bf16.msra.mxu0 %v883
      %959 = vmatprep.subr.bf16.mxu0 0
      %960 = vmatpush1.bf16.msra.mxu0 %v884
      %961 = vmatprep.subr.bf16.mxu0 0
      %962 = vmatpush1.bf16.msra.mxu0 %v885
      %963 = vmatprep.subr.bf16.mxu0 0
      %964 = vmatpush1.bf16.msra.mxu0 %v886
      %965 = vmatprep.subr.bf16.mxu0 0
      %966 = vmatpush1.bf16.msra.mxu0 %v887
      %967 = vmatprep.subr.bf16.mxu0 0
      %968 = vmatpush1.bf16.msra.mxu0 %v888
      %969 = vmatprep.mubr.bf16.mxu0 %v618
      %970 = vmatmul.mubr.bf16.gmra.mrb[0].mxu0 %v617
      %v971 = vpop.f32.mrb[0].mxu0
      %v972 = vadd.f32 0.0, %v971
      %v973 = vpop.f32.mrb[0].mxu0
      %v974 = vpop.f32.mrb[0].mxu0
      %v975 = vadd.f32 0.0, %v974
      %v976 = vpop.f32.mrb[0].mxu0
      %977 = vmatprep.mubr.bf16.mxu0 %v622
      %978 = vmatmul.mubr.bf16.gmra.mrb[0].mxu0 %v621
      %v979 = vpop.f32.mrb[0].mxu0
      %v980 = vadd.f32 0.0, %v979
      %v981 = vpop.f32.mrb[0].mxu0
      %v982 = vpop.f32.mrb[0].mxu0
      %v983 = vadd.f32 0.0, %v982
      %v984 = vpop.f32.mrb[0].mxu0
      %985 = vmatprep.mubr.bf16.mxu0 %v626
      %986 = vmatmul.mubr.bf16.gmra.mrb[0].mxu0 %v625
      %v987 = vpop.f32.mrb[0].mxu0
      %v988 = vadd.f32 0.0, %v987
      %v989 = vpop.f32.mrb[0].mxu0
      %v990 = vpop.f32.mrb[0].mxu0
      %v991 = vadd.f32 0.0, %v990
      %v992 = vpop.f32.mrb[0].mxu0
      %993 = vmatprep.mubr.bf16.mxu0 %v630
      %994 = vmatmul.mubr.bf16.gmra.mrb[0].mxu0 %v629
      %v995 = vpop.f32.mrb[0].mxu0
      %v996 = vadd.f32 0.0, %v995
      %v997 = vpop.f32.mrb[0].mxu0
      %v998 = vpop.f32.mrb[0].mxu0
      %v999 = vadd.f32 0.0, %v998
      %v1000 = vpop.f32.mrb[0].mxu0
      %1001 = vmatprep.mubr.bf16.mxu0 %v634
      %1002 = vmatmul.mubr.bf16.gmra.mrb[0].mxu0 %v633
      %v1003 = vpop.f32.mrb[0].mxu0
      %v1004 = vadd.f32 0.0, %v1003
      %v1005 = vpop.f32.mrb[0].mxu0
      %v1006 = vpop.f32.mrb[0].mxu0
      %v1007 = vadd.f32 0.0, %v1006
      %v1008 = vpop.f32.mrb[0].mxu0
      %1009 = vmatprep.mubr.bf16.mxu0 %v638
      %1010 = vmatmul.mubr.bf16.gmra.mrb[0].mxu0 %v637
      %v1011 = vpop.f32.mrb[0].mxu0
      %v1012 = vadd.f32 0.0, %v1011
      %v1013 = vpop.f32.mrb[0].mxu0
      %v1014 = vpop.f32.mrb[0].mxu0
      %v1015 = vadd.f32 0.0, %v1014
      %v1016 = vpop.f32.mrb[0].mxu0
      %1017 = vmatprep.mubr.bf16.mxu0 %v642
      %1018 = vmatmul.mubr.bf16.gmra.mrb[0].mxu0 %v641
      %v1019 = vpop.f32.mrb[0].mxu0
      %v1020 = vadd.f32 0.0, %v1019
      %v1021 = vpop.f32.mrb[0].mxu0
      %v1022 = vpop.f32.mrb[0].mxu0
      %v1023 = vadd.f32 0.0, %v1022
      %v1024 = vpop.f32.mrb[0].mxu0
      %1025 = vmatprep.mubr.bf16.mxu0 %v646
      %1026 = vmatmul.mubr.bf16.gmra.mrb[0].mxu0 %v645
      %v1027 = vpop.f32.mrb[0].mxu0
      %v1028 = vadd.f32 0.0, %v1027
      %v1029 = vpop.f32.mrb[0].mxu0
      %v1030 = vpop.f32.mrb[0].mxu0
      %v1031 = vadd.f32 0.0, %v1030
      %v1032 = vpop.f32.mrb[0].mxu0
      %1033 = vmatprep.mubr.bf16.mxu0 %v650
      %1034 = vmatmul.mubr.bf16.gmra.mrb[0].mxu0 %v649
      %v1035 = vpop.f32.mrb[0].mxu0
      %v1036 = vadd.f32 0.0, %v1035
      %v1037 = vpop.f32.mrb[0].mxu0
      %v1038 = vpop.f32.mrb[0].mxu0
      %v1039 = vadd.f32 0.0, %v1038
      %v1040 = vpop.f32.mrb[0].mxu0
      %1041 = vmatprep.mubr.bf16.mxu0 %v654
      %1042 = vmatmul.mubr.bf16.gmra.mrb[0].mxu0 %v653
      %v1043 = vpop.f32.mrb[0].mxu0
      %v1044 = vadd.f32 0.0, %v1043
      %v1045 = vpop.f32.mrb[0].mxu0
      %v1046 = vpop.f32.mrb[0].mxu0
      %v1047 = vadd.f32 0.0, %v1046
      %v1048 = vpop.f32.mrb[0].mxu0
      %1049 = vmatprep.mubr.bf16.mxu0 %v658
      %1050 = vmatmul.mubr.bf16.gmra.mrb[0].mxu0 %v657
      %v1051 = vpop.f32.mrb[0].mxu0
      %v1052 = vadd.f32 0.0, %v1051
      %v1053 = vpop.f32.mrb[0].mxu0
      %v1054 = vpop.f32.mrb[0].mxu0
      %v1055 = vadd.f32 0.0, %v1054
      %v1056 = vpop.f32.mrb[0].mxu0
      %1057 = vmatprep.mubr.bf16.mxu0 %v662
      %1058 = vmatmul.mubr.bf16.gmra.mrb[0].mxu0 %v661
      %v1059 = vpop.f32.mrb[0].mxu0
      %v1060 = vadd.f32 0.0, %v1059
      %v1061 = vpop.f32.mrb[0].mxu0
      %v1062 = vpop.f32.mrb[0].mxu0
      %v1063 = vadd.f32 0.0, %v1062
      %v1064 = vpop.f32.mrb[0].mxu0
      %1065 = vmatprep.mubr.bf16.mxu0 %v666
      %1066 = vmatmul.mubr.bf16.gmra.mrb[0].mxu0 %v665
      %v1067 = vpop.f32.mrb[0].mxu0
      %v1068 = vadd.f32 0.0, %v1067
      %v1069 = vpop.f32.mrb[0].mxu0
      %v1070 = vpop.f32.mrb[0].mxu0
      %v1071 = vadd.f32 0.0, %v1070
      %v1072 = vpop.f32.mrb[0].mxu0
      %1073 = vmatprep.mubr.bf16.mxu0 %v670
      %1074 = vmatmul.mubr.bf16.gmra.mrb[0].mxu0 %v669
      %v1075 = vpop.f32.mrb[0].mxu0
      %v1076 = vadd.f32 0.0, %v1075
      %v1077 = vpop.f32.mrb[0].mxu0
      %v1078 = vpop.f32.mrb[0].mxu0
      %v1079 = vadd.f32 0.0, %v1078
      %v1080 = vpop.f32.mrb[0].mxu0
      %1081 = vmatprep.mubr.bf16.mxu0 %v674
      %1082 = vmatmul.mubr.bf16.gmra.mrb[0].mxu0 %v673
      %v1083 = vpop.f32.mrb[0].mxu0
      %v1084 = vadd.f32 0.0, %v1083
      %v1085 = vpop.f32.mrb[0].mxu0
      %v1086 = vpop.f32.mrb[0].mxu0
      %v1087 = vadd.f32 0.0, %v1086
      %v1088 = vpop.f32.mrb[0].mxu0
      %1089 = vmatprep.mubr.bf16.mxu0 %v678
      %1090 = vmatmul.mubr.bf16.gmra.mrb[0].mxu0 %v677
      %v1091 = vpop.f32.mrb[0].mxu0
      %v1092 = vadd.f32 0.0, %v1091
      %v1093 = vpop.f32.mrb[0].mxu0
      %v1094 = vpop.f32.mrb[0].mxu0
      %v1095 = vadd.f32 0.0, %v1094
      %v1096 = vpop.f32.mrb[0].mxu0
      %1097 = vdwg.mxu0
      %1098 = vmatprep.subr.bf16.mxu0 0
      %1099 = vmatpush1.bf16.msra.mxu0 %v889
      %1100 = vmatprep.subr.bf16.mxu0 0
      %1101 = vmatpush1.bf16.msra.mxu0 %v890
      %1102 = vmatprep.subr.bf16.mxu0 0
      %1103 = vmatpush1.bf16.msra.mxu0 %v891
      %1104 = vmatprep.subr.bf16.mxu0 0
      %1105 = vmatpush1.bf16.msra.mxu0 %v892
      %1106 = vmatprep.subr.bf16.mxu0 0
      %1107 = vmatpush1.bf16.msra.mxu0 %v893
      %1108 = vmatprep.subr.bf16.mxu0 0
      %1109 = vmatpush1.bf16.msra.mxu0 %v894
      %1110 = vmatprep.subr.bf16.mxu0 0
      %1111 = vmatpush1.bf16.msra.mxu0 %v895
      %1112 = vmatprep.subr.bf16.mxu0 0
      %1113 = vmatpush1.bf16.msra.mxu0 %v896
      %1114 = vmatprep.subr.bf16.mxu0 0
      %1115 = vmatpush1.bf16.msra.mxu0 %v897
      %1116 = vmatprep.subr.bf16.mxu0 0
      %1117 = vmatpush1.bf16.msra.mxu0 %v898
      %1118 = vmatprep.subr.bf16.mxu0 0
      %1119 = vmatpush1.bf16.msra.mxu0 %v899
      %1120 = vmatprep.subr.bf16.mxu0 0
      %1121 = vmatpush1.bf16.msra.mxu0 %v900
      %1122 = vmatprep.subr.bf16.mxu0 0
      %1123 = vmatpush1.bf16.msra.mxu0 %v901
      %1124 = vmatprep.subr.bf16.mxu0 0
      %1125 = vmatpush1.bf16.msra.mxu0 %v902
      %1126 = vmatprep.subr.bf16.mxu0 0
      %1127 = vmatpush1.bf16.msra.mxu0 %v903
      %1128 = vmatprep.subr.bf16.mxu0 0
      %1129 = vmatpush1.bf16.msra.mxu0 %v904
      %1130 = vmatprep.mubr.bf16.mxu0 %v620
      %1131 = vmatmul.mubr.bf16.gmra.mrb[0].mxu0 %v619
      %v1132 = vpop.f32.mrb[0].mxu0
      %v1133 = vadd.f32 %v972, %v1132
      %v1134 = vpop.f32.mrb[0].mxu0
      %v1135 = vpop.f32.mrb[0].mxu0
      %v1136 = vadd.f32 %v975, %v1135
      %v1137 = vpop.f32.mrb[0].mxu0
      %1138 = vmatprep.mubr.bf16.mxu0 %v624
      %1139 = vmatmul.mubr.bf16.gmra.mrb[0].mxu0 %v623
      %v1140 = vpop.f32.mrb[0].mxu0
      %v1141 = vadd.f32 %v980, %v1140
      %v1142 = vpop.f32.mrb[0].mxu0
      %v1143 = vpop.f32.mrb[0].mxu0
      %v1144 = vadd.f32 %v983, %v1143
      %v1145 = vpop.f32.mrb[0].mxu0
      %1146 = vmatprep.mubr.bf16.mxu0 %v628
      %1147 = vmatmul.mubr.bf16.gmra.mrb[0].mxu0 %v627
      %v1148 = vpop.f32.mrb[0].mxu0
      %v1149 = vadd.f32 %v988, %v1148
      %v1150 = vpop.f32.mrb[0].mxu0
      %v1151 = vpop.f32.mrb[0].mxu0
      %v1152 = vadd.f32 %v991, %v1151
      %v1153 = vpop.f32.mrb[0].mxu0
      %1154 = vmatprep.mubr.bf16.mxu0 %v632
      %1155 = vmatmul.mubr.bf16.gmra.mrb[0].mxu0 %v631
      %v1156 = vpop.f32.mrb[0].mxu0
      %v1157 = vadd.f32 %v996, %v1156
      %v1158 = vpop.f32.mrb[0].mxu0
      %v1159 = vpop.f32.mrb[0].mxu0
      %v1160 = vadd.f32 %v999, %v1159
      %v1161 = vpop.f32.mrb[0].mxu0
      %1162 = vmatprep.mubr.bf16.mxu0 %v636
      %1163 = vmatmul.mubr.bf16.gmra.mrb[0].mxu0 %v635
      %v1164 = vpop.f32.mrb[0].mxu0
      %v1165 = vadd.f32 %v1004, %v1164
      %v1166 = vpop.f32.mrb[0].mxu0
      %v1167 = vpop.f32.mrb[0].mxu0
      %v1168 = vadd.f32 %v1007, %v1167
      %v1169 = vpop.f32.mrb[0].mxu0
      %1170 = vmatprep.mubr.bf16.mxu0 %v640
      %1171 = vmatmul.mubr.bf16.gmra.mrb[0].mxu0 %v639
      %v1172 = vpop.f32.mrb[0].mxu0
      %v1173 = vadd.f32 %v1012, %v1172
      %v1174 = vpop.f32.mrb[0].mxu0
      %v1175 = vpop.f32.mrb[0].mxu0
      %v1176 = vadd.f32 %v1015, %v1175
      %v1177 = vpop.f32.mrb[0].mxu0
      %1178 = vmatprep.mubr.bf16.mxu0 %v644
      %1179 = vmatmul.mubr.bf16.gmra.mrb[0].mxu0 %v643
      %v1180 = vpop.f32.mrb[0].mxu0
      %v1181 = vadd.f32 %v1020, %v1180
      %v1182 = vpop.f32.mrb[0].mxu0
      %v1183 = vpop.f32.mrb[0].mxu0
      %v1184 = vadd.f32 %v1023, %v1183
      %v1185 = vpop.f32.mrb[0].mxu0
      %1186 = vmatprep.mubr.bf16.mxu0 %v648
      %1187 = vmatmul.mubr.bf16.gmra.mrb[0].mxu0 %v647
      %v1188 = vpop.f32.mrb[0].mxu0
      %v1189 = vadd.f32 %v1028, %v1188
      %v1190 = vpop.f32.mrb[0].mxu0
      %v1191 = vpop.f32.mrb[0].mxu0
      %v1192 = vadd.f32 %v1031, %v1191
      %v1193 = vpop.f32.mrb[0].mxu0
      %1194 = vmatprep.mubr.bf16.mxu0 %v652
      %1195 = vmatmul.mubr.bf16.gmra.mrb[0].mxu0 %v651
      %v1196 = vpop.f32.mrb[0].mxu0
      %v1197 = vadd.f32 %v1036, %v1196
      %v1198 = vpop.f32.mrb[0].mxu0
      %v1199 = vpop.f32.mrb[0].mxu0
      %v1200 = vadd.f32 %v1039, %v1199
      %v1201 = vpop.f32.mrb[0].mxu0
      %1202 = vmatprep.mubr.bf16.mxu0 %v656
      %1203 = vmatmul.mubr.bf16.gmra.mrb[0].mxu0 %v655
      %v1204 = vpop.f32.mrb[0].mxu0
      %v1205 = vadd.f32 %v1044, %v1204
      %v1206 = vpop.f32.mrb[0].mxu0
      %v1207 = vpop.f32.mrb[0].mxu0
      %v1208 = vadd.f32 %v1047, %v1207
      %v1209 = vpop.f32.mrb[0].mxu0
      %1210 = vmatprep.mubr.bf16.mxu0 %v660
      %1211 = vmatmul.mubr.bf16.gmra.mrb[0].mxu0 %v659
      %v1212 = vpop.f32.mrb[0].mxu0
      %v1213 = vadd.f32 %v1052, %v1212
      %v1214 = vpop.f32.mrb[0].mxu0
      %v1215 = vpop.f32.mrb[0].mxu0
      %v1216 = vadd.f32 %v1055, %v1215
      %v1217 = vpop.f32.mrb[0].mxu0
      %1218 = vmatprep.mubr.bf16.mxu0 %v664
      %1219 = vmatmul.mubr.bf16.gmra.mrb[0].mxu0 %v663
      %v1220 = vpop.f32.mrb[0].mxu0
      %v1221 = vadd.f32 %v1060, %v1220
      %v1222 = vpop.f32.mrb[0].mxu0
      %v1223 = vpop.f32.mrb[0].mxu0
      %v1224 = vadd.f32 %v1063, %v1223
      %v1225 = vpop.f32.mrb[0].mxu0
      %1226 = vmatprep.mubr.bf16.mxu0 %v668
      %1227 = vmatmul.mubr.bf16.gmra.mrb[0].mxu0 %v667
      %v1228 = vpop.f32.mrb[0].mxu0
      %v1229 = vadd.f32 %v1068, %v1228
      %v1230 = vpop.f32.mrb[0].mxu0
      %v1231 = vpop.f32.mrb[0].mxu0
      %v1232 = vadd.f32 %v1071, %v1231
      %v1233 = vpop.f32.mrb[0].mxu0
      %1234 = vmatprep.mubr.bf16.mxu0 %v672
      %1235 = vmatmul.mubr.bf16.gmra.mrb[0].mxu0 %v671
      %v1236 = vpop.f32.mrb[0].mxu0
      %v1237 = vadd.f32 %v1076, %v1236
      %v1238 = vpop.f32.mrb[0].mxu0
      %v1239 = vpop.f32.mrb[0].mxu0
      %v1240 = vadd.f32 %v1079, %v1239
      %v1241 = vpop.f32.mrb[0].mxu0
      %1242 = vmatprep.mubr.bf16.mxu0 %v676
      %1243 = vmatmul.mubr.bf16.gmra.mrb[0].mxu0 %v675
      %v1244 = vpop.f32.mrb[0].mxu0
      %v1245 = vadd.f32 %v1084, %v1244
      %v1246 = vpop.f32.mrb[0].mxu0
      %v1247 = vpop.f32.mrb[0].mxu0
      %v1248 = vadd.f32 %v1087, %v1247
      %v1249 = vpop.f32.mrb[0].mxu0
      %1250 = vmatprep.mubr.bf16.mxu0 %v680
      %1251 = vmatmul.mubr.bf16.gmra.mrb[0].mxu0 %v679
      %v1252 = vpop.f32.mrb[0].mxu0
      %v1253 = vadd.f32 %v1092, %v1252
      %v1254 = vpop.f32.mrb[0].mxu0
      %v1255 = vpop.f32.mrb[0].mxu0
      %v1256 = vadd.f32 %v1095, %v1255
      %v1257 = vpop.f32.mrb[0].mxu0
      %1258 = vdwg.mxu0
      %v1259 = vadd.f32 %v265, %v1133
      %v1260 = vadd.f32 %v266, %v1136
      %v1261 = vadd.f32 %v267, %v1141
      %v1262 = vadd.f32 %v268, %v1144
      %v1263 = vadd.f32 %v269, %v1149
      %v1264 = vadd.f32 %v270, %v1152
      %v1265 = vadd.f32 %v271, %v1157
      %v1266 = vadd.f32 %v272, %v1160
      %v1267 = vadd.f32 %v273, %v1165
      %v1268 = vadd.f32 %v274, %v1168
      %v1269 = vadd.f32 %v275, %v1173
      %v1270 = vadd.f32 %v276, %v1176
      %v1271 = vadd.f32 %v277, %v1181
      %v1272 = vadd.f32 %v278, %v1184
      %v1273 = vadd.f32 %v279, %v1189
      %v1274 = vadd.f32 %v280, %v1192
      %v1275 = vadd.f32 %v281, %v1197
      %v1276 = vadd.f32 %v282, %v1200
      %v1277 = vadd.f32 %v283, %v1205
      %v1278 = vadd.f32 %v284, %v1208
      %v1279 = vadd.f32 %v285, %v1213
      %v1280 = vadd.f32 %v286, %v1216
      %v1281 = vadd.f32 %v287, %v1221
      %v1282 = vadd.f32 %v288, %v1224
      %v1283 = vadd.f32 %v289, %v1229
      %v1284 = vadd.f32 %v290, %v1232
      %v1285 = vadd.f32 %v291, %v1237
      %v1286 = vadd.f32 %v292, %v1240
      %v1287 = vadd.f32 %v293, %v1245
      %v1288 = vadd.f32 %v294, %v1248
      %v1289 = vadd.f32 %v295, %v1253
      %v1290 = vadd.f32 %v296, %v1256
      %vm1291 = vcmask 130048
      %1292 = vst.msk [vmem:[#allocation2] sm:$0xff] %vm1291, %v1259
      %1293 = vst.msk [vmem:[#allocation2 + $0x8] sm:$0xff] %vm1291, %v1260
      %1294 = vst.msk [vmem:[#allocation2 + $0x10] sm:$0xff] %vm1291, %v1261
      %1295 = vst.msk [vmem:[#allocation2 + $0x18] sm:$0xff] %vm1291, %v1262
      %1296 = vst.msk [vmem:[#allocation2 + $0x20] sm:$0xff] %vm1291, %v1263
      %1297 = vst.msk [vmem:[#allocation2 + $0x28] sm:$0xff] %vm1291, %v1264
      %1298 = vst.msk [vmem:[#allocation2 + $0x30] sm:$0xff] %vm1291, %v1265
      %1299 = vst.msk [vmem:[#allocation2 + $0x38] sm:$0xff] %vm1291, %v1266
      %1300 = vst.msk [vmem:[#allocation2 + $0x40] sm:$0xff] %vm1291, %v1267
      %1301 = vst.msk [vmem:[#allocation2 + $0x48] sm:$0xff] %vm1291, %v1268
      %1302 = vst.msk [vmem:[#allocation2 + $0x50] sm:$0xff] %vm1291, %v1269
      %1303 = vst.msk [vmem:[#allocation2 + $0x58] sm:$0xff] %vm1291, %v1270
      %1304 = vst.msk [vmem:[#allocation2 + $0x60] sm:$0xff] %vm1291, %v1271
      %1305 = vst.msk [vmem:[#allocation2 + $0x68] sm:$0xff] %vm1291, %v1272
      %1306 = vst.msk [vmem:[#allocation2 + $0x70] sm:$0xff] %vm1291, %v1273
      %1307 = vst.msk [vmem:[#allocation2 + $0x78] sm:$0xff] %vm1291, %v1274
      %1308 = vst.msk [vmem:[#allocation2 + $0x80] sm:$0xff] %vm1291, %v1275
      %1309 = vst.msk [vmem:[#allocation2 + $0x88] sm:$0xff] %vm1291, %v1276
      %1310 = vst.msk [vmem:[#allocation2 + $0x90] sm:$0xff] %vm1291, %v1277
      %1311 = vst.msk [vmem:[#allocation2 + $0x98] sm:$0xff] %vm1291, %v1278
      %1312 = vst.msk [vmem:[#allocation2 + $0xa0] sm:$0xff] %vm1291, %v1279
      %1313 = vst.msk [vmem:[#allocation2 + $0xa8] sm:$0xff] %vm1291, %v1280
      %1314 = vst.msk [vmem:[#allocation2 + $0xb0] sm:$0xff] %vm1291, %v1281
      %1315 = vst.msk [vmem:[#allocation2 + $0xb8] sm:$0xff] %vm1291, %v1282
      %1316 = vst.msk [vmem:[#allocation2 + $0xc0] sm:$0xff] %vm1291, %v1283
      %1317 = vst.msk [vmem:[#allocation2 + $0xc8] sm:$0xff] %vm1291, %v1284
      %1318 = vst.msk [vmem:[#allocation2 + $0xd0] sm:$0xff] %vm1291, %v1285
      %1319 = vst.msk [vmem:[#allocation2 + $0xd8] sm:$0xff] %vm1291, %v1286
      %1320 = vst.msk [vmem:[#allocation2 + $0xe0] sm:$0xff] %vm1291, %v1287
      %1321 = vst.msk [vmem:[#allocation2 + $0xe8] sm:$0xff] %vm1291, %v1288
      %1322 = vst.msk [vmem:[#allocation2 + $0xf0] sm:$0xff] %vm1291, %v1289
      %1323 = vst.msk [vmem:[#allocation2 + $0xf8] sm:$0xff] %vm1291, %v1290
      // Predicated region
      $region37: #{gcn_forward.4} parent=31 // pred_check
        %p1324 = pneg %p228
      $region38: #{gcn_forward.4} parent=31 // pred_check_branch
        %1326 = sbr.rel (%p1324) target = $region40
      $region39: #{gcn_forward.4} parent=31 // pred_region
        %v1327 = vld [vmem:[#allocation2] sm:$0xff]
        %v1328 = vld [vmem:[#allocation2 + $0x8] sm:$0xff]
        %v1329 = vld [vmem:[#allocation2 + $0x10] sm:$0xff]
        %v1330 = vld [vmem:[#allocation2 + $0x18] sm:$0xff]
        %v1331 = vld [vmem:[#allocation2 + $0x20] sm:$0xff]
        %v1332 = vld [vmem:[#allocation2 + $0x28] sm:$0xff]
        %v1333 = vld [vmem:[#allocation2 + $0x30] sm:$0xff]
        %v1334 = vld [vmem:[#allocation2 + $0x38] sm:$0xff]
        %v1335 = vld [vmem:[#allocation2 + $0x40] sm:$0xff]
        %v1336 = vld [vmem:[#allocation2 + $0x48] sm:$0xff]
        %v1337 = vld [vmem:[#allocation2 + $0x50] sm:$0xff]
        %v1338 = vld [vmem:[#allocation2 + $0x58] sm:$0xff]
        %v1339 = vld [vmem:[#allocation2 + $0x60] sm:$0xff]
        %v1340 = vld [vmem:[#allocation2 + $0x68] sm:$0xff]
        %v1341 = vld [vmem:[#allocation2 + $0x70] sm:$0xff]
        %v1342 = vld [vmem:[#allocation2 + $0x78] sm:$0xff]
        %v1343 = vld [vmem:[#allocation2 + $0x80] sm:$0xff]
        %v1344 = vld [vmem:[#allocation2 + $0x88] sm:$0xff]
        %v1345 = vld [vmem:[#allocation2 + $0x90] sm:$0xff]
        %v1346 = vld [vmem:[#allocation2 + $0x98] sm:$0xff]
        %v1347 = vld [vmem:[#allocation2 + $0xa0] sm:$0xff]
        %v1348 = vld [vmem:[#allocation2 + $0xa8] sm:$0xff]
        %v1349 = vld [vmem:[#allocation2 + $0xb0] sm:$0xff]
        %v1350 = vld [vmem:[#allocation2 + $0xb8] sm:$0xff]
        %v1351 = vld [vmem:[#allocation2 + $0xc0] sm:$0xff]
        %v1352 = vld [vmem:[#allocation2 + $0xc8] sm:$0xff]
        %v1353 = vld [vmem:[#allocation2 + $0xd0] sm:$0xff]
        %v1354 = vld [vmem:[#allocation2 + $0xd8] sm:$0xff]
        %v1355 = vld [vmem:[#allocation2 + $0xe0] sm:$0xff]
        %v1356 = vld [vmem:[#allocation2 + $0xe8] sm:$0xff]
        %v1357 = vld [vmem:[#allocation2 + $0xf0] sm:$0xff]
        %v1358 = vld [vmem:[#allocation2 + $0xf8] sm:$0xff]
        %v1359 = vld [vmem:[%s2] sm:$0x1]
        %v1361 = vlaneseq
        %v1362 = vshrl.u32 %v1361, 7
        %v1363 = vsub.s32 0, %v1362
        %v1364 = vrot.slane %v1359, %v1363
        %v1366 = vadd.f32 %v1327, %v1364
        %v1367 = vadd.f32 %v1328, %v1364
        %v1368 = vadd.f32 %v1329, %v1364
        %v1369 = vadd.f32 %v1330, %v1364
        %v1370 = vadd.f32 %v1331, %v1364
        %v1371 = vadd.f32 %v1332, %v1364
        %v1372 = vadd.f32 %v1333, %v1364
        %v1373 = vadd.f32 %v1334, %v1364
        %v1374 = vadd.f32 %v1335, %v1364
        %v1375 = vadd.f32 %v1336, %v1364
        %v1376 = vadd.f32 %v1337, %v1364
        %v1377 = vadd.f32 %v1338, %v1364
        %v1378 = vadd.f32 %v1339, %v1364
        %v1379 = vadd.f32 %v1340, %v1364
        %v1380 = vadd.f32 %v1341, %v1364
        %v1381 = vadd.f32 %v1342, %v1364
        %v1382 = vadd.f32 %v1343, %v1364
        %v1383 = vadd.f32 %v1344, %v1364
        %v1384 = vadd.f32 %v1345, %v1364
        %v1385 = vadd.f32 %v1346, %v1364
        %v1386 = vadd.f32 %v1347, %v1364
        %v1387 = vadd.f32 %v1348, %v1364
        %v1388 = vadd.f32 %v1349, %v1364
        %v1389 = vadd.f32 %v1350, %v1364
        %v1390 = vadd.f32 %v1351, %v1364
        %v1391 = vadd.f32 %v1352, %v1364
        %v1392 = vadd.f32 %v1353, %v1364
        %v1393 = vadd.f32 %v1354, %v1364
        %v1394 = vadd.f32 %v1355, %v1364
        %v1395 = vadd.f32 %v1356, %v1364
        %v1396 = vadd.f32 %v1357, %v1364
        %v1397 = vadd.f32 %v1358, %v1364
        %v1398 = vmax.f32 %v1366, 0.0
        %v1399 = vmax.f32 %v1367, 0.0
        %v1400 = vmax.f32 %v1368, 0.0
        %v1401 = vmax.f32 %v1369, 0.0
        %v1402 = vmax.f32 %v1370, 0.0
        %v1403 = vmax.f32 %v1371, 0.0
        %v1404 = vmax.f32 %v1372, 0.0
        %v1405 = vmax.f32 %v1373, 0.0
        %v1406 = vmax.f32 %v1374, 0.0
        %v1407 = vmax.f32 %v1375, 0.0
        %v1408 = vmax.f32 %v1376, 0.0
        %v1409 = vmax.f32 %v1377, 0.0
        %v1410 = vmax.f32 %v1378, 0.0
        %v1411 = vmax.f32 %v1379, 0.0
        %v1412 = vmax.f32 %v1380, 0.0
        %v1413 = vmax.f32 %v1381, 0.0
        %v1414 = vmax.f32 %v1382, 0.0
        %v1415 = vmax.f32 %v1383, 0.0
        %v1416 = vmax.f32 %v1384, 0.0
        %v1417 = vmax.f32 %v1385, 0.0
        %v1418 = vmax.f32 %v1386, 0.0
        %v1419 = vmax.f32 %v1387, 0.0
        %v1420 = vmax.f32 %v1388, 0.0
        %v1421 = vmax.f32 %v1389, 0.0
        %v1422 = vmax.f32 %v1390, 0.0
        %v1423 = vmax.f32 %v1391, 0.0
        %v1424 = vmax.f32 %v1392, 0.0
        %v1425 = vmax.f32 %v1393, 0.0
        %v1426 = vmax.f32 %v1394, 0.0
        %v1427 = vmax.f32 %v1395, 0.0
        %v1428 = vmax.f32 %v1396, 0.0
        %v1429 = vmax.f32 %v1397, 0.0
        %v1430 = vpack.c.bf16 %v1399, %v1398
        %v1431 = vpack.c.bf16 %v1401, %v1400
        %v1432 = vpack.c.bf16 %v1403, %v1402
        %v1433 = vpack.c.bf16 %v1405, %v1404
        %v1434 = vpack.c.bf16 %v1407, %v1406
        %v1435 = vpack.c.bf16 %v1409, %v1408
        %v1436 = vpack.c.bf16 %v1411, %v1410
        %v1437 = vpack.c.bf16 %v1413, %v1412
        %v1438 = vpack.c.bf16 %v1415, %v1414
        %v1439 = vpack.c.bf16 %v1417, %v1416
        %v1440 = vpack.c.bf16 %v1419, %v1418
        %v1441 = vpack.c.bf16 %v1421, %v1420
        %v1442 = vpack.c.bf16 %v1423, %v1422
        %v1443 = vpack.c.bf16 %v1425, %v1424
        %v1444 = vpack.c.bf16 %v1427, %v1426
        %v1445 = vpack.c.bf16 %v1429, %v1428
        %v1462 = vunpack.c.l.b16 %v1430
        %v1463 = vunpack.c.h.b16 %v1430
        %v1464 = vunpack.c.l.b16 %v1431
        %v1465 = vunpack.c.h.b16 %v1431
        %v1466 = vunpack.c.l.b16 %v1432
        %v1467 = vunpack.c.h.b16 %v1432
        %v1468 = vunpack.c.l.b16 %v1433
        %v1469 = vunpack.c.h.b16 %v1433
        %v1470 = vunpack.c.l.b16 %v1434
        %v1471 = vunpack.c.h.b16 %v1434
        %v1472 = vunpack.c.l.b16 %v1435
        %v1473 = vunpack.c.h.b16 %v1435
        %v1474 = vunpack.c.l.b16 %v1436
        %v1475 = vunpack.c.h.b16 %v1436
        %v1476 = vunpack.c.l.b16 %v1437
        %v1477 = vunpack.c.h.b16 %v1437
        %v1478 = vunpack.c.l.b16 %v1438
        %v1479 = vunpack.c.h.b16 %v1438
        %v1480 = vunpack.c.l.b16 %v1439
        %v1481 = vunpack.c.h.b16 %v1439
        %v1482 = vunpack.c.l.b16 %v1440
        %v1483 = vunpack.c.h.b16 %v1440
        %v1484 = vunpack.c.l.b16 %v1441
        %v1485 = vunpack.c.h.b16 %v1441
        %v1486 = vunpack.c.l.b16 %v1442
        %v1487 = vunpack.c.h.b16 %v1442
        %v1488 = vunpack.c.l.b16 %v1443
        %v1489 = vunpack.c.h.b16 %v1443
        %v1490 = vunpack.c.l.b16 %v1444
        %v1491 = vunpack.c.h.b16 %v1444
        %v1492 = vunpack.c.l.b16 %v1445
        %v1493 = vunpack.c.h.b16 %v1445
        %v1494 = vpack.c.b16 %v1462, %v1462
        %v1495 = vpack.c.b16 %v1463, %v1463
        %v1496 = vpack.c.b16 %v1464, %v1464
        %v1497 = vpack.c.b16 %v1465, %v1465
        %v1498 = vpack.c.b16 %v1466, %v1466
        %v1499 = vpack.c.b16 %v1467, %v1467
        %v1500 = vpack.c.b16 %v1468, %v1468
        %v1501 = vpack.c.b16 %v1469, %v1469
        %v1502 = vpack.c.b16 %v1470, %v1470
        %v1503 = vpack.c.b16 %v1471, %v1471
        %v1504 = vpack.c.b16 %v1472, %v1472
        %v1505 = vpack.c.b16 %v1473, %v1473
        %v1506 = vpack.c.b16 %v1474, %v1474
        %v1507 = vpack.c.b16 %v1475, %v1475
        %v1508 = vpack.c.b16 %v1476, %v1476
        %v1509 = vpack.c.b16 %v1477, %v1477
        %v1510 = vpack.c.b16 %v1478, %v1478
        %v1511 = vpack.c.b16 %v1479, %v1479
        %v1512 = vpack.c.b16 %v1480, %v1480
        %v1513 = vpack.c.b16 %v1481, %v1481
        %v1514 = vpack.c.b16 %v1482, %v1482
        %v1515 = vpack.c.b16 %v1483, %v1483
        %v1516 = vpack.c.b16 %v1484, %v1484
        %v1517 = vpack.c.b16 %v1485, %v1485
        %v1518 = vpack.c.b16 %v1486, %v1486
        %v1519 = vpack.c.b16 %v1487, %v1487
        %v1520 = vpack.c.b16 %v1488, %v1488
        %v1521 = vpack.c.b16 %v1489, %v1489
        %v1522 = vpack.c.b16 %v1490, %v1490
        %v1523 = vpack.c.b16 %v1491, %v1491
        %v1524 = vpack.c.b16 %v1492, %v1492
        %v1525 = vpack.c.b16 %v1493, %v1493
        %vm1558 = vcmask 125952
        %1559 = vst.msk [vmem:[%s225] sm:$0xf] %vm1558, %v1494
        %1560 = vst.msk [vmem:[%s225 + $0x4] sm:$0xf] %vm1558, %v1495
        %1561 = vst.msk [vmem:[%s225 + $0x8] sm:$0xf] %vm1558, %v1496
        %1562 = vst.msk [vmem:[%s225 + $0xc] sm:$0xf] %vm1558, %v1497
        %1563 = vst.msk [vmem:[%s225 + $0x10] sm:$0xf] %vm1558, %v1498
        %1564 = vst.msk [vmem:[%s225 + $0x14] sm:$0xf] %vm1558, %v1499
        %1565 = vst.msk [vmem:[%s225 + $0x18] sm:$0xf] %vm1558, %v1500
        %1566 = vst.msk [vmem:[%s225 + $0x1c] sm:$0xf] %vm1558, %v1501
        %1567 = vst.msk [vmem:[%s225 + $0x20] sm:$0xf] %vm1558, %v1502
        %1568 = vst.msk [vmem:[%s225 + $0x24] sm:$0xf] %vm1558, %v1503
        %1569 = vst.msk [vmem:[%s225 + $0x28] sm:$0xf] %vm1558, %v1504
        %1570 = vst.msk [vmem:[%s225 + $0x2c] sm:$0xf] %vm1558, %v1505
        %1571 = vst.msk [vmem:[%s225 + $0x30] sm:$0xf] %vm1558, %v1506
        %1572 = vst.msk [vmem:[%s225 + $0x34] sm:$0xf] %vm1558, %v1507
        %1573 = vst.msk [vmem:[%s225 + $0x38] sm:$0xf] %vm1558, %v1508
        %1574 = vst.msk [vmem:[%s225 + $0x3c] sm:$0xf] %vm1558, %v1509
        %1575 = vst.msk [vmem:[%s225 + $0x40] sm:$0xf] %vm1558, %v1510
        %1576 = vst.msk [vmem:[%s225 + $0x44] sm:$0xf] %vm1558, %v1511
        %1577 = vst.msk [vmem:[%s225 + $0x48] sm:$0xf] %vm1558, %v1512
        %1578 = vst.msk [vmem:[%s225 + $0x4c] sm:$0xf] %vm1558, %v1513
        %1579 = vst.msk [vmem:[%s225 + $0x50] sm:$0xf] %vm1558, %v1514
        %1580 = vst.msk [vmem:[%s225 + $0x54] sm:$0xf] %vm1558, %v1515
        %1581 = vst.msk [vmem:[%s225 + $0x58] sm:$0xf] %vm1558, %v1516
        %1582 = vst.msk [vmem:[%s225 + $0x5c] sm:$0xf] %vm1558, %v1517
        %1583 = vst.msk [vmem:[%s225 + $0x60] sm:$0xf] %vm1558, %v1518
        %1584 = vst.msk [vmem:[%s225 + $0x64] sm:$0xf] %vm1558, %v1519
        %1585 = vst.msk [vmem:[%s225 + $0x68] sm:$0xf] %vm1558, %v1520
        %1586 = vst.msk [vmem:[%s225 + $0x6c] sm:$0xf] %vm1558, %v1521
        %1587 = vst.msk [vmem:[%s225 + $0x70] sm:$0xf] %vm1558, %v1522
        %1588 = vst.msk [vmem:[%s225 + $0x74] sm:$0xf] %vm1558, %v1523
        %1589 = vst.msk [vmem:[%s225 + $0x78] sm:$0xf] %vm1558, %v1524
        %1590 = vst.msk [vmem:[%s225 + $0x7c] sm:$0xf] %vm1558, %v1525
      $region40: #{gcn_forward.4} parent=31 // pred_fallthru
        _
      %s1591 = smul.u32 32, %s18
      %p1592 = scmp.lt.s32.totalorder %s1591, 63
      %s1593 = scalar_select %p1592, %s1591, 63
      %s1594 = smul.addr %s1593, 4
      %s1595 = scalar_lea.vmem %s3, %s1594
      // Predicated region
      $region41: #{gcn_forward.4} parent=31 // pred_check
        %p1596 = pneg %p119
      $region42: #{gcn_forward.4} parent=31 // pred_check_branch
        %1598 = sbr.rel (%p1596) target = $region44
      $region43: #{gcn_forward.4} parent=31 // pred_region
        %s1599 = smul.u32 32, %s18
      $region44: #{gcn_forward.4} parent=31 // pred_fallthru
        _
    $region32: #{gcn_forward.4} parent=5 // pred_fallthru
      _
    %p1600 = scmp.le.s32.totalorder 2, %s9
    // Predicated region
    $region45: #{gcn_forward.4} parent=5 // pred_check
      %p1601 = pneg %p1600
    $region46: #{gcn_forward.4} parent=5 // pred_check_branch
      %1603 = sbr.rel (%p1601) target = $region48
    $region47: #{gcn_forward.4} parent=5 // pred_region
      %s1604 = ssub.s32 %s9, 2
      // Predicated region
      $region49: #{gcn_forward.4} parent=47 // pred_check
        %p1605 = pneg %p125
      $region50: #{gcn_forward.4} parent=47 // pred_check_branch
        %1607 = sbr.rel (%p1605) target = $region52
      $region51: #{gcn_forward.4} parent=47 // pred_region
        %s1608 = smul.u32 32, %s20
        %p1609 = scmp.lt.s32.totalorder %s1608, 63
        %s1610 = scalar_select %p1609, %s1608, 63
        %s1611 = smul.addr %s1610, 4
        %s1612 = scalar_lea.vmem %s3, %s1611
      $region52: #{gcn_forward.4} parent=47 // pred_fallthru
        _
    $region48: #{gcn_forward.4} parent=5 // pred_fallthru
      _
  $region6: #{gcn_forward.4} parent=0 // loop_footer
    %s13 = sadd.s32 1, %s9
  $region7: #{gcn_forward.4} parent=0 // loop_footer_branch
    %8 = sbr.rel target = $region3
  $region8: #{gcn_forward.4} parent=0 // loop_exit
    _

// kernel: gcn_forward.5
$region0: #{gcn_forward.5}
  #allocation0 [shape = 'u32[]', space=smem, size = 0x4, offset = 0x4, fixed_abs, tag = 'smem constant byte address 0x4 - core index']
  #allocation1 [shape = 'u32[144,128]{1,0:T(1,128)}', space=vmem, size = 0x12000, scoped, tag = 'internal scratch']
  #allocation2 [shape = 'f32[16,16]{1,0:T(8,128)}', space=vmem, size = 0x2000, scoped, tag = 'scratch operand']
  %s0 = inlined_call_operand.vmem [shape: bf16[16,512], index: 0, kind: input, shape index: {}]
  %s1 = inlined_call_operand.vmem [shape: f32[16,512], index: 1, kind: input, shape index: {}]
  %s2 = inlined_call_operand.vmem [shape: f32[16,10], index: 2, kind: input, shape index: {}]
  %s3 = inlined_call_operand.vmem [shape: f32[1,10], index: 3, kind: input, shape index: {}]
  %s4 = inlined_call_operand.hbm [shape: f32[16,10], index: 4, kind: output, shape index: {}]
  %s5 = sld [smem:[#allocation0]]
  $region34: #{gcn_forward.5} parent=0
    _
  %s7 = ssub.s32 1, %s5
  %s8 = scalar_select 0, %s7, %s5
  $region1: #{gcn_forward.5} parent=0
    #allocation3 [shape = 'u8[8192]{0}', space=vmem, size = 0x2000, scoped, tag = 'output window, operand 0, single buffered']
    #allocation4 [shape = 's32[1]{0}', space=sflag, size = 0x4, scoped, tag = 'scoped memory for gcn_forward.5']
    %9 = vsyncpa [#allocation4], 0
    // Predicated region
    $region2: #{gcn_forward.5} parent=1 // pred_check
      _
    $region3: #{gcn_forward.5} parent=1 // pred_check_branch
      %11 = sbr.rel (0) target = $region5
    $region4: #{gcn_forward.5} parent=1 // pred_region
      _
    $region5: #{gcn_forward.5} parent=1 // pred_fallthru
      _
    // Predicated region
    $region6: #{gcn_forward.5} parent=1 // pred_check
      _
    $region7: #{gcn_forward.5} parent=1 // pred_check_branch
      %13 = sbr.rel (0) target = $region9
    $region8: #{gcn_forward.5} parent=1 // pred_region
      _
    $region9: #{gcn_forward.5} parent=1 // pred_fallthru
      _
    // Predicated region
    $region10: #{gcn_forward.5} parent=1 // pred_check
      _
    $region11: #{gcn_forward.5} parent=1 // pred_check_branch
      %15 = sbr.rel (0) target = $region13
    $region12: #{gcn_forward.5} parent=1 // pred_region
      _
    $region13: #{gcn_forward.5} parent=1 // pred_fallthru
      _
    // Predicated region
    $region14: #{gcn_forward.5} parent=1 // pred_check
      _
    $region15: #{gcn_forward.5} parent=1 // pred_check_branch
      %17 = sbr.rel (0) target = $region17
    $region16: #{gcn_forward.5} parent=1 // pred_region
      _
    $region17: #{gcn_forward.5} parent=1 // pred_fallthru
      _
    %p18 = scmp.eq.s32.totalorder 0, 0
    // Predicated region
    $region18: #{gcn_forward.5} parent=1 // pred_check
      %p19 = pneg %p18
    $region19: #{gcn_forward.5} parent=1 // pred_check_branch
      %21 = sbr.rel (%p19) target = $region21
    $region20: #{gcn_forward.5} parent=1 // pred_region
      %vm22 = vcmask 130048
      %23 = vst.msk [vmem:[#allocation2] sm:$0xff] %vm22, -1e+30
      %24 = vst.msk [vmem:[#allocation2 + $0x8] sm:$0xff] %vm22, -1e+30
    $region21: #{gcn_forward.5} parent=1 // pred_fallthru
      _
    %v25 = vld [vmem:[%s0] sm:$0xff]
    %v26 = vld [vmem:[%s0 + $0x8] sm:$0xff]
    %v27 = vld [vmem:[%s0 + $0x10] sm:$0xff]
    %v28 = vld [vmem:[%s0 + $0x18] sm:$0xff]
    %v29 = vunpack.c.l.bf16 %v25
    %v30 = vunpack.c.h.bf16 %v25
    %v31 = vunpack.c.l.bf16 %v26
    %v32 = vunpack.c.h.bf16 %v26
    %v33 = vunpack.c.l.bf16 %v27
    %v34 = vunpack.c.h.bf16 %v27
    %v35 = vunpack.c.l.bf16 %v28
    %v36 = vunpack.c.h.bf16 %v28
    %v37 = vld [vmem:[%s1] sm:$0xff]
    %v38 = vld [vmem:[%s1 + $0x8] sm:$0xff]
    %v39 = vld [vmem:[%s1 + $0x10] sm:$0xff]
    %v40 = vld [vmem:[%s1 + $0x18] sm:$0xff]
    %v41 = vld [vmem:[%s1 + $0x20] sm:$0xff]
    %v42 = vld [vmem:[%s1 + $0x28] sm:$0xff]
    %v43 = vld [vmem:[%s1 + $0x30] sm:$0xff]
    %v44 = vld [vmem:[%s1 + $0x38] sm:$0xff]
    %v53 = vcombine.low %v37, %v38
    %v54 = vcombine.high %v37, %v38
    %v55 = vcombine.low %v39, %v40
    %v56 = vcombine.high %v39, %v40
    %v58 = vunpack.c.l.s4 1966171168
    %v59 = vunpack.c.0.s8 %v58
    %v60 = vlaneseq
    %v61 = vshrl.u32 %v60, 7
    %v62 = vsub.s32 %v59, %v61
    %v63 = vrot.slane %v53, %v62
    %v65 = vunpack.c.l.s4 1966171168
    %v66 = vunpack.c.0.s8 %v65
    %v67 = vlaneseq
    %v68 = vshrl.u32 %v67, 7
    %v69 = vsub.s32 %v66, %v68
    %v70 = vrot.slane %v54, %v69
    %v72 = vunpack.c.l.s4 1966171168
    %v73 = vunpack.c.0.s8 %v72
    %v74 = vlaneseq
    %v75 = vshrl.u32 %v74, 7
    %v76 = vsub.s32 %v73, %v75
    %v77 = vrot.slane %v55, %v76
    %v79 = vunpack.c.l.s4 1966171168
    %v80 = vunpack.c.0.s8 %v79
    %v81 = vlaneseq
    %v82 = vshrl.u32 %v81, 7
    %v83 = vsub.s32 %v80, %v82
    %v84 = vrot.slane %v56, %v83
    %v85 = vcombine.low %v63, %v77
    %v86 = vcombine.high %v63, %v77
    %v87 = vcombine.low %v70, %v84
    %v88 = vcombine.high %v70, %v84
    %v90 = vunpack.c.l.s4 1966171168
    %v91 = vunpack.c.0.s8 %v90
    %v92 = vlaneseq
    %v93 = vshrl.u32 %v92, 7
    %v94 = vsub.s32 %v91, %v93
    %v95 = vrot.slane %v85, %v94
    %v97 = vunpack.c.l.s4 1966171168
    %v98 = vunpack.c.0.s8 %v97
    %v99 = vlaneseq
    %v100 = vshrl.u32 %v99, 7
    %v101 = vsub.s32 %v98, %v100
    %v102 = vrot.slane %v87, %v101
    %v104 = vunpack.c.l.s4 1966171168
    %v105 = vunpack.c.0.s8 %v104
    %v106 = vlaneseq
    %v107 = vshrl.u32 %v106, 7
    %v108 = vsub.s32 %v105, %v107
    %v109 = vrot.slane %v86, %v108
    %v111 = vunpack.c.l.s4 1966171168
    %v112 = vunpack.c.0.s8 %v111
    %v113 = vlaneseq
    %v114 = vshrl.u32 %v113, 7
    %v115 = vsub.s32 %v112, %v114
    %v116 = vrot.slane %v88, %v115
    %v117 = vcombine.high %v95, %v95
    %v118 = vcombine.high %v102, %v102
    %v119 = vcombine.high %v109, %v109
    %v120 = vcombine.high %v116, %v116
    %v121 = vcombine.low %v41, %v42
    %v122 = vcombine.high %v41, %v42
    %v123 = vcombine.low %v43, %v44
    %v124 = vcombine.high %v43, %v44
    %v126 = vunpack.c.l.s4 1966171168
    %v127 = vunpack.c.0.s8 %v126
    %v128 = vlaneseq
    %v129 = vshrl.u32 %v128, 7
    %v130 = vsub.s32 %v127, %v129
    %v131 = vrot.slane %v121, %v130
    %v133 = vunpack.c.l.s4 1966171168
    %v134 = vunpack.c.0.s8 %v133
    %v135 = vlaneseq
    %v136 = vshrl.u32 %v135, 7
    %v137 = vsub.s32 %v134, %v136
    %v138 = vrot.slane %v122, %v137
    %v140 = vunpack.c.l.s4 1966171168
    %v141 = vunpack.c.0.s8 %v140
    %v142 = vlaneseq
    %v143 = vshrl.u32 %v142, 7
    %v144 = vsub.s32 %v141, %v143
    %v145 = vrot.slane %v123, %v144
    %v147 = vunpack.c.l.s4 1966171168
    %v148 = vunpack.c.0.s8 %v147
    %v149 = vlaneseq
    %v150 = vshrl.u32 %v149, 7
    %v151 = vsub.s32 %v148, %v150
    %v152 = vrot.slane %v124, %v151
    %v153 = vcombine.low %v131, %v145
    %v154 = vcombine.high %v131, %v145
    %v155 = vcombine.low %v138, %v152
    %v156 = vcombine.high %v138, %v152
    %v158 = vunpack.c.l.s4 1966171168
    %v159 = vunpack.c.0.s8 %v158
    %v160 = vlaneseq
    %v161 = vshrl.u32 %v160, 7
    %v162 = vsub.s32 %v159, %v161
    %v163 = vrot.slane %v153, %v162
    %v165 = vunpack.c.l.s4 1966171168
    %v166 = vunpack.c.0.s8 %v165
    %v167 = vlaneseq
    %v168 = vshrl.u32 %v167, 7
    %v169 = vsub.s32 %v166, %v168
    %v170 = vrot.slane %v155, %v169
    %v172 = vunpack.c.l.s4 1966171168
    %v173 = vunpack.c.0.s8 %v172
    %v174 = vlaneseq
    %v175 = vshrl.u32 %v174, 7
    %v176 = vsub.s32 %v173, %v175
    %v177 = vrot.slane %v154, %v176
    %v179 = vunpack.c.l.s4 1966171168
    %v180 = vunpack.c.0.s8 %v179
    %v181 = vlaneseq
    %v182 = vshrl.u32 %v181, 7
    %v183 = vsub.s32 %v180, %v182
    %v184 = vrot.slane %v156, %v183
    %v185 = vcombine.high %v163, %v163
    %v186 = vcombine.high %v170, %v170
    %v187 = vcombine.high %v177, %v177
    %v188 = vcombine.high %v184, %v184
    %vm205 = vcmp.gt.f32.partialorder %v95, 0.0
    %vm206 = vcmp.gt.f32.partialorder %v109, 0.0
    %vm207 = vcmp.gt.f32.partialorder %v117, 0.0
    %vm208 = vcmp.gt.f32.partialorder %v119, 0.0
    %vm209 = vcmp.gt.f32.partialorder %v102, 0.0
    %vm210 = vcmp.gt.f32.partialorder %v116, 0.0
    %vm211 = vcmp.gt.f32.partialorder %v118, 0.0
    %vm212 = vcmp.gt.f32.partialorder %v120, 0.0
    %vm213 = vcmp.gt.f32.partialorder %v163, 0.0
    %vm214 = vcmp.gt.f32.partialorder %v177, 0.0
    %vm215 = vcmp.gt.f32.partialorder %v185, 0.0
    %vm216 = vcmp.gt.f32.partialorder %v187, 0.0
    %vm217 = vcmp.gt.f32.partialorder %v170, 0.0
    %vm218 = vcmp.gt.f32.partialorder %v184, 0.0
    %vm219 = vcmp.gt.f32.partialorder %v186, 0.0
    %vm220 = vcmp.gt.f32.partialorder %v188, 0.0
    %v221 = vsel %vm205, 1, 0
    %v222 = vsel %vm206, 1, 0
    %v223 = vsel %vm207, 1, 0
    %v224 = vsel %vm208, 1, 0
    %v225 = vsel %vm209, 1, 0
    %v226 = vsel %vm210, 1, 0
    %v227 = vsel %vm211, 1, 0
    %v228 = vsel %vm212, 1, 0
    %v229 = vsel %vm213, 1, 0
    %v230 = vsel %vm214, 1, 0
    %v231 = vsel %vm215, 1, 0
    %v232 = vsel %vm216, 1, 0
    %v233 = vsel %vm217, 1, 0
    %v234 = vsel %vm218, 1, 0
    %v235 = vsel %vm219, 1, 0
    %v236 = vsel %vm220, 1, 0
    %v237 = vlaneseq
    %v238 = vshrl.u32 %v237, 7
    %v239 = vsub.s32 0, %v238
    %v240 = vrot.slane %v221, %v239
    %v241 = vlaneseq
    %v242 = vshrl.u32 %v241, 7
    %v243 = vsub.s32 1, %v242
    %v244 = vrot.slane %v221, %v243
    %v245 = vlaneseq
    %v246 = vshrl.u32 %v245, 7
    %v247 = vsub.s32 2, %v246
    %v248 = vrot.slane %v221, %v247
    %v249 = vlaneseq
    %v250 = vshrl.u32 %v249, 7
    %v251 = vsub.s32 3, %v250
    %v252 = vrot.slane %v221, %v251
    %v253 = vlaneseq
    %v254 = vshrl.u32 %v253, 7
    %v255 = vsub.s32 0, %v254
    %v256 = vrot.slane %v222, %v255
    %v257 = vlaneseq
    %v258 = vshrl.u32 %v257, 7
    %v259 = vsub.s32 1, %v258
    %v260 = vrot.slane %v222, %v259
    %v261 = vlaneseq
    %v262 = vshrl.u32 %v261, 7
    %v263 = vsub.s32 2, %v262
    %v264 = vrot.slane %v222, %v263
    %v265 = vlaneseq
    %v266 = vshrl.u32 %v265, 7
    %v267 = vsub.s32 3, %v266
    %v268 = vrot.slane %v222, %v267
    %v269 = vlaneseq
    %v270 = vshrl.u32 %v269, 7
    %v271 = vsub.s32 0, %v270
    %v272 = vrot.slane %v223, %v271
    %v273 = vlaneseq
    %v274 = vshrl.u32 %v273, 7
    %v275 = vsub.s32 1, %v274
    %v276 = vrot.slane %v223, %v275
    %v277 = vlaneseq
    %v278 = vshrl.u32 %v277, 7
    %v279 = vsub.s32 2, %v278
    %v280 = vrot.slane %v223, %v279
    %v281 = vlaneseq
    %v282 = vshrl.u32 %v281, 7
    %v283 = vsub.s32 3, %v282
    %v284 = vrot.slane %v223, %v283
    %v285 = vlaneseq
    %v286 = vshrl.u32 %v285, 7
    %v287 = vsub.s32 0, %v286
    %v288 = vrot.slane %v224, %v287
    %v289 = vlaneseq
    %v290 = vshrl.u32 %v289, 7
    %v291 = vsub.s32 1, %v290
    %v292 = vrot.slane %v224, %v291
    %v293 = vlaneseq
    %v294 = vshrl.u32 %v293, 7
    %v295 = vsub.s32 2, %v294
    %v296 = vrot.slane %v224, %v295
    %v297 = vlaneseq
    %v298 = vshrl.u32 %v297, 7
    %v299 = vsub.s32 3, %v298
    %v300 = vrot.slane %v224, %v299
    %v301 = vlaneseq
    %v302 = vshrl.u32 %v301, 7
    %v303 = vsub.s32 0, %v302
    %v304 = vrot.slane %v225, %v303
    %v305 = vlaneseq
    %v306 = vshrl.u32 %v305, 7
    %v307 = vsub.s32 1, %v306
    %v308 = vrot.slane %v225, %v307
    %v309 = vlaneseq
    %v310 = vshrl.u32 %v309, 7
    %v311 = vsub.s32 2, %v310
    %v312 = vrot.slane %v225, %v311
    %v313 = vlaneseq
    %v314 = vshrl.u32 %v313, 7
    %v315 = vsub.s32 3, %v314
    %v316 = vrot.slane %v225, %v315
    %v317 = vlaneseq
    %v318 = vshrl.u32 %v317, 7
    %v319 = vsub.s32 0, %v318
    %v320 = vrot.slane %v226, %v319
    %v321 = vlaneseq
    %v322 = vshrl.u32 %v321, 7
    %v323 = vsub.s32 1, %v322
    %v324 = vrot.slane %v226, %v323
    %v325 = vlaneseq
    %v326 = vshrl.u32 %v325, 7
    %v327 = vsub.s32 2, %v326
    %v328 = vrot.slane %v226, %v327
    %v329 = vlaneseq
    %v330 = vshrl.u32 %v329, 7
    %v331 = vsub.s32 3, %v330
    %v332 = vrot.slane %v226, %v331
    %v333 = vlaneseq
    %v334 = vshrl.u32 %v333, 7
    %v335 = vsub.s32 0, %v334
    %v336 = vrot.slane %v227, %v335
    %v337 = vlaneseq
    %v338 = vshrl.u32 %v337, 7
    %v339 = vsub.s32 1, %v338
    %v340 = vrot.slane %v227, %v339
    %v341 = vlaneseq
    %v342 = vshrl.u32 %v341, 7
    %v343 = vsub.s32 2, %v342
    %v344 = vrot.slane %v227, %v343
    %v345 = vlaneseq
    %v346 = vshrl.u32 %v345, 7
    %v347 = vsub.s32 3, %v346
    %v348 = vrot.slane %v227, %v347
    %v349 = vlaneseq
    %v350 = vshrl.u32 %v349, 7
    %v351 = vsub.s32 0, %v350
    %v352 = vrot.slane %v228, %v351
    %v353 = vlaneseq
    %v354 = vshrl.u32 %v353, 7
    %v355 = vsub.s32 1, %v354
    %v356 = vrot.slane %v228, %v355
    %v357 = vlaneseq
    %v358 = vshrl.u32 %v357, 7
    %v359 = vsub.s32 2, %v358
    %v360 = vrot.slane %v228, %v359
    %v361 = vlaneseq
    %v362 = vshrl.u32 %v361, 7
    %v363 = vsub.s32 3, %v362
    %v364 = vrot.slane %v228, %v363
    %v365 = vlaneseq
    %v366 = vshrl.u32 %v365, 7
    %v367 = vsub.s32 0, %v366
    %v368 = vrot.slane %v229, %v367
    %v369 = vlaneseq
    %v370 = vshrl.u32 %v369, 7
    %v371 = vsub.s32 1, %v370
    %v372 = vrot.slane %v229, %v371
    %v373 = vlaneseq
    %v374 = vshrl.u32 %v373, 7
    %v375 = vsub.s32 2, %v374
    %v376 = vrot.slane %v229, %v375
    %v377 = vlaneseq
    %v378 = vshrl.u32 %v377, 7
    %v379 = vsub.s32 3, %v378
    %v380 = vrot.slane %v229, %v379
    %v381 = vlaneseq
    %v382 = vshrl.u32 %v381, 7
    %v383 = vsub.s32 0, %v382
    %v384 = vrot.slane %v230, %v383
    %v385 = vlaneseq
    %v386 = vshrl.u32 %v385, 7
    %v387 = vsub.s32 1, %v386
    %v388 = vrot.slane %v230, %v387
    %v389 = vlaneseq
    %v390 = vshrl.u32 %v389, 7
    %v391 = vsub.s32 2, %v390
    %v392 = vrot.slane %v230, %v391
    %v393 = vlaneseq
    %v394 = vshrl.u32 %v393, 7
    %v395 = vsub.s32 3, %v394
    %v396 = vrot.slane %v230, %v395
    %v397 = vlaneseq
    %v398 = vshrl.u32 %v397, 7
    %v399 = vsub.s32 0, %v398
    %v400 = vrot.slane %v231, %v399
    %v401 = vlaneseq
    %v402 = vshrl.u32 %v401, 7
    %v403 = vsub.s32 1, %v402
    %v404 = vrot.slane %v231, %v403
    %v405 = vlaneseq
    %v406 = vshrl.u32 %v405, 7
    %v407 = vsub.s32 2, %v406
    %v408 = vrot.slane %v231, %v407
    %v409 = vlaneseq
    %v410 = vshrl.u32 %v409, 7
    %v411 = vsub.s32 3, %v410
    %v412 = vrot.slane %v231, %v411
    %v413 = vlaneseq
    %v414 = vshrl.u32 %v413, 7
    %v415 = vsub.s32 0, %v414
    %v416 = vrot.slane %v232, %v415
    %v417 = vlaneseq
    %v418 = vshrl.u32 %v417, 7
    %v419 = vsub.s32 1, %v418
    %v420 = vrot.slane %v232, %v419
    %v421 = vlaneseq
    %v422 = vshrl.u32 %v421, 7
    %v423 = vsub.s32 2, %v422
    %v424 = vrot.slane %v232, %v423
    %v425 = vlaneseq
    %v426 = vshrl.u32 %v425, 7
    %v427 = vsub.s32 3, %v426
    %v428 = vrot.slane %v232, %v427
    %v429 = vlaneseq
    %v430 = vshrl.u32 %v429, 7
    %v431 = vsub.s32 0, %v430
    %v432 = vrot.slane %v233, %v431
    %v433 = vlaneseq
    %v434 = vshrl.u32 %v433, 7
    %v435 = vsub.s32 1, %v434
    %v436 = vrot.slane %v233, %v435
    %v437 = vlaneseq
    %v438 = vshrl.u32 %v437, 7
    %v439 = vsub.s32 2, %v438
    %v440 = vrot.slane %v233, %v439
    %v441 = vlaneseq
    %v442 = vshrl.u32 %v441, 7
    %v443 = vsub.s32 3, %v442
    %v444 = vrot.slane %v233, %v443
    %v445 = vlaneseq
    %v446 = vshrl.u32 %v445, 7
    %v447 = vsub.s32 0, %v446
    %v448 = vrot.slane %v234, %v447
    %v449 = vlaneseq
    %v450 = vshrl.u32 %v449, 7
    %v451 = vsub.s32 1, %v450
    %v452 = vrot.slane %v234, %v451
    %v453 = vlaneseq
    %v454 = vshrl.u32 %v453, 7
    %v455 = vsub.s32 2, %v454
    %v456 = vrot.slane %v234, %v455
    %v457 = vlaneseq
    %v458 = vshrl.u32 %v457, 7
    %v459 = vsub.s32 3, %v458
    %v460 = vrot.slane %v234, %v459
    %v461 = vlaneseq
    %v462 = vshrl.u32 %v461, 7
    %v463 = vsub.s32 0, %v462
    %v464 = vrot.slane %v235, %v463
    %v465 = vlaneseq
    %v466 = vshrl.u32 %v465, 7
    %v467 = vsub.s32 1, %v466
    %v468 = vrot.slane %v235, %v467
    %v469 = vlaneseq
    %v470 = vshrl.u32 %v469, 7
    %v471 = vsub.s32 2, %v470
    %v472 = vrot.slane %v235, %v471
    %v473 = vlaneseq
    %v474 = vshrl.u32 %v473, 7
    %v475 = vsub.s32 3, %v474
    %v476 = vrot.slane %v235, %v475
    %v477 = vlaneseq
    %v478 = vshrl.u32 %v477, 7
    %v479 = vsub.s32 0, %v478
    %v480 = vrot.slane %v236, %v479
    %v481 = vlaneseq
    %v482 = vshrl.u32 %v481, 7
    %v483 = vsub.s32 1, %v482
    %v484 = vrot.slane %v236, %v483
    %v485 = vlaneseq
    %v486 = vshrl.u32 %v485, 7
    %v487 = vsub.s32 2, %v486
    %v488 = vrot.slane %v236, %v487
    %v489 = vlaneseq
    %v490 = vshrl.u32 %v489, 7
    %v491 = vsub.s32 3, %v490
    %v492 = vrot.slane %v236, %v491
    %vm493 = vcmp.eq.s32.totalorder %v240, 1
    %vm494 = vcmp.eq.s32.totalorder %v244, 1
    %vm495 = vcmp.eq.s32.totalorder %v248, 1
    %vm496 = vcmp.eq.s32.totalorder %v252, 1
    %vm497 = vcmp.eq.s32.totalorder %v256, 1
    %vm498 = vcmp.eq.s32.totalorder %v260, 1
    %vm499 = vcmp.eq.s32.totalorder %v264, 1
    %vm500 = vcmp.eq.s32.totalorder %v268, 1
    %vm501 = vcmp.eq.s32.totalorder %v272, 1
    %vm502 = vcmp.eq.s32.totalorder %v276, 1
    %vm503 = vcmp.eq.s32.totalorder %v280, 1
    %vm504 = vcmp.eq.s32.totalorder %v284, 1
    %vm505 = vcmp.eq.s32.totalorder %v288, 1
    %vm506 = vcmp.eq.s32.totalorder %v292, 1
    %vm507 = vcmp.eq.s32.totalorder %v296, 1
    %vm508 = vcmp.eq.s32.totalorder %v300, 1
    %vm509 = vcmp.eq.s32.totalorder %v304, 1
    %vm510 = vcmp.eq.s32.totalorder %v308, 1
    %vm511 = vcmp.eq.s32.totalorder %v312, 1
    %vm512 = vcmp.eq.s32.totalorder %v316, 1
    %vm513 = vcmp.eq.s32.totalorder %v320, 1
    %vm514 = vcmp.eq.s32.totalorder %v324, 1
    %vm515 = vcmp.eq.s32.totalorder %v328, 1
    %vm516 = vcmp.eq.s32.totalorder %v332, 1
    %vm517 = vcmp.eq.s32.totalorder %v336, 1
    %vm518 = vcmp.eq.s32.totalorder %v340, 1
    %vm519 = vcmp.eq.s32.totalorder %v344, 1
    %vm520 = vcmp.eq.s32.totalorder %v348, 1
    %vm521 = vcmp.eq.s32.totalorder %v352, 1
    %vm522 = vcmp.eq.s32.totalorder %v356, 1
    %vm523 = vcmp.eq.s32.totalorder %v360, 1
    %vm524 = vcmp.eq.s32.totalorder %v364, 1
    %vm525 = vcmp.eq.s32.totalorder %v368, 1
    %vm526 = vcmp.eq.s32.totalorder %v372, 1
    %vm527 = vcmp.eq.s32.totalorder %v376, 1
    %vm528 = vcmp.eq.s32.totalorder %v380, 1
    %vm529 = vcmp.eq.s32.totalorder %v384, 1
    %vm530 = vcmp.eq.s32.totalorder %v388, 1
    %vm531 = vcmp.eq.s32.totalorder %v392, 1
    %vm532 = vcmp.eq.s32.totalorder %v396, 1
    %vm533 = vcmp.eq.s32.totalorder %v400, 1
    %vm534 = vcmp.eq.s32.totalorder %v404, 1
    %vm535 = vcmp.eq.s32.totalorder %v408, 1
    %vm536 = vcmp.eq.s32.totalorder %v412, 1
    %vm537 = vcmp.eq.s32.totalorder %v416, 1
    %vm538 = vcmp.eq.s32.totalorder %v420, 1
    %vm539 = vcmp.eq.s32.totalorder %v424, 1
    %vm540 = vcmp.eq.s32.totalorder %v428, 1
    %vm541 = vcmp.eq.s32.totalorder %v432, 1
    %vm542 = vcmp.eq.s32.totalorder %v436, 1
    %vm543 = vcmp.eq.s32.totalorder %v440, 1
    %vm544 = vcmp.eq.s32.totalorder %v444, 1
    %vm545 = vcmp.eq.s32.totalorder %v448, 1
    %vm546 = vcmp.eq.s32.totalorder %v452, 1
    %vm547 = vcmp.eq.s32.totalorder %v456, 1
    %vm548 = vcmp.eq.s32.totalorder %v460, 1
    %vm549 = vcmp.eq.s32.totalorder %v464, 1
    %vm550 = vcmp.eq.s32.totalorder %v468, 1
    %vm551 = vcmp.eq.s32.totalorder %v472, 1
    %vm552 = vcmp.eq.s32.totalorder %v476, 1
    %vm553 = vcmp.eq.s32.totalorder %v480, 1
    %vm554 = vcmp.eq.s32.totalorder %v484, 1
    %vm555 = vcmp.eq.s32.totalorder %v488, 1
    %vm556 = vcmp.eq.s32.totalorder %v492, 1
    %v557 = vsel %vm493, %v29, -1e+30
    %v558 = vsel %vm494, %v30, -1e+30
    %v559 = vsel %vm495, %v31, -1e+30
    %v560 = vsel %vm496, %v32, -1e+30
    %v561 = vsel %vm493, %v33, -1e+30
    %v562 = vsel %vm494, %v34, -1e+30
    %v563 = vsel %vm495, %v35, -1e+30
    %v564 = vsel %vm496, %v36, -1e+30
    %v565 = vsel %vm497, %v29, -1e+30
    %v566 = vsel %vm498, %v30, -1e+30
    %v567 = vsel %vm499, %v31, -1e+30
    %v568 = vsel %vm500, %v32, -1e+30
    %v569 = vsel %vm497, %v33, -1e+30
    %v570 = vsel %vm498, %v34, -1e+30
    %v571 = vsel %vm499, %v35, -1e+30
    %v572 = vsel %vm500, %v36, -1e+30
    %v573 = vsel %vm501, %v29, -1e+30
    %v574 = vsel %vm502, %v30, -1e+30
    %v575 = vsel %vm503, %v31, -1e+30
    %v576 = vsel %vm504, %v32, -1e+30
    %v577 = vsel %vm501, %v33, -1e+30
    %v578 = vsel %vm502, %v34, -1e+30
    %v579 = vsel %vm503, %v35, -1e+30
    %v580 = vsel %vm504, %v36, -1e+30
    %v581 = vsel %vm505, %v29, -1e+30
    %v582 = vsel %vm506, %v30, -1e+30
    %v583 = vsel %vm507, %v31, -1e+30
    %v584 = vsel %vm508, %v32, -1e+30
    %v585 = vsel %vm505, %v33, -1e+30
    %v586 = vsel %vm506, %v34, -1e+30
    %v587 = vsel %vm507, %v35, -1e+30
    %v588 = vsel %vm508, %v36, -1e+30
    %v589 = vsel %vm509, %v29, -1e+30
    %v590 = vsel %vm510, %v30, -1e+30
    %v591 = vsel %vm511, %v31, -1e+30
    %v592 = vsel %vm512, %v32, -1e+30
    %v593 = vsel %vm509, %v33, -1e+30
    %v594 = vsel %vm510, %v34, -1e+30
    %v595 = vsel %vm511, %v35, -1e+30
    %v596 = vsel %vm512, %v36, -1e+30
    %v597 = vsel %vm513, %v29, -1e+30
    %v598 = vsel %vm514, %v30, -1e+30
    %v599 = vsel %vm515, %v31, -1e+30
    %v600 = vsel %vm516, %v32, -1e+30
    %v601 = vsel %vm513, %v33, -1e+30
    %v602 = vsel %vm514, %v34, -1e+30
    %v603 = vsel %vm515, %v35, -1e+30
    %v604 = vsel %vm516, %v36, -1e+30
    %v605 = vsel %vm517, %v29, -1e+30
    %v606 = vsel %vm518, %v30, -1e+30
    %v607 = vsel %vm519, %v31, -1e+30
    %v608 = vsel %vm520, %v32, -1e+30
    %v609 = vsel %vm517, %v33, -1e+30
    %v610 = vsel %vm518, %v34, -1e+30
    %v611 = vsel %vm519, %v35, -1e+30
    %v612 = vsel %vm520, %v36, -1e+30
    %v613 = vsel %vm521, %v29, -1e+30
    %v614 = vsel %vm522, %v30, -1e+30
    %v615 = vsel %vm523, %v31, -1e+30
    %v616 = vsel %vm524, %v32, -1e+30
    %v617 = vsel %vm521, %v33, -1e+30
    %v618 = vsel %vm522, %v34, -1e+30
    %v619 = vsel %vm523, %v35, -1e+30
    %v620 = vsel %vm524, %v36, -1e+30
    %v621 = vsel %vm525, %v29, -1e+30
    %v622 = vsel %vm526, %v30, -1e+30
    %v623 = vsel %vm527, %v31, -1e+30
    %v624 = vsel %vm528, %v32, -1e+30
    %v625 = vsel %vm525, %v33, -1e+30
    %v626 = vsel %vm526, %v34, -1e+30
    %v627 = vsel %vm527, %v35, -1e+30
    %v628 = vsel %vm528, %v36, -1e+30
    %v629 = vsel %vm529, %v29, -1e+30
    %v630 = vsel %vm530, %v30, -1e+30
    %v631 = vsel %vm531, %v31, -1e+30
    %v632 = vsel %vm532, %v32, -1e+30
    %v633 = vsel %vm529, %v33, -1e+30
    %v634 = vsel %vm530, %v34, -1e+30
    %v635 = vsel %vm531, %v35, -1e+30
    %v636 = vsel %vm532, %v36, -1e+30
    %v637 = vsel %vm533, %v29, -1e+30
    %v638 = vsel %vm534, %v30, -1e+30
    %v639 = vsel %vm535, %v31, -1e+30
    %v640 = vsel %vm536, %v32, -1e+30
    %v641 = vsel %vm533, %v33, -1e+30
    %v642 = vsel %vm534, %v34, -1e+30
    %v643 = vsel %vm535, %v35, -1e+30
    %v644 = vsel %vm536, %v36, -1e+30
    %v645 = vsel %vm537, %v29, -1e+30
    %v646 = vsel %vm538, %v30, -1e+30
    %v647 = vsel %vm539, %v31, -1e+30
    %v648 = vsel %vm540, %v32, -1e+30
    %v649 = vsel %vm537, %v33, -1e+30
    %v650 = vsel %vm538, %v34, -1e+30
    %v651 = vsel %vm539, %v35, -1e+30
    %v652 = vsel %vm540, %v36, -1e+30
    %v653 = vsel %vm541, %v29, -1e+30
    %v654 = vsel %vm542, %v30, -1e+30
    %v655 = vsel %vm543, %v31, -1e+30
    %v656 = vsel %vm544, %v32, -1e+30
    %v657 = vsel %vm541, %v33, -1e+30
    %v658 = vsel %vm542, %v34, -1e+30
    %v659 = vsel %vm543, %v35, -1e+30
    %v660 = vsel %vm544, %v36, -1e+30
    %v661 = vsel %vm545, %v29, -1e+30
    %v662 = vsel %vm546, %v30, -1e+30
    %v663 = vsel %vm547, %v31, -1e+30
    %v664 = vsel %vm548, %v32, -1e+30
    %v665 = vsel %vm545, %v33, -1e+30
    %v666 = vsel %vm546, %v34, -1e+30
    %v667 = vsel %vm547, %v35, -1e+30
    %v668 = vsel %vm548, %v36, -1e+30
    %v669 = vsel %vm549, %v29, -1e+30
    %v670 = vsel %vm550, %v30, -1e+30
    %v671 = vsel %vm551, %v31, -1e+30
    %v672 = vsel %vm552, %v32, -1e+30
    %v673 = vsel %vm549, %v33, -1e+30
    %v674 = vsel %vm550, %v34, -1e+30
    %v675 = vsel %vm551, %v35, -1e+30
    %v676 = vsel %vm552, %v36, -1e+30
    %v677 = vsel %vm553, %v29, -1e+30
    %v678 = vsel %vm554, %v30, -1e+30
    %v679 = vsel %vm555, %v31, -1e+30
    %v680 = vsel %vm556, %v32, -1e+30
    %v681 = vsel %vm553, %v33, -1e+30
    %v682 = vsel %vm554, %v34, -1e+30
    %v683 = vsel %vm555, %v35, -1e+30
    %v684 = vsel %vm556, %v36, -1e+30
    %v685 = vld [vmem:[#allocation2] sm:$0xff]
    %v686 = vld [vmem:[#allocation2 + $0x8] sm:$0xff]
    %v687 = vmax.f32 %v557, %v558
    %v688 = vmax.f32 %v687, %v559
    %v689 = vmax.f32 %v688, %v560
    %690 = vmax.xlane.f32.xlu0 %v689
    %v691 = vpop.xlane.xlu0 %690
    %v692 = vmax.f32 %v561, %v562
    %v693 = vmax.f32 %v692, %v563
    %v694 = vmax.f32 %v693, %v564
    %695 = vmax.xlane.f32.xlu0 %v694
    %v696 = vpop.xlane.xlu0 %695
    %v697 = vmax.f32 %v565, %v566
    %v698 = vmax.f32 %v697, %v567
    %v699 = vmax.f32 %v698, %v568
    %700 = vmax.xlane.f32.xlu0 %v699
    %v701 = vpop.xlane.xlu0 %700
    %v702 = vmax.f32 %v569, %v570
    %v703 = vmax.f32 %v702, %v571
    %v704 = vmax.f32 %v703, %v572
    %705 = vmax.xlane.f32.xlu0 %v704
    %v706 = vpop.xlane.xlu0 %705
    %v707 = vmax.f32 %v573, %v574
    %v708 = vmax.f32 %v707, %v575
    %v709 = vmax.f32 %v708, %v576
    %710 = vmax.xlane.f32.xlu0 %v709
    %v711 = vpop.xlane.xlu0 %710
    %v712 = vmax.f32 %v577, %v578
    %v713 = vmax.f32 %v712, %v579
    %v714 = vmax.f32 %v713, %v580
    %715 = vmax.xlane.f32.xlu0 %v714
    %v716 = vpop.xlane.xlu0 %715
    %v717 = vmax.f32 %v581, %v582
    %v718 = vmax.f32 %v717, %v583
    %v719 = vmax.f32 %v718, %v584
    %720 = vmax.xlane.f32.xlu0 %v719
    %v721 = vpop.xlane.xlu0 %720
    %v722 = vmax.f32 %v585, %v586
    %v723 = vmax.f32 %v722, %v587
    %v724 = vmax.f32 %v723, %v588
    %725 = vmax.xlane.f32.xlu0 %v724
    %v726 = vpop.xlane.xlu0 %725
    %v727 = vmax.f32 %v589, %v590
    %v728 = vmax.f32 %v727, %v591
    %v729 = vmax.f32 %v728, %v592
    %730 = vmax.xlane.f32.xlu0 %v729
    %v731 = vpop.xlane.xlu0 %730
    %v732 = vmax.f32 %v593, %v594
    %v733 = vmax.f32 %v732, %v595
    %v734 = vmax.f32 %v733, %v596
    %735 = vmax.xlane.f32.xlu0 %v734
    %v736 = vpop.xlane.xlu0 %735
    %v737 = vmax.f32 %v597, %v598
    %v738 = vmax.f32 %v737, %v599
    %v739 = vmax.f32 %v738, %v600
    %740 = vmax.xlane.f32.xlu0 %v739
    %v741 = vpop.xlane.xlu0 %740
    %v742 = vmax.f32 %v601, %v602
    %v743 = vmax.f32 %v742, %v603
    %v744 = vmax.f32 %v743, %v604
    %745 = vmax.xlane.f32.xlu0 %v744
    %v746 = vpop.xlane.xlu0 %745
    %v747 = vmax.f32 %v605, %v606
    %v748 = vmax.f32 %v747, %v607
    %v749 = vmax.f32 %v748, %v608
    %750 = vmax.xlane.f32.xlu0 %v749
    %v751 = vpop.xlane.xlu0 %750
    %v752 = vmax.f32 %v609, %v610
    %v753 = vmax.f32 %v752, %v611
    %v754 = vmax.f32 %v753, %v612
    %755 = vmax.xlane.f32.xlu0 %v754
    %v756 = vpop.xlane.xlu0 %755
    %v757 = vmax.f32 %v613, %v614
    %v758 = vmax.f32 %v757, %v615
    %v759 = vmax.f32 %v758, %v616
    %760 = vmax.xlane.f32.xlu0 %v759
    %v761 = vpop.xlane.xlu0 %760
    %v762 = vmax.f32 %v617, %v618
    %v763 = vmax.f32 %v762, %v619
    %v764 = vmax.f32 %v763, %v620
    %765 = vmax.xlane.f32.xlu0 %v764
    %v766 = vpop.xlane.xlu0 %765
    %v767 = vmax.f32 %v621, %v622
    %v768 = vmax.f32 %v767, %v623
    %v769 = vmax.f32 %v768, %v624
    %770 = vmax.xlane.f32.xlu0 %v769
    %v771 = vpop.xlane.xlu0 %770
    %v772 = vmax.f32 %v625, %v626
    %v773 = vmax.f32 %v772, %v627
    %v774 = vmax.f32 %v773, %v628
    %775 = vmax.xlane.f32.xlu0 %v774
    %v776 = vpop.xlane.xlu0 %775
    %v777 = vmax.f32 %v629, %v630
    %v778 = vmax.f32 %v777, %v631
    %v779 = vmax.f32 %v778, %v632
    %780 = vmax.xlane.f32.xlu0 %v779
    %v781 = vpop.xlane.xlu0 %780
    %v782 = vmax.f32 %v633, %v634
    %v783 = vmax.f32 %v782, %v635
    %v784 = vmax.f32 %v783, %v636
    %785 = vmax.xlane.f32.xlu0 %v784
    %v786 = vpop.xlane.xlu0 %785
    %v787 = vmax.f32 %v637, %v638
    %v788 = vmax.f32 %v787, %v639
    %v789 = vmax.f32 %v788, %v640
    %790 = vmax.xlane.f32.xlu0 %v789
    %v791 = vpop.xlane.xlu0 %790
    %v792 = vmax.f32 %v641, %v642
    %v793 = vmax.f32 %v792, %v643
    %v794 = vmax.f32 %v793, %v644
    %795 = vmax.xlane.f32.xlu0 %v794
    %v796 = vpop.xlane.xlu0 %795
    %v797 = vmax.f32 %v645, %v646
    %v798 = vmax.f32 %v797, %v647
    %v799 = vmax.f32 %v798, %v648
    %800 = vmax.xlane.f32.xlu0 %v799
    %v801 = vpop.xlane.xlu0 %800
    %v802 = vmax.f32 %v649, %v650
    %v803 = vmax.f32 %v802, %v651
    %v804 = vmax.f32 %v803, %v652
    %805 = vmax.xlane.f32.xlu0 %v804
    %v806 = vpop.xlane.xlu0 %805
    %v807 = vmax.f32 %v653, %v654
    %v808 = vmax.f32 %v807, %v655
    %v809 = vmax.f32 %v808, %v656
    %810 = vmax.xlane.f32.xlu0 %v809
    %v811 = vpop.xlane.xlu0 %810
    %v812 = vmax.f32 %v657, %v658
    %v813 = vmax.f32 %v812, %v659
    %v814 = vmax.f32 %v813, %v660
    %815 = vmax.xlane.f32.xlu0 %v814
    %v816 = vpop.xlane.xlu0 %815
    %v817 = vmax.f32 %v661, %v662
    %v818 = vmax.f32 %v817, %v663
    %v819 = vmax.f32 %v818, %v664
    %820 = vmax.xlane.f32.xlu0 %v819
    %v821 = vpop.xlane.xlu0 %820
    %v822 = vmax.f32 %v665, %v666
    %v823 = vmax.f32 %v822, %v667
    %v824 = vmax.f32 %v823, %v668
    %825 = vmax.xlane.f32.xlu0 %v824
    %v826 = vpop.xlane.xlu0 %825
    %v827 = vmax.f32 %v669, %v670
    %v828 = vmax.f32 %v827, %v671
    %v829 = vmax.f32 %v828, %v672
    %830 = vmax.xlane.f32.xlu0 %v829
    %v831 = vpop.xlane.xlu0 %830
    %v832 = vmax.f32 %v673, %v674
    %v833 = vmax.f32 %v832, %v675
    %v834 = vmax.f32 %v833, %v676
    %835 = vmax.xlane.f32.xlu0 %v834
    %v836 = vpop.xlane.xlu0 %835
    %v837 = vmax.f32 %v677, %v678
    %v838 = vmax.f32 %v837, %v679
    %v839 = vmax.f32 %v838, %v680
    %840 = vmax.xlane.f32.xlu0 %v839
    %v841 = vpop.xlane.xlu0 %840
    %v842 = vmax.f32 %v681, %v682
    %v843 = vmax.f32 %v842, %v683
    %v844 = vmax.f32 %v843, %v684
    %845 = vmax.xlane.f32.xlu0 %v844
    %v846 = vpop.xlane.xlu0 %845
    %v879 = vlaneseq
    %v880 = vand.u32 %v879, 127
    %v881 = vlaneseq
    %v882 = vshrl.u32 %v881, 7
    %v883 = vsub.s32 %v880, %v882
    %v884 = vrot.slane %v691, %v883
    %v885 = vadd.s32 %v880, 4294967288
    %v886 = vlaneseq
    %v887 = vshrl.u32 %v886, 7
    %v888 = vsub.s32 %v885, %v887
    %v889 = vrot.slane %v696, %v888
    %vm890 = vcmask 130112
    %v891 = vsel %vm890, %v889, %v884
    %v892 = vlaneseq
    %v893 = vshrl.u32 %v892, 7
    %v894 = vsub.s32 %v880, %v893
    %v895 = vrot.slane %v701, %v894
    %v896 = vlaneseq
    %v897 = vshrl.u32 %v896, 7
    %v898 = vsub.s32 %v885, %v897
    %v899 = vrot.slane %v706, %v898
    %v900 = vsel %vm890, %v899, %v895
    %v901 = vlaneseq
    %v902 = vshrl.u32 %v901, 7
    %v903 = vsub.s32 %v880, %v902
    %v904 = vrot.slane %v711, %v903
    %v905 = vlaneseq
    %v906 = vshrl.u32 %v905, 7
    %v907 = vsub.s32 %v885, %v906
    %v908 = vrot.slane %v716, %v907
    %v909 = vsel %vm890, %v908, %v904
    %v910 = vlaneseq
    %v911 = vshrl.u32 %v910, 7
    %v912 = vsub.s32 %v880, %v911
    %v913 = vrot.slane %v721, %v912
    %v914 = vlaneseq
    %v915 = vshrl.u32 %v914, 7
    %v916 = vsub.s32 %v885, %v915
    %v917 = vrot.slane %v726, %v916
    %v918 = vsel %vm890, %v917, %v913
    %v919 = vlaneseq
    %v920 = vshrl.u32 %v919, 7
    %v921 = vsub.s32 %v880, %v920
    %v922 = vrot.slane %v731, %v921
    %v923 = vlaneseq
    %v924 = vshrl.u32 %v923, 7
    %v925 = vsub.s32 %v885, %v924
    %v926 = vrot.slane %v736, %v925
    %v927 = vsel %vm890, %v926, %v922
    %v928 = vlaneseq
    %v929 = vshrl.u32 %v928, 7
    %v930 = vsub.s32 %v880, %v929
    %v931 = vrot.slane %v741, %v930
    %v932 = vlaneseq
    %v933 = vshrl.u32 %v932, 7
    %v934 = vsub.s32 %v885, %v933
    %v935 = vrot.slane %v746, %v934
    %v936 = vsel %vm890, %v935, %v931
    %v937 = vlaneseq
    %v938 = vshrl.u32 %v937, 7
    %v939 = vsub.s32 %v880, %v938
    %v940 = vrot.slane %v751, %v939
    %v941 = vlaneseq
    %v942 = vshrl.u32 %v941, 7
    %v943 = vsub.s32 %v885, %v942
    %v944 = vrot.slane %v756, %v943
    %v945 = vsel %vm890, %v944, %v940
    %v946 = vlaneseq
    %v947 = vshrl.u32 %v946, 7
    %v948 = vsub.s32 %v880, %v947
    %v949 = vrot.slane %v761, %v948
    %v950 = vlaneseq
    %v951 = vshrl.u32 %v950, 7
    %v952 = vsub.s32 %v885, %v951
    %v953 = vrot.slane %v766, %v952
    %v954 = vsel %vm890, %v953, %v949
    %v955 = vlaneseq
    %v956 = vshrl.u32 %v955, 7
    %v957 = vsub.s32 %v880, %v956
    %v958 = vrot.slane %v771, %v957
    %v959 = vlaneseq
    %v960 = vshrl.u32 %v959, 7
    %v961 = vsub.s32 %v885, %v960
    %v962 = vrot.slane %v776, %v961
    %v963 = vsel %vm890, %v962, %v958
    %v964 = vlaneseq
    %v965 = vshrl.u32 %v964, 7
    %v966 = vsub.s32 %v880, %v965
    %v967 = vrot.slane %v781, %v966
    %v968 = vlaneseq
    %v969 = vshrl.u32 %v968, 7
    %v970 = vsub.s32 %v885, %v969
    %v971 = vrot.slane %v786, %v970
    %v972 = vsel %vm890, %v971, %v967
    %v973 = vlaneseq
    %v974 = vshrl.u32 %v973, 7
    %v975 = vsub.s32 %v880, %v974
    %v976 = vrot.slane %v791, %v975
    %v977 = vlaneseq
    %v978 = vshrl.u32 %v977, 7
    %v979 = vsub.s32 %v885, %v978
    %v980 = vrot.slane %v796, %v979
    %v981 = vsel %vm890, %v980, %v976
    %v982 = vlaneseq
    %v983 = vshrl.u32 %v982, 7
    %v984 = vsub.s32 %v880, %v983
    %v985 = vrot.slane %v801, %v984
    %v986 = vlaneseq
    %v987 = vshrl.u32 %v986, 7
    %v988 = vsub.s32 %v885, %v987
    %v989 = vrot.slane %v806, %v988
    %v990 = vsel %vm890, %v989, %v985
    %v991 = vlaneseq
    %v992 = vshrl.u32 %v991, 7
    %v993 = vsub.s32 %v880, %v992
    %v994 = vrot.slane %v811, %v993
    %v995 = vlaneseq
    %v996 = vshrl.u32 %v995, 7
    %v997 = vsub.s32 %v885, %v996
    %v998 = vrot.slane %v816, %v997
    %v999 = vsel %vm890, %v998, %v994
    %v1000 = vlaneseq
    %v1001 = vshrl.u32 %v1000, 7
    %v1002 = vsub.s32 %v880, %v1001
    %v1003 = vrot.slane %v821, %v1002
    %v1004 = vlaneseq
    %v1005 = vshrl.u32 %v1004, 7
    %v1006 = vsub.s32 %v885, %v1005
    %v1007 = vrot.slane %v826, %v1006
    %v1008 = vsel %vm890, %v1007, %v1003
    %v1009 = vlaneseq
    %v1010 = vshrl.u32 %v1009, 7
    %v1011 = vsub.s32 %v880, %v1010
    %v1012 = vrot.slane %v831, %v1011
    %v1013 = vlaneseq
    %v1014 = vshrl.u32 %v1013, 7
    %v1015 = vsub.s32 %v885, %v1014
    %v1016 = vrot.slane %v836, %v1015
    %v1017 = vsel %vm890, %v1016, %v1012
    %v1018 = vlaneseq
    %v1019 = vshrl.u32 %v1018, 7
    %v1020 = vsub.s32 %v880, %v1019
    %v1021 = vrot.slane %v841, %v1020
    %v1022 = vlaneseq
    %v1023 = vshrl.u32 %v1022, 7
    %v1024 = vsub.s32 %v885, %v1023
    %v1025 = vrot.slane %v846, %v1024
    %v1026 = vsel %vm890, %v1025, %v1021
    %vm1027 = vcmask 1041409
    %v1028 = vsel %vm1027, %v900, %v891
    %vm1029 = vcmask 1042434
    %v1030 = vsel %vm1029, %v909, %v1028
    %vm1031 = vcmask 1043459
    %v1032 = vsel %vm1031, %v918, %v1030
    %vm1033 = vcmask 1044484
    %v1034 = vsel %vm1033, %v927, %v1032
    %vm1035 = vcmask 1045509
    %v1036 = vsel %vm1035, %v936, %v1034
    %vm1037 = vcmask 1046534
    %v1038 = vsel %vm1037, %v945, %v1036
    %vm1039 = vcmask 1047559
    %v1040 = vsel %vm1039, %v954, %v1038
    %v1041 = vsel %vm1027, %v972, %v963
    %v1042 = vsel %vm1029, %v981, %v1041
    %v1043 = vsel %vm1031, %v990, %v1042
    %v1044 = vsel %vm1033, %v999, %v1043
    %v1045 = vsel %vm1035, %v1008, %v1044
    %v1046 = vsel %vm1037, %v1017, %v1045
    %v1047 = vsel %vm1039, %v1026, %v1046
    %v1050 = vmax.f32 %v685, %v1040
    %v1051 = vmax.f32 %v686, %v1047
    %vm1052 = vcmask 130048
    %1053 = vst.msk [vmem:[#allocation2] sm:$0xff] %vm1052, %v1050
    %1054 = vst.msk [vmem:[#allocation2 + $0x8] sm:$0xff] %vm1052, %v1051
    // Predicated region
    $region22: #{gcn_forward.5} parent=1 // pred_check
      %p1055 = pneg %p18
    $region23: #{gcn_forward.5} parent=1 // pred_check_branch
      %1057 = sbr.rel (%p1055) target = $region25
    $region24: #{gcn_forward.5} parent=1 // pred_region
      %v1058 = vld [vmem:[#allocation2] sm:$0xff]
      %v1059 = vld [vmem:[#allocation2 + $0x8] sm:$0xff]
      %v1060 = vld [vmem:[%s2] sm:$0xff]
      %v1061 = vld [vmem:[%s2 + $0x8] sm:$0xff]
      %v1062 = vld [vmem:[%s3] sm:$0x1]
      %v1064 = vlaneseq
      %v1065 = vshrl.u32 %v1064, 7
      %v1066 = vsub.s32 0, %v1065
      %v1067 = vrot.slane %v1062, %v1066
      %v1070 = vsel %vm1052, %v1058, 0
      %v1073 = vsel %vm1052, %v1059, 0
      %1075 = vmatprep.subr.mxu0 0.0
      %1076 = vmatpush1.msra.mxu0 %v1060
      %1077 = vmatprep.subr.mxu0 0.0
      %1078 = vmatpush1.msra.mxu0 %v1061
      %1079 = vmatprep.subr.mxu0 0.0
      %1080 = vmatpush1.msra.mxu0 0.0
      %1081 = vmatprep.subr.mxu0 0.0
      %1082 = vmatpush1.msra.mxu0 0.0
      %1083 = vmatprep.subr.mxu0 0.0
      %1084 = vmatpush1.msra.mxu0 0.0
      %1085 = vmatprep.subr.mxu0 0.0
      %1086 = vmatpush1.msra.mxu0 0.0
      %1087 = vmatprep.subr.mxu0 0.0
      %1088 = vmatpush1.msra.mxu0 0.0
      %1089 = vmatprep.subr.mxu0 0.0
      %1090 = vmatpush1.msra.mxu0 0.0
      %1091 = vmatprep.subr.mxu0 0.0
      %1092 = vmatpush1.msra.mxu0 0.0
      %1093 = vmatprep.subr.mxu0 0.0
      %1094 = vmatpush1.msra.mxu0 0.0
      %1095 = vmatprep.subr.mxu0 0.0
      %1096 = vmatpush1.msra.mxu0 0.0
      %1097 = vmatprep.subr.mxu0 0.0
      %1098 = vmatpush1.msra.mxu0 0.0
      %1099 = vmatprep.subr.mxu0 0.0
      %1100 = vmatpush1.msra.mxu0 0.0
      %1101 = vmatprep.subr.mxu0 0.0
      %1102 = vmatpush1.msra.mxu0 0.0
      %1103 = vmatprep.subr.mxu0 0.0
      %1104 = vmatpush1.msra.mxu0 0.0
      %1105 = vmatprep.subr.mxu0 0.0
      %1106 = vmatpush1.msra.mxu0 0.0
      %1107 = vmatprep.subr.mxu0 0.0
      %1108 = vmatpush1.msra.mxu0 0.0
      %1109 = vmatprep.subr.mxu0 0.0
      %1110 = vmatpush1.msra.mxu0 0.0
      %1111 = vmatprep.subr.mxu0 0.0
      %1112 = vmatpush1.msra.mxu0 0.0
      %1113 = vmatprep.subr.mxu0 0.0
      %1114 = vmatpush1.msra.mxu0 0.0
      %1115 = vmatprep.subr.mxu0 0.0
      %1116 = vmatpush1.msra.mxu0 0.0
      %1117 = vmatprep.subr.mxu0 0.0
      %1118 = vmatpush1.msra.mxu0 0.0
      %1119 = vmatprep.subr.mxu0 0.0
      %1120 = vmatpush1.msra.mxu0 0.0
      %1121 = vmatprep.subr.mxu0 0.0
      %1122 = vmatpush1.msra.mxu0 0.0
      %1123 = vmatprep.subr.mxu0 0.0
      %1124 = vmatpush1.msra.mxu0 0.0
      %1125 = vmatprep.subr.mxu0 0.0
      %1126 = vmatpush1.msra.mxu0 0.0
      %1127 = vmatprep.subr.mxu0 0.0
      %1128 = vmatpush1.msra.mxu0 0.0
      %1129 = vmatprep.subr.mxu0 0.0
      %1130 = vmatpush1.msra.mxu0 0.0
      %1131 = vmatprep.subr.mxu0 0.0
      %1132 = vmatpush1.msra.mxu0 0.0
      %1133 = vmatprep.subr.mxu0 0.0
      %1134 = vmatpush1.msra.mxu0 0.0
      %1135 = vmatprep.subr.mxu0 0.0
      %1136 = vmatpush1.msra.mxu0 0.0
      %1137 = vmatprep.subr.mxu0 0.0
      %1138 = vmatpush1.msra.mxu0 0.0
      %1139 = vmatprep.mubr.f32.mxu0 0.0
      %1140 = vmatmul.mubr.f32.gmra.mrb[0].mxu0 %v1070
      %v1141 = vpop.f32.mrb[0].mxu0
      %v1142 = vadd.f32 %v1067, %v1141
      %v1143 = vpop.f32.mrb[0].mxu0
      %1144 = vmatprep.mubr.f32.mxu0 0.0
      %1145 = vmatmul.mubr.f32.gmra.mrb[0].mxu0 %v1073
      %v1146 = vpop.f32.mrb[0].mxu0
      %v1147 = vadd.f32 %v1067, %v1146
      %v1148 = vpop.f32.mrb[0].mxu0
      %1149 = vdwg.mxu0
      %vm1150 = vcmask 80896
      %v1151 = vsel %vm1150, %v1142, -inf
      %1152 = vmax.xlane.f32.xlu0 %v1151
      %v1153 = vpop.xlane.xlu0 %1152
      %v1154 = vsel %vm1150, %v1147, -inf
      %1155 = vmax.xlane.f32.xlu0 %v1154
      %v1156 = vpop.xlane.xlu0 %1155
      %v1157 = vsub.f32 %v1142, %v1153
      %v1158 = vsub.f32 %v1147, %v1156
      %v1159 = vmul.f32 %v1157, 1.442695
      %v1160 = vpow.pop %v1159
      %v1161 = vmul.f32 %v1158, 1.442695
      %v1162 = vpow.pop %v1161
      %v1163 = vsel %vm1150, %v1160, 0.0
      %1164 = vadd.xlane.f32.xlu0 %v1163
      %v1165 = vpop.xlane.xlu0 %1164
      %v1166 = vsel %vm1150, %v1162, 0.0
      %1167 = vadd.xlane.f32.xlu0 %v1166
      %v1168 = vpop.xlane.xlu0 %1167
      %v1169 = vlog2.pop %v1165
      %v1170 = vmul.f32 %v1169, 0.6931472
      %v1171 = vlog2.pop %v1168
      %v1172 = vmul.f32 %v1171, 0.6931472
      %v1173 = vsub.f32 %v1157, %v1170
      %v1174 = vsub.f32 %v1158, %v1172
      %1175 = vst.msk [vmem:[#allocation3] sm:$0xff] %vm1150, %v1173
      %1176 = vst.msk [vmem:[#allocation3 + $0x8] sm:$0xff] %vm1150, %v1174
    $region25: #{gcn_forward.5} parent=1 // pred_fallthru
      _
    // Predicated region
    $region26: #{gcn_forward.5} parent=1 // pred_check
      _
    $region27: #{gcn_forward.5} parent=1 // pred_check_branch
      %1178 = sbr.rel (0) target = $region29
    $region28: #{gcn_forward.5} parent=1 // pred_region
      %s1180 = ssub.s32 256, 256
      %1181 = vsyncadd [#allocation4], %s1180
      %s1182 = sshll.u32 [#allocation3], 4
      %s1183 = int_to_ptr.vmem [resolvable:$true] %s1182
      %1188 = dma.vmem_to_hbm [thread:$0]  %s1183, 256, %s4, [#allocation4], 128, 128, 8
    $region29: #{gcn_forward.5} parent=1 // pred_fallthru
      _
    // Predicated region
    $region30: #{gcn_forward.5} parent=1 // pred_check
      _
    $region31: #{gcn_forward.5} parent=1 // pred_check_branch
      %1190 = sbr.rel (0) target = $region33
    $region32: #{gcn_forward.5} parent=1 // pred_region
      %1191 = dma.done [#allocation4], 256
    $region33: #{gcn_forward.5} parent=1 // pred_fallthru
      _
    %1192 = vsyncpa [#allocation4], 1

</llo_original>
